<compile_context>
chip_gen: v5e
topology: v5e:2x2
jax: 0.10.0
libtpu: 0.0.40
codegen_flags: <defaults>
</compile_context>

<pallas_src>
import functools
import math

import jax
import jax.numpy as jnp
import numpy as np
from jax.experimental import pallas as pl
from jax.experimental.pallas import tpu as pltpu


NEG_INF = -1e9  # matches torch.full_like(dots, -1000000000.0)


# ----------------------------------------------------------------------------
# Shared math helpers
# ----------------------------------------------------------------------------
def _layer_norm(x, gamma, beta, eps):
    mean = jnp.mean(x, axis=-1, keepdims=True)
    var = jnp.mean((x - mean) ** 2, axis=-1, keepdims=True)
    return (x - mean) * jax.lax.rsqrt(var + eps) * gamma + beta


# ----------------------------------------------------------------------------
# Pallas kernels
# ----------------------------------------------------------------------------
def bert_layer_kernel(*refs, n_heads, d_head, has_mask, ln_eps, approx_recip):
    """One BertLayer for one batch item; grid = (batch, d_ff tiles)."""
    if has_mask:
        x_ref, bias_ref = refs[0], refs[1]
        refs = refs[2:]
    else:
        x_ref, bias_ref = refs[0], None
        refs = refs[1:]
    (wq_ref, bq_ref, wk_ref, bk_ref, wv_ref, bv_ref,
     wo_ref, bo_ref, g1_ref, be1_ref,
     w1_ref, b1_ref, w2_ref, b2_ref, g2_ref, be2_ref,
     out_ref, y1_ref, ctx_ref, acc_ref) = refs

    f = pl.program_id(1)
    cdt = wq_ref.dtype                      # MXU matmul dtype (bfloat16)

    def linear(inp, w_ref, b_ref):
        # low-precision MXU matmul, f32 accumulation, bias add in f32
        return (jnp.dot(inp, w_ref[...], preferred_element_type=jnp.float32)
                + b_ref[0])

    # --- attention + residual + LayerNorm1: once per batch item -------------
    @pl.when(f == 0)
    def _attention_and_ln1():
        x = x_ref[0]                        # (S, D) f32
        xb = x.astype(cdt)
        # 1/sqrt(d_head) folded into q once (not into every (S,S) score tile);
        # q/k/v cast to the matmul dtype once, right after their projections.
        scale = 1.0 / math.sqrt(d_head)
        q = (linear(xb, wq_ref, bq_ref) * scale).astype(cdt)
        k = linear(xb, wk_ref, bk_ref).astype(cdt)
        v = linear(xb, wv_ref, bv_ref).astype(cdt)

        if has_mask:
            bias = bias_ref[0]              # additive bias: (1,S) or (S,S) f32

        # Per-head attention; each head's context goes into a lane slab of one
        # (S, D) VMEM scratch so the output projection is a single large-K
        # (S,D)@(D,D) matmul (keeps the MXU fed, no per-head f32 accumulation).
        # TODO(synk): for d_head=64, process heads in 128-lane pairs to avoid
        # sub-vreg lane slices; at BERT-base scale stream K/V over a seq-tile
        # grid axis (flash-style) instead of holding full (S,S) scores.
        for h in range(n_heads):
            sl = slice(h * d_head, (h + 1) * d_head)
            # QK^T via dot_general contracting last dims (no materialized K^T)
            s = jax.lax.dot_general(q[:, sl], k[:, sl],
                                    (((1,), (1,)), ((), ())),
                                    preferred_element_type=jnp.float32)
            if has_mask:
                s = s + bias
            m = jnp.max(s, axis=-1, keepdims=True)
            p = jnp.exp(s - m)
            denom = jnp.sum(p, axis=-1, keepdims=True)
            if approx_recip:
                # EUP reciprocal (~1e-4 rel. error vs exact softmax);
                # documented, gateable divergence from torch semantics.
                p = p * pl.reciprocal(denom, approx=True)
            else:
                p = p / denom
            p = p.astype(cdt)
            ctx_ref[:, sl] = jnp.dot(p, v[:, sl],
                                     preferred_element_type=jnp.float32)

        attn = (jnp.dot(ctx_ref[...].astype(cdt), wo_ref[...],
                        preferred_element_type=jnp.float32) + bo_ref[0])
        # (dropout in the torch module is identity at inference)
        y1_ref[...] = _layer_norm(attn + x, g1_ref[0], be1_ref[0], ln_eps)
        acc_ref[...] = jnp.zeros_like(acc_ref)

    # --- FFN: one d_ff tile per grid step, accumulated in f32 ---------------
    y1b = y1_ref[...].astype(cdt)
    hid = jnp.maximum(linear(y1b, w1_ref, b1_ref), 0.0).astype(cdt)
    acc_ref[...] += jnp.dot(hid, w2_ref[...], preferred_element_type=jnp.float32)

    # --- residual + LayerNorm2 + store, on the last d_ff tile ---------------
    @pl.when(f == pl.num_programs(1) - 1)
    def _ln2_and_store():
        y2 = acc_ref[...] + b2_ref[0]
        out_ref[0] = _layer_norm(y2 + y1_ref[...], g2_ref[0], be2_ref[0], ln_eps)


def dense_kernel(x_ref, w_ref, b_ref, out_ref):
    """Final projection D -> out_pad (padded to a lane-dense multiple of 128)."""
    xb = x_ref[0].astype(w_ref.dtype)
    out_ref[0] = (jnp.dot(xb, w_ref[...], preferred_element_type=jnp.float32)
                  + b_ref[0])


# ----------------------------------------------------------------------------
# Spec / compiler-param helpers
# ----------------------------------------------------------------------------
def _invariant_spec(shape, ngrid):
    """Grid-invariant block (weights / biases / LN params): single-buffered.

    Its index_map always returns block 0, so double-buffering buys nothing
    and would double the VMEM footprint of resident weights."""
    nd = len(shape)
    if ngrid == 1:
        index_map = lambda b: (0,) * nd
    else:
        index_map = lambda b, f: (0,) * nd
    try:
        return pl.BlockSpec(shape, index_map, pipeline_mode=pl.Buffered(1))
    except (TypeError, AttributeError):   # older jax without pipeline_mode
        return pl.BlockSpec(shape, index_map)


def _compiler_params(dimension_semantics, vmem_limit_bytes=None):
    # vmem_limit_bytes guidance: raise toward ~64-100 MiB on v5e/v6e
    # (128 MiB physical) for large whole-layer-resident shapes; keep
    # <= ~48 MiB on v7x (64 MiB physical) and rely on the d_ff/seq tiling.
    kwargs = dict(dimension_semantics=dimension_semantics)
    if vmem_limit_bytes is not None:
        kwargs["vmem_limit_bytes"] = vmem_limit_bytes
    return pltpu.CompilerParams(**kwargs)


def _pick_ff_tile(d_ff):
    if d_ff <= 1024:
        return d_ff
    for t in (1024, 512, 256, 128):        # >=256 keeps the v6e/v7x MXU full
        if d_ff % t == 0:
            return t
    return d_ff


# ----------------------------------------------------------------------------
# Wrappers
# ----------------------------------------------------------------------------
def bert_layer_forward(x, mask_bias, mask_kind, p, *, n_heads, ln_eps=1e-5,
                       approx_recip=True, vmem_limit_bytes=None):
    B, S, D = x.shape
    d_ff = p["w1"].shape[1]
    d_head = D // n_heads
    tff = _pick_ff_tile(d_ff)
    n_ff = d_ff // tff
    has_mask = mask_kind != "none"

    kernel = functools.partial(bert_layer_kernel, n_heads=n_heads,
                               d_head=d_head, has_mask=has_mask,
                               ln_eps=ln_eps, approx_recip=approx_recip)

    inputs = [x]
    in_specs = [pl.BlockSpec((1, S, D), lambda b, f: (b, 0, 0))]
    if has_mask:
        inputs.append(mask_bias)
        if mask_kind == "key":     # (B,1,S) additive bias: tiny per-layer DMA
            in_specs.append(pl.BlockSpec((1, 1, S), lambda b, f: (b, 0, 0)))
        else:                      # (B,S,S) additive bias (general mask)
            in_specs.append(pl.BlockSpec((1, S, S), lambda b, f: (b, 0, 0)))

    weight_args = [
        (p["wq"], _invariant_spec((D, D), 2)),
        (p["bq"], _invariant_spec((1, D), 2)),
        (p["wk"], _invariant_spec((D, D), 2)),
        (p["bk"], _invariant_spec((1, D), 2)),
        (p["wv"], _invariant_spec((D, D), 2)),
        (p["bv"], _invariant_spec((1, D), 2)),
        (p["wo"], _invariant_spec((D, D), 2)),
        (p["bo"], _invariant_spec((1, D), 2)),
        (p["ln1_g"], _invariant_spec((1, D), 2)),
        (p["ln1_b"], _invariant_spec((1, D), 2)),
        # d_ff-streamed blocks (vary along the reduction axis -> double-buffered)
        (p["w1"], pl.BlockSpec((D, tff), lambda b, f: (0, f))),
        (p["b1"], pl.BlockSpec((1, tff), lambda b, f: (0, f))),
        (p["w2"], pl.BlockSpec((tff, D), lambda b, f: (f, 0))),
        (p["b2"], _invariant_spec((1, D), 2)),
        (p["ln2_g"], _invariant_spec((1, D), 2)),
        (p["ln2_b"], _invariant_spec((1, D), 2)),
    ]
    inputs += [a for a, _ in weight_args]
    in_specs += [s for _, s in weight_args]

    return pl.pallas_call(
        kernel,
        out_shape=jax.ShapeDtypeStruct((B, S, D), jnp.float32),
        grid=(B, n_ff),
        in_specs=in_specs,
        out_specs=pl.BlockSpec((1, S, D), lambda b, f: (b, 0, 0)),
        scratch_shapes=[
            pltpu.VMEM((S, D), jnp.float32),   # y1 (post-LN1), reused by FFN/LN2
            pltpu.VMEM((S, D), jnp.float32),   # per-head contexts, lane-packed
            pltpu.VMEM((S, D), jnp.float32),   # FFN output accumulator
        ],
        input_output_aliases={0: 0},           # layer output overwrites its input
        compiler_params=_compiler_params(("parallel", "arbitrary"),
                                         vmem_limit_bytes),
    )(*inputs)


def final_dense_forward(x, dense_wp, dense_bp, out_size, *, vmem_limit_bytes=None):
    B, S, D = x.shape
    out_pad = dense_wp.shape[1]
    y = pl.pallas_call(
        dense_kernel,
        out_shape=jax.ShapeDtypeStruct((B, S, out_pad), jnp.float32),
        grid=(B,),
        in_specs=[
            pl.BlockSpec((1, S, D), lambda b: (b, 0, 0)),
            _invariant_spec((D, out_pad), 1),
            _invariant_spec((1, out_pad), 1),
        ],
        out_specs=pl.BlockSpec((1, S, out_pad), lambda b: (b, 0, 0)),
        compiler_params=_compiler_params(("parallel",), vmem_limit_bytes),
    )(x, dense_wp, dense_bp)
    return y[..., :out_size]


def prepare_encoder_params(layer_params, dense_w, dense_b, *,
                           matmul_dtype=jnp.bfloat16):
    """Cast matmul weights to the MXU dtype ONCE, outside the per-forward path
    (avoids per-call f32->bf16 HBM traffic); biases / LN params stay f32.
    Also pre-pads the final dense weight to a lane-dense output width."""
    mdt = matmul_dtype
    prepared = []
    for p in layer_params:
        q = dict(p)
        for name in ("wq", "wk", "wv", "wo", "w1", "w2"):
            q[name] = p[name].astype(mdt)
        prepared.append(q)
    out_size = dense_w.shape[1]
    out_pad = ((out_size + 127) // 128) * 128
    pad = out_pad - out_size
    dense_wp = jnp.pad(dense_w.astype(mdt), ((0, 0), (0, pad)))
    dense_bp = jnp.pad(dense_b, ((0, 0), (0, pad)))
    return prepared, dense_wp, dense_bp


def _make_mask_bias(attention_mask, B, S):
    """Convert the module's boolean mask (True = attend) into an additive bias
    once per forward: (B,1,S) for key-padding masks, (B,S,S) otherwise."""
    if attention_mask is None:
        return None, "none"
    m = jnp.asarray(attention_mask)
    if m.dtype != jnp.bool_:
        m = m > 0.5
    if m.ndim == 2 and m.shape == (B, S):
        key = m[:, None, :]                                       # (B, 1, S)
        return jnp.where(key, 0.0, NEG_INF).astype(jnp.float32), "key"
    full = jnp.broadcast_to(m, (B, S, S))
    return jnp.where(full, 0.0, NEG_INF).astype(jnp.float32), "full"


def bert_encoder_forward(x, attention_mask, prepared_layers, dense_wp, dense_bp,
                         *, out_size, n_heads, ln_eps=1e-5,
                         vmem_limit_bytes=None):
    B, S, _ = x.shape
    mask_bias, mask_kind = _make_mask_bias(attention_mask, B, S)
    for p in prepared_layers:
        x = bert_layer_forward(x, mask_bias, mask_kind, p, n_heads=n_heads,
                               ln_eps=ln_eps, vmem_limit_bytes=vmem_limit_bytes)
    return final_dense_forward(x, dense_wp, dense_bp, out_size,
                               vmem_limit_bytes=vmem_limit_bytes)


# ----------------------------------------------------------------------------
# Pure-JAX references (module semantics; matmul dtype configurable)
# ----------------------------------------------------------------------------
def _ref_layer(x, mask, p, n_heads, mdt, ln_eps):
    B, S, D = x.shape
    dh = D // n_heads
    scale = 1.0 / math.sqrt(dh)

    def lin(inp, w, b):
        return (jnp.dot(inp.astype(mdt), w.astype(mdt),
                        preferred_element_type=jnp.float32) + b[0])

    q = (lin(x, p["wq"], p["bq"]) * scale).astype(mdt)
    k = lin(x, p["wk"], p["bk"]).astype(mdt)
    v = lin(x, p["wv"], p["bv"]).astype(mdt)

    def split(t):
        return t.reshape(B, S, n_heads, dh).transpose(0, 2, 1, 3)

    qh, kh, vh = split(q), split(k), split(v)
    dots = jnp.einsum("bhqd,bhkd->bhqk", qh, kh,
                      preferred_element_type=jnp.float32)
    if mask is not None:
        dots = jnp.where(mask, dots, NEG_INF)
    pa = jax.nn.softmax(dots, axis=-1)
    ctx = jnp.einsum("bhqk,bhkd->bhqd", pa.astype(mdt), vh,
                     preferred_element_type=jnp.float32)
    attn = ctx.transpose(0, 2, 1, 3).reshape(B, S, D)
    attn = lin(attn, p["wo"], p["bo"])
    y1 = _layer_norm(attn + x, p["ln1_g"][0], p["ln1_b"][0], ln_eps)
    h = jax.nn.relu(lin(y1, p["w1"], p["b1"]))
    y2 = lin(h, p["w2"], p["b2"])
    return _layer_norm(y2 + y1, p["ln2_g"][0], p["ln2_b"][0], ln_eps)


def _ref_encoder(x, attention_mask, layer_params, dense_w, dense_b,
                 n_heads, mdt, ln_eps=1e-5):
    B, S, _ = x.shape
    if attention_mask is None:
        mask = None
    else:
        m = jnp.asarray(attention_mask)
        if m.dtype != jnp.bool_:
            m = m > 0.5
        if m.ndim == 2 and m.shape == (B, S):
            mask = m[:, None, None, :]                  # (B,1,1,S)
        else:
            mask = jnp.broadcast_to(m, (B, S, S))[:, None]   # (B,1,S,S)
    for p in layer_params:
        x = _ref_layer(x, mask, p, n_heads, mdt, ln_eps)
    return (jnp.dot(x.astype(mdt), dense_w.astype(mdt),
                    preferred_element_type=jnp.float32) + dense_b[0])


# ----------------------------------------------------------------------------
# Parameter construction (deterministic, synthetic)
# ----------------------------------------------------------------------------
def make_params(key, n_layers, d_feature, n_heads, out_size, d_ff):
    layer_params = []
    for _ in range(n_layers):
        keys = jax.random.split(key, 13)
        key = keys[-1]
        s = 0.05
        p = {
            "wq": jax.random.normal(keys[0], (d_feature, d_feature), jnp.float32) * s,
            "bq": jax.random.normal(keys[1], (1, d_feature), jnp.float32) * s,
            "wk": jax.random.normal(keys[2], (d_feature, d_feature), jnp.float32) * s,
            "bk": jax.random.normal(keys[3], (1, d_feature), jnp.float32) * s,
            "wv": jax.random.normal(keys[4], (d_feature, d_feature), jnp.float32) * s,
            "bv": jax.random.normal(keys[5], (1, d_feature), jnp.float32) * s,
            "wo": jax.random.normal(keys[6], (d_feature, d_feature), jnp.float32) * s,
            "bo": jax.random.normal(keys[7], (1, d_feature), jnp.float32) * s,
            "ln1_g": jnp.ones((1, d_feature), jnp.float32),
            "ln1_b": jnp.zeros((1, d_feature), jnp.float32),
            "w1": jax.random.normal(keys[8], (d_feature, d_ff), jnp.float32) * s,
            "b1": jax.random.normal(keys[9], (1, d_ff), jnp.float32) * s,
            "w2": jax.random.normal(keys[10], (d_ff, d_feature), jnp.float32) * s,
            "b2": jax.random.normal(keys[11], (1, d_feature), jnp.float32) * s,
            "ln2_g": jnp.ones((1, d_feature), jnp.float32),
            "ln2_b": jnp.zeros((1, d_feature), jnp.float32),
        }
        layer_params.append(p)
    kd1, kd2 = jax.random.split(key)
    dense_w = jax.random.normal(kd1, (d_feature, out_size), jnp.float32) * 0.05
    dense_b = jax.random.normal(kd2, (1, out_size), jnp.float32) * 0.05
    return layer_params, dense_w, dense_b


# ----------------------------------------------------------------------------
# Main
# ----------------------------------------------------------------------------
if __name__ == "__main__":
    n_layers, d_feature, n_heads, out_size, d_ff = 2, 32, 4, 16, 64
    batch, seqlen = 2, 8

    key = jax.random.PRNGKey(0)
    k_x, k_p = jax.random.split(key)
    x = jax.random.normal(k_x, (batch, seqlen, d_feature), jnp.float32)
    layer_params, dense_w, dense_b = make_params(
        k_p, n_layers, d_feature, n_heads, out_size, d_ff)

    # One-time weight preparation (bf16 cast + dense padding) outside the
    # jitted per-forward path.
    prepared_layers, dense_wp, dense_bp = prepare_encoder_params(
        layer_params, dense_w, dense_b, matmul_dtype=jnp.bfloat16)

    fwd = jax.jit(functools.partial(
        bert_encoder_forward, out_size=out_size, n_heads=n_heads))

    # 1) attention_mask=None (the module's default): no mask DMA'd or applied.
    out = jax.block_until_ready(
        fwd(x, None, prepared_layers, dense_wp, dense_bp))
    assert out.shape == (batch, seqlen, out_size)
    # strict check vs matched-precision (bf16-matmul) reference
    ref_bf16 = _ref_encoder(x, None, layer_params, dense_w, dense_b,
                            n_heads, jnp.bfloat16)
    np.testing.assert_allclose(np.asarray(out), np.asarray(ref_bf16),
                               rtol=5e-3, atol=5e-3)
    # loose check vs full-f32 reference (original module semantics)
    ref_f32 = _ref_encoder(x, None, layer_params, dense_w, dense_b,
                           n_heads, jnp.float32)
    np.testing.assert_allclose(np.asarray(out), np.asarray(ref_f32),
                               rtol=2e-2, atol=2e-2)

    # 2) key-padding mask as a (B, S) boolean (True = attend): no (B,S,S)
    #    mask is materialized or DMA'd, only a (B,1,S) additive bias.
    lengths = jnp.array([seqlen, 5])
    key_mask = jnp.arange(seqlen)[None, :] < lengths[:, None]        # (B, S)
    out_k = jax.block_until_ready(
        fwd(x, key_mask, prepared_layers, dense_wp, dense_bp))
    ref_k = _ref_encoder(x, key_mask, layer_params, dense_w, dense_b,
                         n_heads, jnp.bfloat16)
    np.testing.assert_allclose(np.asarray(out_k), np.asarray(ref_k),
                               rtol=5e-3, atol=5e-3)

    # 3) general (B, S, S) mask path (same mask broadcast) must agree.
    full_mask = jnp.broadcast_to(key_mask[:, None, :], (batch, seqlen, seqlen))
    out_f = jax.block_until_ready(
        fwd(x, full_mask, prepared_layers, dense_wp, dense_bp))
    np.testing.assert_allclose(np.asarray(out_f), np.asarray(out_k),
                               rtol=1e-6, atol=1e-6)

    print("KERNEL_OK")
</pallas_src>

<mosaic_0001>
module attributes {stable_mosaic.version = 11 : i64} {
  func.func @dense_kernel(%arg0: i32, %arg1: memref<1x8x32xf32, #tpu.memory_space<vmem>>, %arg2: memref<32x128xbf16, #tpu.memory_space<vmem>>, %arg3: memref<1x128xf32, #tpu.memory_space<vmem>>, %arg4: memref<1x8x128xf32, #tpu.memory_space<vmem>>) attributes {dimension_semantics = [#tpu.dimension_semantics<parallel>], iteration_bounds = array<i64: 2>, scalar_prefetch = 0 : i64, scratch_operands = 0 : i64, tpu.core_type = #tpu.core_type<tc>, window_params = [{transform_indices = @transform_0, window_bounds = array<i64: 1, 8, 32>}, {pipeline_mode = #tpu.pipeline_mode<synchronous>, transform_indices = @transform_1, window_bounds = array<i64: 32, 128>}, {pipeline_mode = #tpu.pipeline_mode<synchronous>, transform_indices = @transform_2, window_bounds = array<i64: 1, 128>}, {transform_indices = @transform_3, window_bounds = array<i64: 1, 8, 128>}]} {
    %c0 = arith.constant 0 : index
    %c0_0 = arith.constant 0 : index
    %c0_1 = arith.constant 0 : index
    %0 = vector.load %arg1[%c0, %c0_0, %c0_1] : memref<1x8x32xf32, #tpu.memory_space<vmem>>, vector<1x8x32xf32>
    %1 = vector.shape_cast %0 : vector<1x8x32xf32> to vector<8x32xf32>
    %2 = arith.truncf %1 : vector<8x32xf32> to vector<8x32xbf16>
    %c0_2 = arith.constant 0 : index
    %c0_3 = arith.constant 0 : index
    %3 = vector.load %arg2[%c0_2, %c0_3] : memref<32x128xbf16, #tpu.memory_space<vmem>>, vector<32x128xbf16>
    %cst = arith.constant dense<0.000000e+00> : vector<8x128xf32>
    %4 = tpu.matmul %2, %3, %cst {dimension_numbers = #tpu.dot_dimension_numbers<[1], [0], [0], [1], [0, 0, 1, 1], [], []>} : vector<8x32xbf16>, vector<32x128xbf16>, vector<8x128xf32> -> vector<8x128xf32>
    %c0_4 = arith.constant 0 : index
    %c0_5 = arith.constant 0 : index
    %5 = vector.load %arg3[%c0_4, %c0_5] : memref<1x128xf32, #tpu.memory_space<vmem>>, vector<1x128xf32>
    %6 = vector.shape_cast %5 : vector<1x128xf32> to vector<128xf32>
    %7 = vector.shape_cast %6 : vector<128xf32> to vector<1x128xf32>
    %8 = vector.broadcast %7 : vector<1x128xf32> to vector<8x128xf32>
    %9 = arith.addf %4, %8 : vector<8x128xf32>
    %c0_6 = arith.constant 0 : index
    %c0_7 = arith.constant 0 : index
    %c0_8 = arith.constant 0 : index
    %10 = vector.load %arg4[%c0_6, %c0_7, %c0_8] : memref<1x8x128xf32, #tpu.memory_space<vmem>>, vector<1x8x128xf32>
    %11 = vector.shape_cast %10 : vector<1x8x128xf32> to vector<8x128xf32>
    %12 = vector.shape_cast %9 : vector<8x128xf32> to vector<1x8x128xf32>
    tpu.vector_store %arg4[%c0_6, %c0_7, %c0_8], %12 {strides = array<i32>} : memref<1x8x128xf32, #tpu.memory_space<vmem>>, vector<1x8x128xf32>,
    return
  }
  func.func @transform_0(%arg0: i32) -> (i32, i32, i32) {
    %c0_i32 = arith.constant 0 : i32
    %c0_i32_0 = arith.constant 0 : i32
    %c0_i32_1 = arith.constant 0 : i32
    return %arg0, %c0_i32, %c0_i32_0 : i32, i32, i32
  }
  func.func @transform_1(%arg0: i32) -> (i32, i32) {
    %c0_i32 = arith.constant 0 : i32
    %c0_i32_0 = arith.constant 0 : i32
    %c0_i32_1 = arith.constant 0 : i32
    return %c0_i32, %c0_i32_0 : i32, i32
  }
  func.func @transform_2(%arg0: i32) -> (i32, i32) {
    %c0_i32 = arith.constant 0 : i32
    %c0_i32_0 = arith.constant 0 : i32
    %c0_i32_1 = arith.constant 0 : i32
    return %c0_i32, %c0_i32_0 : i32, i32
  }
  func.func @transform_3(%arg0: i32) -> (i32, i32, i32) {
    %c0_i32 = arith.constant 0 : i32
    %c0_i32_0 = arith.constant 0 : i32
    %c0_i32_1 = arith.constant 0 : i32
    return %arg0, %c0_i32, %c0_i32_0 : i32, i32, i32
  }
}

module attributes {stable_mosaic.version = 11 : i64} {
  func.func @bert_layer_kernel(%arg0: i32, %arg1: i32, %arg2: memref<1x8x32xf32, #tpu.memory_space<vmem>>, %arg3: memref<32x32xbf16, #tpu.memory_space<vmem>>, %arg4: memref<1x32xf32, #tpu.memory_space<vmem>>, %arg5: memref<32x32xbf16, #tpu.memory_space<vmem>>, %arg6: memref<1x32xf32, #tpu.memory_space<vmem>>, %arg7: memref<32x32xbf16, #tpu.memory_space<vmem>>, %arg8: memref<1x32xf32, #tpu.memory_space<vmem>>, %arg9: memref<32x32xbf16, #tpu.memory_space<vmem>>, %arg10: memref<1x32xf32, #tpu.memory_space<vmem>>, %arg11: memref<1x32xf32, #tpu.memory_space<vmem>>, %arg12: memref<1x32xf32, #tpu.memory_space<vmem>>, %arg13: memref<32x64xbf16, #tpu.memory_space<vmem>>, %arg14: memref<1x64xf32, #tpu.memory_space<vmem>>, %arg15: memref<64x32xbf16, #tpu.memory_space<vmem>>, %arg16: memref<1x32xf32, #tpu.memory_space<vmem>>, %arg17: memref<1x32xf32, #tpu.memory_space<vmem>>, %arg18: memref<1x32xf32, #tpu.memory_space<vmem>>, %arg19: memref<1x8x32xf32, #tpu.memory_space<vmem>>, %arg20: memref<8x32xf32, #tpu.memory_space<vmem>>, %arg21: memref<8x32xf32, #tpu.memory_space<vmem>>, %arg22: memref<8x32xf32, #tpu.memory_space<vmem>>) attributes {dimension_semantics = [#tpu.dimension_semantics<parallel>, #tpu.dimension_semantics<arbitrary>], iteration_bounds = array<i64: 2, 1>, scalar_prefetch = 0 : i64, scratch_operands = 3 : i64, tpu.core_type = #tpu.core_type<tc>, window_params = [{transform_indices = @transform_0, window_bounds = array<i64: 1, 8, 32>}, {pipeline_mode = #tpu.pipeline_mode<synchronous>, transform_indices = @transform_1, window_bounds = array<i64: 32, 32>}, {pipeline_mode = #tpu.pipeline_mode<synchronous>, transform_indices = @transform_2, window_bounds = array<i64: 1, 32>}, {pipeline_mode = #tpu.pipeline_mode<synchronous>, transform_indices = @transform_3, window_bounds = array<i64: 32, 32>}, {pipeline_mode = #tpu.pipeline_mode<synchronous>, transform_indices = @transform_4, window_bounds = array<i64: 1, 32>}, {pipeline_mode = #tpu.pipeline_mode<synchronous>, transform_indices = @transform_5, window_bounds = array<i64: 32, 32>}, {pipeline_mode = #tpu.pipeline_mode<synchronous>, transform_indices = @transform_6, window_bounds = array<i64: 1, 32>}, {pipeline_mode = #tpu.pipeline_mode<synchronous>, transform_indices = @transform_7, window_bounds = array<i64: 32, 32>}, {pipeline_mode = #tpu.pipeline_mode<synchronous>, transform_indices = @transform_8, window_bounds = array<i64: 1, 32>}, {pipeline_mode = #tpu.pipeline_mode<synchronous>, transform_indices = @transform_9, window_bounds = array<i64: 1, 32>}, {pipeline_mode = #tpu.pipeline_mode<synchronous>, transform_indices = @transform_10, window_bounds = array<i64: 1, 32>}, {transform_indices = @transform_11, window_bounds = array<i64: 32, 64>}, {transform_indices = @transform_12, window_bounds = array<i64: 1, 64>}, {transform_indices = @transform_13, window_bounds = array<i64: 64, 32>}, {pipeline_mode = #tpu.pipeline_mode<synchronous>, transform_indices = @transform_14, window_bounds = array<i64: 1, 32>}, {pipeline_mode = #tpu.pipeline_mode<synchronous>, transform_indices = @transform_15, window_bounds = array<i64: 1, 32>}, {pipeline_mode = #tpu.pipeline_mode<synchronous>, transform_indices = @transform_16, window_bounds = array<i64: 1, 32>}, {transform_indices = @transform_17, window_bounds = array<i64: 1, 8, 32>}]} {
    %c0_i32 = arith.constant 0 : i32
    %0 = arith.cmpi eq, %arg1, %c0_i32 : i32
    %1 = arith.extui %0 : i1 to i32
    %c0_i32_0 = arith.constant 0 : i32
    %2 = arith.cmpi ne, %1, %c0_i32_0 : i32
    scf.if %2 {
      %c0_16 = arith.constant 0 : index
      %c0_17 = arith.constant 0 : index
      %c0_18 = arith.constant 0 : index
      %23 = vector.load %arg2[%c0_16, %c0_17, %c0_18] : memref<1x8x32xf32, #tpu.memory_space<vmem>>, vector<1x8x32xf32>
      %24 = vector.shape_cast %23 : vector<1x8x32xf32> to vector<8x32xf32>
      %25 = arith.truncf %24 : vector<8x32xf32> to vector<8x32xbf16>
      %c0_19 = arith.constant 0 : index
      %c0_20 = arith.constant 0 : index
      %26 = vector.load %arg3[%c0_19, %c0_20] : memref<32x32xbf16, #tpu.memory_space<vmem>>, vector<32x32xbf16>
      %cst_21 = arith.constant dense<0.000000e+00> : vector<8x32xf32>
      %27 = tpu.matmul %25, %26, %cst_21 {dimension_numbers = #tpu.dot_dimension_numbers<[1], [0], [0], [1], [0, 0, 1, 1], [], []>} : vector<8x32xbf16>, vector<32x32xbf16>, vector<8x32xf32> -> vector<8x32xf32>
      %c0_22 = arith.constant 0 : index
      %c0_23 = arith.constant 0 : index
      %28 = vector.load %arg4[%c0_22, %c0_23] : memref<1x32xf32, #tpu.memory_space<vmem>>, vector<1x32xf32>
      %29 = vector.shape_cast %28 : vector<1x32xf32> to vector<32xf32>
      %30 = vector.shape_cast %29 : vector<32xf32> to vector<1x32xf32>
      %31 = vector.broadcast %30 : vector<1x32xf32> to vector<8x32xf32>
      %32 = arith.addf %27, %31 : vector<8x32xf32>
      %cst_24 = arith.constant 0.353553385 : f32
      %33 = vector.broadcast %cst_24 : f32 to vector<8x32xf32>
      %34 = arith.mulf %32, %33 : vector<8x32xf32>
      %35 = arith.truncf %34 : vector<8x32xf32> to vector<8x32xbf16>
      %c0_25 = arith.constant 0 : index
      %c0_26 = arith.constant 0 : index
      %36 = vector.load %arg5[%c0_25, %c0_26] : memref<32x32xbf16, #tpu.memory_space<vmem>>, vector<32x32xbf16>
      %cst_27 = arith.constant dense<0.000000e+00> : vector<8x32xf32>
      %37 = tpu.matmul %25, %36, %cst_27 {dimension_numbers = #tpu.dot_dimension_numbers<[1], [0], [0], [1], [0, 0, 1, 1], [], []>} : vector<8x32xbf16>, vector<32x32xbf16>, vector<8x32xf32> -> vector<8x32xf32>
      %c0_28 = arith.constant 0 : index
      %c0_29 = arith.constant 0 : index
      %38 = vector.load %arg6[%c0_28, %c0_29] : memref<1x32xf32, #tpu.memory_space<vmem>>, vector<1x32xf32>
      %39 = vector.shape_cast %38 : vector<1x32xf32> to vector<32xf32>
      %40 = vector.shape_cast %39 : vector<32xf32> to vector<1x32xf32>
      %41 = vector.broadcast %40 : vector<1x32xf32> to vector<8x32xf32>
      %42 = arith.addf %37, %41 : vector<8x32xf32>
      %43 = arith.truncf %42 : vector<8x32xf32> to vector<8x32xbf16>
      %c0_30 = arith.constant 0 : index
      %c0_31 = arith.constant 0 : index
      %44 = vector.load %arg7[%c0_30, %c0_31] : memref<32x32xbf16, #tpu.memory_space<vmem>>, vector<32x32xbf16>
      %cst_32 = arith.constant dense<0.000000e+00> : vector<8x32xf32>
      %45 = tpu.matmul %25, %44, %cst_32 {dimension_numbers = #tpu.dot_dimension_numbers<[1], [0], [0], [1], [0, 0, 1, 1], [], []>} : vector<8x32xbf16>, vector<32x32xbf16>, vector<8x32xf32> -> vector<8x32xf32>
      %c0_33 = arith.constant 0 : index
      %c0_34 = arith.constant 0 : index
      %46 = vector.load %arg8[%c0_33, %c0_34] : memref<1x32xf32, #tpu.memory_space<vmem>>, vector<1x32xf32>
      %47 = vector.shape_cast %46 : vector<1x32xf32> to vector<32xf32>
      %48 = vector.shape_cast %47 : vector<32xf32> to vector<1x32xf32>
      %49 = vector.broadcast %48 : vector<1x32xf32> to vector<8x32xf32>
      %50 = arith.addf %45, %49 : vector<8x32xf32>
      %51 = arith.truncf %50 : vector<8x32xf32> to vector<8x32xbf16>
      %52 = vector.extract_strided_slice %35 {offsets = [0, 0], sizes = [8, 8], strides = [1, 1]} : vector<8x32xbf16> to vector<8x8xbf16>
      %53 = vector.extract_strided_slice %43 {offsets = [0, 0], sizes = [8, 8], strides = [1, 1]} : vector<8x32xbf16> to vector<8x8xbf16>
      %cst_35 = arith.constant dense<0.000000e+00> : vector<8x8xf32>
      %54 = tpu.matmul %52, %53, %cst_35 {dimension_numbers = #tpu.dot_dimension_numbers<[1], [1], [0], [0], [0, 0, 1, 0], [], []>} : vector<8x8xbf16>, vector<8x8xbf16>, vector<8x8xf32> -> vector<8x8xf32>
      %cst_36 = arith.constant dense<0xFF800000> : vector<8xf32>
      %55 = vector.multi_reduction <maximumf>, %54, %cst_36 [1] : vector<8x8xf32> to vector<8xf32>
      %56 = vector.shape_cast %55 : vector<8xf32> to vector<8x1xf32>
      %57 = vector.broadcast %56 : vector<8x1xf32> to vector<8x8xf32>
      %58 = arith.subf %54, %57 : vector<8x8xf32>
      %59 = math.exp %58 : vector<8x8xf32>
      %cst_37 = arith.constant dense<0.000000e+00> : vector<8xf32>
      %60 = vector.multi_reduction <add>, %59, %cst_37 [1] : vector<8x8xf32> to vector<8xf32>
      %61 = vector.shape_cast %60 : vector<8xf32> to vector<8x1xf32>
      %62 = tpu.reciprocal %61 {approx = true} : vector<8x1xf32> -> vector<8x1xf32>
      %63 = vector.broadcast %62 : vector<8x1xf32> to vector<8x8xf32>
      %64 = arith.mulf %59, %63 : vector<8x8xf32>
      %65 = arith.truncf %64 : vector<8x8xf32> to vector<8x8xbf16>
      %66 = vector.extract_strided_slice %51 {offsets = [0, 0], sizes = [8, 8], strides = [1, 1]} : vector<8x32xbf16> to vector<8x8xbf16>
      %cst_38 = arith.constant dense<0.000000e+00> : vector<8x8xf32>
      %67 = tpu.matmul %65, %66, %cst_38 {dimension_numbers = #tpu.dot_dimension_numbers<[1], [0], [0], [1], [0, 0, 1, 1], [], []>} : vector<8x8xbf16>, vector<8x8xbf16>, vector<8x8xf32> -> vector<8x8xf32>
      %c0_39 = arith.constant 0 : index
      %c0_40 = arith.constant 0 : index
      %68 = vector.load %arg21[%c0_39, %c0_40] : memref<8x32xf32, #tpu.memory_space<vmem>>, vector<8x8xf32>
      tpu.vector_store %arg21[%c0_39, %c0_40], %67 {strides = array<i32>} : memref<8x32xf32, #tpu.memory_space<vmem>>, vector<8x8xf32>,
      %69 = vector.extract_strided_slice %35 {offsets = [0, 8], sizes = [8, 8], strides = [1, 1]} : vector<8x32xbf16> to vector<8x8xbf16>
      %70 = vector.extract_strided_slice %43 {offsets = [0, 8], sizes = [8, 8], strides = [1, 1]} : vector<8x32xbf16> to vector<8x8xbf16>
      %cst_41 = arith.constant dense<0.000000e+00> : vector<8x8xf32>
      %71 = tpu.matmul %69, %70, %cst_41 {dimension_numbers = #tpu.dot_dimension_numbers<[1], [1], [0], [0], [0, 0, 1, 0], [], []>} : vector<8x8xbf16>, vector<8x8xbf16>, vector<8x8xf32> -> vector<8x8xf32>
      %cst_42 = arith.constant dense<0xFF800000> : vector<8xf32>
      %72 = vector.multi_reduction <maximumf>, %71, %cst_42 [1] : vector<8x8xf32> to vector<8xf32>
      %73 = vector.shape_cast %72 : vector<8xf32> to vector<8x1xf32>
      %74 = vector.broadcast %73 : vector<8x1xf32> to vector<8x8xf32>
      %75 = arith.subf %71, %74 : vector<8x8xf32>
      %76 = math.exp %75 : vector<8x8xf32>
      %cst_43 = arith.constant dense<0.000000e+00> : vector<8xf32>
      %77 = vector.multi_reduction <add>, %76, %cst_43 [1] : vector<8x8xf32> to vector<8xf32>
      %78 = vector.shape_cast %77 : vector<8xf32> to vector<8x1xf32>
      %79 = tpu.reciprocal %78 {approx = true} : vector<8x1xf32> -> vector<8x1xf32>
      %80 = vector.broadcast %79 : vector<8x1xf32> to vector<8x8xf32>
      %81 = arith.mulf %76, %80 : vector<8x8xf32>
      %82 = arith.truncf %81 : vector<8x8xf32> to vector<8x8xbf16>
      %83 = vector.extract_strided_slice %51 {offsets = [0, 8], sizes = [8, 8], strides = [1, 1]} : vector<8x32xbf16> to vector<8x8xbf16>
      %cst_44 = arith.constant dense<0.000000e+00> : vector<8x8xf32>
      %84 = tpu.matmul %82, %83, %cst_44 {dimension_numbers = #tpu.dot_dimension_numbers<[1], [0], [0], [1], [0, 0, 1, 1], [], []>} : vector<8x8xbf16>, vector<8x8xbf16>, vector<8x8xf32> -> vector<8x8xf32>
      %c0_45 = arith.constant 0 : index
      %c8 = arith.constant 8 : index
      %85 = vector.load %arg21[%c0_45, %c8] : memref<8x32xf32, #tpu.memory_space<vmem>>, vector<8x8xf32>
      tpu.vector_store %arg21[%c0_45, %c8], %84 {strides = array<i32>} : memref<8x32xf32, #tpu.memory_space<vmem>>, vector<8x8xf32>,
      %86 = vector.extract_strided_slice %35 {offsets = [0, 16], sizes = [8, 8], strides = [1, 1]} : vector<8x32xbf16> to vector<8x8xbf16>
      %87 = vector.extract_strided_slice %43 {offsets = [0, 16], sizes = [8, 8], strides = [1, 1]} : vector<8x32xbf16> to vector<8x8xbf16>
      %cst_46 = arith.constant dense<0.000000e+00> : vector<8x8xf32>
      %88 = tpu.matmul %86, %87, %cst_46 {dimension_numbers = #tpu.dot_dimension_numbers<[1], [1], [0], [0], [0, 0, 1, 0], [], []>} : vector<8x8xbf16>, vector<8x8xbf16>, vector<8x8xf32> -> vector<8x8xf32>
      %cst_47 = arith.constant dense<0xFF800000> : vector<8xf32>
      %89 = vector.multi_reduction <maximumf>, %88, %cst_47 [1] : vector<8x8xf32> to vector<8xf32>
      %90 = vector.shape_cast %89 : vector<8xf32> to vector<8x1xf32>
      %91 = vector.broadcast %90 : vector<8x1xf32> to vector<8x8xf32>
      %92 = arith.subf %88, %91 : vector<8x8xf32>
      %93 = math.exp %92 : vector<8x8xf32>
      %cst_48 = arith.constant dense<0.000000e+00> : vector<8xf32>
      %94 = vector.multi_reduction <add>, %93, %cst_48 [1] : vector<8x8xf32> to vector<8xf32>
      %95 = vector.shape_cast %94 : vector<8xf32> to vector<8x1xf32>
      %96 = tpu.reciprocal %95 {approx = true} : vector<8x1xf32> -> vector<8x1xf32>
      %97 = vector.broadcast %96 : vector<8x1xf32> to vector<8x8xf32>
      %98 = arith.mulf %93, %97 : vector<8x8xf32>
      %99 = arith.truncf %98 : vector<8x8xf32> to vector<8x8xbf16>
      %100 = vector.extract_strided_slice %51 {offsets = [0, 16], sizes = [8, 8], strides = [1, 1]} : vector<8x32xbf16> to vector<8x8xbf16>
      %cst_49 = arith.constant dense<0.000000e+00> : vector<8x8xf32>
      %101 = tpu.matmul %99, %100, %cst_49 {dimension_numbers = #tpu.dot_dimension_numbers<[1], [0], [0], [1], [0, 0, 1, 1], [], []>} : vector<8x8xbf16>, vector<8x8xbf16>, vector<8x8xf32> -> vector<8x8xf32>
      %c0_50 = arith.constant 0 : index
      %c16 = arith.constant 16 : index
      %102 = vector.load %arg21[%c0_50, %c16] : memref<8x32xf32, #tpu.memory_space<vmem>>, vector<8x8xf32>
      tpu.vector_store %arg21[%c0_50, %c16], %101 {strides = array<i32>} : memref<8x32xf32, #tpu.memory_space<vmem>>, vector<8x8xf32>,
      %103 = vector.extract_strided_slice %35 {offsets = [0, 24], sizes = [8, 8], strides = [1, 1]} : vector<8x32xbf16> to vector<8x8xbf16>
      %104 = vector.extract_strided_slice %43 {offsets = [0, 24], sizes = [8, 8], strides = [1, 1]} : vector<8x32xbf16> to vector<8x8xbf16>
      %cst_51 = arith.constant dense<0.000000e+00> : vector<8x8xf32>
      %105 = tpu.matmul %103, %104, %cst_51 {dimension_numbers = #tpu.dot_dimension_numbers<[1], [1], [0], [0], [0, 0, 1, 0], [], []>} : vector<8x8xbf16>, vector<8x8xbf16>, vector<8x8xf32> -> vector<8x8xf32>
      %cst_52 = arith.constant dense<0xFF800000> : vector<8xf32>
      %106 = vector.multi_reduction <maximumf>, %105, %cst_52 [1] : vector<8x8xf32> to vector<8xf32>
      %107 = vector.shape_cast %106 : vector<8xf32> to vector<8x1xf32>
      %108 = vector.broadcast %107 : vector<8x1xf32> to vector<8x8xf32>
      %109 = arith.subf %105, %108 : vector<8x8xf32>
      %110 = math.exp %109 : vector<8x8xf32>
      %cst_53 = arith.constant dense<0.000000e+00> : vector<8xf32>
      %111 = vector.multi_reduction <add>, %110, %cst_53 [1] : vector<8x8xf32> to vector<8xf32>
      %112 = vector.shape_cast %111 : vector<8xf32> to vector<8x1xf32>
      %113 = tpu.reciprocal %112 {approx = true} : vector<8x1xf32> -> vector<8x1xf32>
      %114 = vector.broadcast %113 : vector<8x1xf32> to vector<8x8xf32>
      %115 = arith.mulf %110, %114 : vector<8x8xf32>
      %116 = arith.truncf %115 : vector<8x8xf32> to vector<8x8xbf16>
      %117 = vector.extract_strided_slice %51 {offsets = [0, 24], sizes = [8, 8], strides = [1, 1]} : vector<8x32xbf16> to vector<8x8xbf16>
      %cst_54 = arith.constant dense<0.000000e+00> : vector<8x8xf32>
      %118 = tpu.matmul %116, %117, %cst_54 {dimension_numbers = #tpu.dot_dimension_numbers<[1], [0], [0], [1], [0, 0, 1, 1], [], []>} : vector<8x8xbf16>, vector<8x8xbf16>, vector<8x8xf32> -> vector<8x8xf32>
      %c0_55 = arith.constant 0 : index
      %c24 = arith.constant 24 : index
      %119 = vector.load %arg21[%c0_55, %c24] : memref<8x32xf32, #tpu.memory_space<vmem>>, vector<8x8xf32>
      tpu.vector_store %arg21[%c0_55, %c24], %118 {strides = array<i32>} : memref<8x32xf32, #tpu.memory_space<vmem>>, vector<8x8xf32>,
      %c0_56 = arith.constant 0 : index
      %c0_57 = arith.constant 0 : index
      %120 = vector.load %arg21[%c0_56, %c0_57] : memref<8x32xf32, #tpu.memory_space<vmem>>, vector<8x32xf32>
      %121 = arith.truncf %120 : vector<8x32xf32> to vector<8x32xbf16>
      %c0_58 = arith.constant 0 : index
      %c0_59 = arith.constant 0 : index
      %122 = vector.load %arg9[%c0_58, %c0_59] : memref<32x32xbf16, #tpu.memory_space<vmem>>, vector<32x32xbf16>
      %cst_60 = arith.constant dense<0.000000e+00> : vector<8x32xf32>
      %123 = tpu.matmul %121, %122, %cst_60 {dimension_numbers = #tpu.dot_dimension_numbers<[1], [0], [0], [1], [0, 0, 1, 1], [], []>} : vector<8x32xbf16>, vector<32x32xbf16>, vector<8x32xf32> -> vector<8x32xf32>
      %c0_61 = arith.constant 0 : index
      %c0_62 = arith.constant 0 : index
      %124 = vector.load %arg10[%c0_61, %c0_62] : memref<1x32xf32, #tpu.memory_space<vmem>>, vector<1x32xf32>
      %125 = vector.shape_cast %124 : vector<1x32xf32> to vector<32xf32>
      %126 = vector.shape_cast %125 : vector<32xf32> to vector<1x32xf32>
      %127 = vector.broadcast %126 : vector<1x32xf32> to vector<8x32xf32>
      %128 = arith.addf %123, %127 : vector<8x32xf32>
      %129 = arith.addf %128, %24 : vector<8x32xf32>
      %c0_63 = arith.constant 0 : index
      %c0_64 = arith.constant 0 : index
      %130 = vector.load %arg11[%c0_63, %c0_64] : memref<1x32xf32, #tpu.memory_space<vmem>>, vector<1x32xf32>
      %131 = vector.shape_cast %130 : vector<1x32xf32> to vector<32xf32>
      %c0_65 = arith.constant 0 : index
      %c0_66 = arith.constant 0 : index
      %132 = vector.load %arg12[%c0_65, %c0_66] : memref<1x32xf32, #tpu.memory_space<vmem>>, vector<1x32xf32>
      %133 = vector.shape_cast %132 : vector<1x32xf32> to vector<32xf32>
      %cst_67 = arith.constant dense<0.000000e+00> : vector<8xf32>
      %134 = vector.multi_reduction <add>, %129, %cst_67 [1] : vector<8x32xf32> to vector<8xf32>
      %135 = vector.shape_cast %134 : vector<8xf32> to vector<8x1xf32>
      %cst_68 = arith.constant 3.200000e+01 : f32
      %136 = vector.broadcast %cst_68 : f32 to vector<8x1xf32>
      %137 = arith.divf %135, %136 : vector<8x1xf32>
      %138 = vector.broadcast %137 : vector<8x1xf32> to vector<8x32xf32>
      %139 = arith.subf %129, %138 : vector<8x32xf32>
      %140 = arith.mulf %139, %139 : vector<8x32xf32>
      %cst_69 = arith.constant dense<0.000000e+00> : vector<8xf32>
      %141 = vector.multi_reduction <add>, %140, %cst_69 [1] : vector<8x32xf32> to vector<8xf32>
      %142 = vector.shape_cast %141 : vector<8xf32> to vector<8x1xf32>
      %cst_70 = arith.constant 3.200000e+01 : f32
      %143 = vector.broadcast %cst_70 : f32 to vector<8x1xf32>
      %144 = arith.divf %142, %143 : vector<8x1xf32>
      %145 = vector.broadcast %137 : vector<8x1xf32> to vector<8x32xf32>
      %146 = arith.subf %129, %145 : vector<8x32xf32>
      %cst_71 = arith.constant 9.99999974E-6 : f32
      %147 = vector.broadcast %cst_71 : f32 to vector<8x1xf32>
      %148 = arith.addf %144, %147 : vector<8x1xf32>
      %149 = math.rsqrt %148 : vector<8x1xf32>
      %150 = vector.broadcast %149 : vector<8x1xf32> to vector<8x32xf32>
      %151 = arith.mulf %146, %150 : vector<8x32xf32>
      %152 = vector.shape_cast %131 : vector<32xf32> to vector<1x32xf32>
      %153 = vector.broadcast %152 : vector<1x32xf32> to vector<8x32xf32>
      %154 = arith.mulf %151, %153 : vector<8x32xf32>
      %155 = vector.shape_cast %133 : vector<32xf32> to vector<1x32xf32>
      %156 = vector.broadcast %155 : vector<1x32xf32> to vector<8x32xf32>
      %157 = arith.addf %154, %156 : vector<8x32xf32>
      %c0_72 = arith.constant 0 : index
      %c0_73 = arith.constant 0 : index
      %158 = vector.load %arg20[%c0_72, %c0_73] : memref<8x32xf32, #tpu.memory_space<vmem>>, vector<8x32xf32>
      tpu.vector_store %arg20[%c0_72, %c0_73], %157 {strides = array<i32>} : memref<8x32xf32, #tpu.memory_space<vmem>>, vector<8x32xf32>,
      %cst_74 = arith.constant 0.000000e+00 : f32
      %159 = vector.broadcast %cst_74 : f32 to vector<8x32xf32>
      %c0_75 = arith.constant 0 : index
      %c0_76 = arith.constant 0 : index
      %160 = vector.load %arg22[%c0_75, %c0_76] : memref<8x32xf32, #tpu.memory_space<vmem>>, vector<8x32xf32>
      tpu.vector_store %arg22[%c0_75, %c0_76], %159 {strides = array<i32>} : memref<8x32xf32, #tpu.memory_space<vmem>>, vector<8x32xf32>,
    } else {
    }
    %c0 = arith.constant 0 : index
    %c0_1 = arith.constant 0 : index
    %3 = vector.load %arg20[%c0, %c0_1] : memref<8x32xf32, #tpu.memory_space<vmem>>, vector<8x32xf32>
    %4 = arith.truncf %3 : vector<8x32xf32> to vector<8x32xbf16>
    %c0_2 = arith.constant 0 : index
    %c0_3 = arith.constant 0 : index
    %5 = vector.load %arg13[%c0_2, %c0_3] : memref<32x64xbf16, #tpu.memory_space<vmem>>, vector<32x64xbf16>
    %cst = arith.constant dense<0.000000e+00> : vector<8x64xf32>
    %6 = tpu.matmul %4, %5, %cst {dimension_numbers = #tpu.dot_dimension_numbers<[1], [0], [0], [1], [0, 0, 1, 1], [], []>} : vector<8x32xbf16>, vector<32x64xbf16>, vector<8x64xf32> -> vector<8x64xf32>
    %c0_4 = arith.constant 0 : index
    %c0_5 = arith.constant 0 : index
    %7 = vector.load %arg14[%c0_4, %c0_5] : memref<1x64xf32, #tpu.memory_space<vmem>>, vector<1x64xf32>
    %8 = vector.shape_cast %7 : vector<1x64xf32> to vector<64xf32>
    %9 = vector.shape_cast %8 : vector<64xf32> to vector<1x64xf32>
    %10 = vector.broadcast %9 : vector<1x64xf32> to vector<8x64xf32>
    %11 = arith.addf %6, %10 : vector<8x64xf32>
    %cst_6 = arith.constant 0.000000e+00 : f32
    %12 = vector.broadcast %cst_6 : f32 to vector<8x64xf32>
    %13 = arith.maximumf %11, %12 : vector<8x64xf32>
    %14 = arith.truncf %13 : vector<8x64xf32> to vector<8x64xbf16>
    %c0_7 = arith.constant 0 : index
    %c0_8 = arith.constant 0 : index
    %15 = vector.load %arg22[%c0_7, %c0_8] : memref<8x32xf32, #tpu.memory_space<vmem>>, vector<8x32xf32>
    %c0_9 = arith.constant 0 : index
    %c0_10 = arith.constant 0 : index
    %16 = vector.load %arg15[%c0_9, %c0_10] : memref<64x32xbf16, #tpu.memory_space<vmem>>, vector<64x32xbf16>
    %cst_11 = arith.constant dense<0.000000e+00> : vector<8x32xf32>
    %17 = tpu.matmul %14, %16, %cst_11 {dimension_numbers = #tpu.dot_dimension_numbers<[1], [0], [0], [1], [0, 0, 1, 1], [], []>} : vector<8x64xbf16>, vector<64x32xbf16>, vector<8x32xf32> -> vector<8x32xf32>
    %18 = arith.addf %15, %17 : vector<8x32xf32>
    %c0_12 = arith.constant 0 : index
    %c0_13 = arith.constant 0 : index
    %19 = vector.load %arg22[%c0_12, %c0_13] : memref<8x32xf32, #tpu.memory_space<vmem>>, vector<8x32xf32>
    tpu.vector_store %arg22[%c0_12, %c0_13], %18 {strides = array<i32>} : memref<8x32xf32, #tpu.memory_space<vmem>>, vector<8x32xf32>,
    %c0_i32_14 = arith.constant 0 : i32
    %20 = arith.cmpi eq, %arg1, %c0_i32_14 : i32
    %21 = arith.extui %20 : i1 to i32
    %c0_i32_15 = arith.constant 0 : i32
    %22 = arith.cmpi ne, %21, %c0_i32_15 : i32
    scf.if %22 {
      %c0_16 = arith.constant 0 : index
      %c0_17 = arith.constant 0 : index
      %23 = vector.load %arg22[%c0_16, %c0_17] : memref<8x32xf32, #tpu.memory_space<vmem>>, vector<8x32xf32>
      %c0_18 = arith.constant 0 : index
      %c0_19 = arith.constant 0 : index
      %24 = vector.load %arg16[%c0_18, %c0_19] : memref<1x32xf32, #tpu.memory_space<vmem>>, vector<1x32xf32>
      %25 = vector.shape_cast %24 : vector<1x32xf32> to vector<32xf32>
      %26 = vector.shape_cast %25 : vector<32xf32> to vector<1x32xf32>
      %27 = vector.broadcast %26 : vector<1x32xf32> to vector<8x32xf32>
      %28 = arith.addf %23, %27 : vector<8x32xf32>
      %c0_20 = arith.constant 0 : index
      %c0_21 = arith.constant 0 : index
      %29 = vector.load %arg20[%c0_20, %c0_21] : memref<8x32xf32, #tpu.memory_space<vmem>>, vector<8x32xf32>
      %30 = arith.addf %28, %29 : vector<8x32xf32>
      %c0_22 = arith.constant 0 : index
      %c0_23 = arith.constant 0 : index
      %31 = vector.load %arg17[%c0_22, %c0_23] : memref<1x32xf32, #tpu.memory_space<vmem>>, vector<1x32xf32>
      %32 = vector.shape_cast %31 : vector<1x32xf32> to vector<32xf32>
      %c0_24 = arith.constant 0 : index
      %c0_25 = arith.constant 0 : index
      %33 = vector.load %arg18[%c0_24, %c0_25] : memref<1x32xf32, #tpu.memory_space<vmem>>, vector<1x32xf32>
      %34 = vector.shape_cast %33 : vector<1x32xf32> to vector<32xf32>
      %cst_26 = arith.constant dense<0.000000e+00> : vector<8xf32>
      %35 = vector.multi_reduction <add>, %30, %cst_26 [1] : vector<8x32xf32> to vector<8xf32>
      %36 = vector.shape_cast %35 : vector<8xf32> to vector<8x1xf32>
      %cst_27 = arith.constant 3.200000e+01 : f32
      %37 = vector.broadcast %cst_27 : f32 to vector<8x1xf32>
      %38 = arith.divf %36, %37 : vector<8x1xf32>
      %39 = vector.broadcast %38 : vector<8x1xf32> to vector<8x32xf32>
      %40 = arith.subf %30, %39 : vector<8x32xf32>
      %41 = arith.mulf %40, %40 : vector<8x32xf32>
      %cst_28 = arith.constant dense<0.000000e+00> : vector<8xf32>
      %42 = vector.multi_reduction <add>, %41, %cst_28 [1] : vector<8x32xf32> to vector<8xf32>
      %43 = vector.shape_cast %42 : vector<8xf32> to vector<8x1xf32>
      %cst_29 = arith.constant 3.200000e+01 : f32
      %44 = vector.broadcast %cst_29 : f32 to vector<8x1xf32>
      %45 = arith.divf %43, %44 : vector<8x1xf32>
      %46 = vector.broadcast %38 : vector<8x1xf32> to vector<8x32xf32>
      %47 = arith.subf %30, %46 : vector<8x32xf32>
      %cst_30 = arith.constant 9.99999974E-6 : f32
      %48 = vector.broadcast %cst_30 : f32 to vector<8x1xf32>
      %49 = arith.addf %45, %48 : vector<8x1xf32>
      %50 = math.rsqrt %49 : vector<8x1xf32>
      %51 = vector.broadcast %50 : vector<8x1xf32> to vector<8x32xf32>
      %52 = arith.mulf %47, %51 : vector<8x32xf32>
      %53 = vector.shape_cast %32 : vector<32xf32> to vector<1x32xf32>
      %54 = vector.broadcast %53 : vector<1x32xf32> to vector<8x32xf32>
      %55 = arith.mulf %52, %54 : vector<8x32xf32>
      %56 = vector.shape_cast %34 : vector<32xf32> to vector<1x32xf32>
      %57 = vector.broadcast %56 : vector<1x32xf32> to vector<8x32xf32>
      %58 = arith.addf %55, %57 : vector<8x32xf32>
      %c0_31 = arith.constant 0 : index
      %c0_32 = arith.constant 0 : index
      %c0_33 = arith.constant 0 : index
      %59 = vector.load %arg19[%c0_31, %c0_32, %c0_33] : memref<1x8x32xf32, #tpu.memory_space<vmem>>, vector<1x8x32xf32>
      %60 = vector.shape_cast %59 : vector<1x8x32xf32> to vector<8x32xf32>
      %61 = vector.shape_cast %58 : vector<8x32xf32> to vector<1x8x32xf32>
      tpu.vector_store %arg19[%c0_31, %c0_32, %c0_33], %61 {strides = array<i32>} : memref<1x8x32xf32, #tpu.memory_space<vmem>>, vector<1x8x32xf32>,
    } else {
    }
    return
  }
  func.func @transform_0(%arg0: i32, %arg1: i32) -> (i32, i32, i32) {
    %c0_i32 = arith.constant 0 : i32
    %c0_i32_0 = arith.constant 0 : i32
    %c0_i32_1 = arith.constant 0 : i32
    return %arg0, %c0_i32, %c0_i32_0 : i32, i32, i32
  }
  func.func @transform_1(%arg0: i32, %arg1: i32) -> (i32, i32) {
    %c0_i32 = arith.constant 0 : i32
    %c0_i32_0 = arith.constant 0 : i32
    %c0_i32_1 = arith.constant 0 : i32
    return %c0_i32, %c0_i32_0 : i32, i32
  }
  func.func @transform_2(%arg0: i32, %arg1: i32) -> (i32, i32) {
    %c0_i32 = arith.constant 0 : i32
    %c0_i32_0 = arith.constant 0 : i32
    %c0_i32_1 = arith.constant 0 : i32
    return %c0_i32, %c0_i32_0 : i32, i32
  }
  func.func @transform_3(%arg0: i32, %arg1: i32) -> (i32, i32) {
    %c0_i32 = arith.constant 0 : i32
    %c0_i32_0 = arith.constant 0 : i32
    %c0_i32_1 = arith.constant 0 : i32
    return %c0_i32, %c0_i32_0 : i32, i32
  }
  func.func @transform_4(%arg0: i32, %arg1: i32) -> (i32, i32) {
    %c0_i32 = arith.constant 0 : i32
    %c0_i32_0 = arith.constant 0 : i32
    %c0_i32_1 = arith.constant 0 : i32
    return %c0_i32, %c0_i32_0 : i32, i32
  }
  func.func @transform_5(%arg0: i32, %arg1: i32) -> (i32, i32) {
    %c0_i32 = arith.constant 0 : i32
    %c0_i32_0 = arith.constant 0 : i32
    %c0_i32_1 = arith.constant 0 : i32
    return %c0_i32, %c0_i32_0 : i32, i32
  }
  func.func @transform_6(%arg0: i32, %arg1: i32) -> (i32, i32) {
    %c0_i32 = arith.constant 0 : i32
    %c0_i32_0 = arith.constant 0 : i32
    %c0_i32_1 = arith.constant 0 : i32
    return %c0_i32, %c0_i32_0 : i32, i32
  }
  func.func @transform_7(%arg0: i32, %arg1: i32) -> (i32, i32) {
    %c0_i32 = arith.constant 0 : i32
    %c0_i32_0 = arith.constant 0 : i32
    %c0_i32_1 = arith.constant 0 : i32
    return %c0_i32, %c0_i32_0 : i32, i32
  }
  func.func @transform_8(%arg0: i32, %arg1: i32) -> (i32, i32) {
    %c0_i32 = arith.constant 0 : i32
    %c0_i32_0 = arith.constant 0 : i32
    %c0_i32_1 = arith.constant 0 : i32
    return %c0_i32, %c0_i32_0 : i32, i32
  }
  func.func @transform_9(%arg0: i32, %arg1: i32) -> (i32, i32) {
    %c0_i32 = arith.constant 0 : i32
    %c0_i32_0 = arith.constant 0 : i32
    %c0_i32_1 = arith.constant 0 : i32
    return %c0_i32, %c0_i32_0 : i32, i32
  }
  func.func @transform_10(%arg0: i32, %arg1: i32) -> (i32, i32) {
    %c0_i32 = arith.constant 0 : i32
    %c0_i32_0 = arith.constant 0 : i32
    %c0_i32_1 = arith.constant 0 : i32
    return %c0_i32, %c0_i32_0 : i32, i32
  }
  func.func @transform_11(%arg0: i32, %arg1: i32) -> (i32, i32) {
    %c0_i32 = arith.constant 0 : i32
    %c0_i32_0 = arith.constant 0 : i32
    return %c0_i32, %arg1 : i32, i32
  }
  func.func @transform_12(%arg0: i32, %arg1: i32) -> (i32, i32) {
    %c0_i32 = arith.constant 0 : i32
    %c0_i32_0 = arith.constant 0 : i32
    return %c0_i32, %arg1 : i32, i32
  }
  func.func @transform_13(%arg0: i32, %arg1: i32) -> (i32, i32) {
    %c0_i32 = arith.constant 0 : i32
    %c0_i32_0 = arith.constant 0 : i32
    return %arg1, %c0_i32 : i32, i32
  }
  func.func @transform_14(%arg0: i32, %arg1: i32) -> (i32, i32) {
    %c0_i32 = arith.constant 0 : i32
    %c0_i32_0 = arith.constant 0 : i32
    %c0_i32_1 = arith.constant 0 : i32
    return %c0_i32, %c0_i32_0 : i32, i32
  }
  func.func @transform_15(%arg0: i32, %arg1: i32) -> (i32, i32) {
    %c0_i32 = arith.constant 0 : i32
    %c0_i32_0 = arith.constant 0 : i32
    %c0_i32_1 = arith.constant 0 : i32
    return %c0_i32, %c0_i32_0 : i32, i32
  }
  func.func @transform_16(%arg0: i32, %arg1: i32) -> (i32, i32) {
    %c0_i32 = arith.constant 0 : i32
    %c0_i32_0 = arith.constant 0 : i32
    %c0_i32_1 = arith.constant 0 : i32
    return %c0_i32, %c0_i32_0 : i32, i32
  }
  func.func @transform_17(%arg0: i32, %arg1: i32) -> (i32, i32, i32) {
    %c0_i32 = arith.constant 0 : i32
    %c0_i32_0 = arith.constant 0 : i32
    %c0_i32_1 = arith.constant 0 : i32
    return %arg0, %c0_i32, %c0_i32_0 : i32, i32, i32
  }
}

module attributes {stable_mosaic.version = 11 : i64} {
  func.func @bert_layer_kernel(%arg0: i32, %arg1: i32, %arg2: memref<1x8x32xf32, #tpu.memory_space<vmem>>, %arg3: memref<32x32xbf16, #tpu.memory_space<vmem>>, %arg4: memref<1x32xf32, #tpu.memory_space<vmem>>, %arg5: memref<32x32xbf16, #tpu.memory_space<vmem>>, %arg6: memref<1x32xf32, #tpu.memory_space<vmem>>, %arg7: memref<32x32xbf16, #tpu.memory_space<vmem>>, %arg8: memref<1x32xf32, #tpu.memory_space<vmem>>, %arg9: memref<32x32xbf16, #tpu.memory_space<vmem>>, %arg10: memref<1x32xf32, #tpu.memory_space<vmem>>, %arg11: memref<1x32xf32, #tpu.memory_space<vmem>>, %arg12: memref<1x32xf32, #tpu.memory_space<vmem>>, %arg13: memref<32x64xbf16, #tpu.memory_space<vmem>>, %arg14: memref<1x64xf32, #tpu.memory_space<vmem>>, %arg15: memref<64x32xbf16, #tpu.memory_space<vmem>>, %arg16: memref<1x32xf32, #tpu.memory_space<vmem>>, %arg17: memref<1x32xf32, #tpu.memory_space<vmem>>, %arg18: memref<1x32xf32, #tpu.memory_space<vmem>>, %arg19: memref<1x8x32xf32, #tpu.memory_space<vmem>>, %arg20: memref<8x32xf32, #tpu.memory_space<vmem>>, %arg21: memref<8x32xf32, #tpu.memory_space<vmem>>, %arg22: memref<8x32xf32, #tpu.memory_space<vmem>>) attributes {dimension_semantics = [#tpu.dimension_semantics<parallel>, #tpu.dimension_semantics<arbitrary>], iteration_bounds = array<i64: 2, 1>, scalar_prefetch = 0 : i64, scratch_operands = 3 : i64, tpu.core_type = #tpu.core_type<tc>, window_params = [{transform_indices = @transform_0, window_bounds = array<i64: 1, 8, 32>}, {pipeline_mode = #tpu.pipeline_mode<synchronous>, transform_indices = @transform_1, window_bounds = array<i64: 32, 32>}, {pipeline_mode = #tpu.pipeline_mode<synchronous>, transform_indices = @transform_2, window_bounds = array<i64: 1, 32>}, {pipeline_mode = #tpu.pipeline_mode<synchronous>, transform_indices = @transform_3, window_bounds = array<i64: 32, 32>}, {pipeline_mode = #tpu.pipeline_mode<synchronous>, transform_indices = @transform_4, window_bounds = array<i64: 1, 32>}, {pipeline_mode = #tpu.pipeline_mode<synchronous>, transform_indices = @transform_5, window_bounds = array<i64: 32, 32>}, {pipeline_mode = #tpu.pipeline_mode<synchronous>, transform_indices = @transform_6, window_bounds = array<i64: 1, 32>}, {pipeline_mode = #tpu.pipeline_mode<synchronous>, transform_indices = @transform_7, window_bounds = array<i64: 32, 32>}, {pipeline_mode = #tpu.pipeline_mode<synchronous>, transform_indices = @transform_8, window_bounds = array<i64: 1, 32>}, {pipeline_mode = #tpu.pipeline_mode<synchronous>, transform_indices = @transform_9, window_bounds = array<i64: 1, 32>}, {pipeline_mode = #tpu.pipeline_mode<synchronous>, transform_indices = @transform_10, window_bounds = array<i64: 1, 32>}, {transform_indices = @transform_11, window_bounds = array<i64: 32, 64>}, {transform_indices = @transform_12, window_bounds = array<i64: 1, 64>}, {transform_indices = @transform_13, window_bounds = array<i64: 64, 32>}, {pipeline_mode = #tpu.pipeline_mode<synchronous>, transform_indices = @transform_14, window_bounds = array<i64: 1, 32>}, {pipeline_mode = #tpu.pipeline_mode<synchronous>, transform_indices = @transform_15, window_bounds = array<i64: 1, 32>}, {pipeline_mode = #tpu.pipeline_mode<synchronous>, transform_indices = @transform_16, window_bounds = array<i64: 1, 32>}, {transform_indices = @transform_17, window_bounds = array<i64: 1, 8, 32>}]} {
    %c0_i32 = arith.constant 0 : i32
    %0 = arith.cmpi eq, %arg1, %c0_i32 : i32
    %1 = arith.extui %0 : i1 to i32
    %c0_i32_0 = arith.constant 0 : i32
    %2 = arith.cmpi ne, %1, %c0_i32_0 : i32
    scf.if %2 {
      %c0_16 = arith.constant 0 : index
      %c0_17 = arith.constant 0 : index
      %c0_18 = arith.constant 0 : index
      %23 = vector.load %arg2[%c0_16, %c0_17, %c0_18] : memref<1x8x32xf32, #tpu.memory_space<vmem>>, vector<1x8x32xf32>
      %24 = vector.shape_cast %23 : vector<1x8x32xf32> to vector<8x32xf32>
      %25 = arith.truncf %24 : vector<8x32xf32> to vector<8x32xbf16>
      %c0_19 = arith.constant 0 : index
      %c0_20 = arith.constant 0 : index
      %26 = vector.load %arg3[%c0_19, %c0_20] : memref<32x32xbf16, #tpu.memory_space<vmem>>, vector<32x32xbf16>
      %cst_21 = arith.constant dense<0.000000e+00> : vector<8x32xf32>
      %27 = tpu.matmul %25, %26, %cst_21 {dimension_numbers = #tpu.dot_dimension_numbers<[1], [0], [0], [1], [0, 0, 1, 1], [], []>} : vector<8x32xbf16>, vector<32x32xbf16>, vector<8x32xf32> -> vector<8x32xf32>
      %c0_22 = arith.constant 0 : index
      %c0_23 = arith.constant 0 : index
      %28 = vector.load %arg4[%c0_22, %c0_23] : memref<1x32xf32, #tpu.memory_space<vmem>>, vector<1x32xf32>
      %29 = vector.shape_cast %28 : vector<1x32xf32> to vector<32xf32>
      %30 = vector.shape_cast %29 : vector<32xf32> to vector<1x32xf32>
      %31 = vector.broadcast %30 : vector<1x32xf32> to vector<8x32xf32>
      %32 = arith.addf %27, %31 : vector<8x32xf32>
      %cst_24 = arith.constant 0.353553385 : f32
      %33 = vector.broadcast %cst_24 : f32 to vector<8x32xf32>
      %34 = arith.mulf %32, %33 : vector<8x32xf32>
      %35 = arith.truncf %34 : vector<8x32xf32> to vector<8x32xbf16>
      %c0_25 = arith.constant 0 : index
      %c0_26 = arith.constant 0 : index
      %36 = vector.load %arg5[%c0_25, %c0_26] : memref<32x32xbf16, #tpu.memory_space<vmem>>, vector<32x32xbf16>
      %cst_27 = arith.constant dense<0.000000e+00> : vector<8x32xf32>
      %37 = tpu.matmul %25, %36, %cst_27 {dimension_numbers = #tpu.dot_dimension_numbers<[1], [0], [0], [1], [0, 0, 1, 1], [], []>} : vector<8x32xbf16>, vector<32x32xbf16>, vector<8x32xf32> -> vector<8x32xf32>
      %c0_28 = arith.constant 0 : index
      %c0_29 = arith.constant 0 : index
      %38 = vector.load %arg6[%c0_28, %c0_29] : memref<1x32xf32, #tpu.memory_space<vmem>>, vector<1x32xf32>
      %39 = vector.shape_cast %38 : vector<1x32xf32> to vector<32xf32>
      %40 = vector.shape_cast %39 : vector<32xf32> to vector<1x32xf32>
      %41 = vector.broadcast %40 : vector<1x32xf32> to vector<8x32xf32>
      %42 = arith.addf %37, %41 : vector<8x32xf32>
      %43 = arith.truncf %42 : vector<8x32xf32> to vector<8x32xbf16>
      %c0_30 = arith.constant 0 : index
      %c0_31 = arith.constant 0 : index
      %44 = vector.load %arg7[%c0_30, %c0_31] : memref<32x32xbf16, #tpu.memory_space<vmem>>, vector<32x32xbf16>
      %cst_32 = arith.constant dense<0.000000e+00> : vector<8x32xf32>
      %45 = tpu.matmul %25, %44, %cst_32 {dimension_numbers = #tpu.dot_dimension_numbers<[1], [0], [0], [1], [0, 0, 1, 1], [], []>} : vector<8x32xbf16>, vector<32x32xbf16>, vector<8x32xf32> -> vector<8x32xf32>
      %c0_33 = arith.constant 0 : index
      %c0_34 = arith.constant 0 : index
      %46 = vector.load %arg8[%c0_33, %c0_34] : memref<1x32xf32, #tpu.memory_space<vmem>>, vector<1x32xf32>
      %47 = vector.shape_cast %46 : vector<1x32xf32> to vector<32xf32>
      %48 = vector.shape_cast %47 : vector<32xf32> to vector<1x32xf32>
      %49 = vector.broadcast %48 : vector<1x32xf32> to vector<8x32xf32>
      %50 = arith.addf %45, %49 : vector<8x32xf32>
      %51 = arith.truncf %50 : vector<8x32xf32> to vector<8x32xbf16>
      %52 = vector.extract_strided_slice %35 {offsets = [0, 0], sizes = [8, 8], strides = [1, 1]} : vector<8x32xbf16> to vector<8x8xbf16>
      %53 = vector.extract_strided_slice %43 {offsets = [0, 0], sizes = [8, 8], strides = [1, 1]} : vector<8x32xbf16> to vector<8x8xbf16>
      %cst_35 = arith.constant dense<0.000000e+00> : vector<8x8xf32>
      %54 = tpu.matmul %52, %53, %cst_35 {dimension_numbers = #tpu.dot_dimension_numbers<[1], [1], [0], [0], [0, 0, 1, 0], [], []>} : vector<8x8xbf16>, vector<8x8xbf16>, vector<8x8xf32> -> vector<8x8xf32>
      %cst_36 = arith.constant dense<0xFF800000> : vector<8xf32>
      %55 = vector.multi_reduction <maximumf>, %54, %cst_36 [1] : vector<8x8xf32> to vector<8xf32>
      %56 = vector.shape_cast %55 : vector<8xf32> to vector<8x1xf32>
      %57 = vector.broadcast %56 : vector<8x1xf32> to vector<8x8xf32>
      %58 = arith.subf %54, %57 : vector<8x8xf32>
      %59 = math.exp %58 : vector<8x8xf32>
      %cst_37 = arith.constant dense<0.000000e+00> : vector<8xf32>
      %60 = vector.multi_reduction <add>, %59, %cst_37 [1] : vector<8x8xf32> to vector<8xf32>
      %61 = vector.shape_cast %60 : vector<8xf32> to vector<8x1xf32>
      %62 = tpu.reciprocal %61 {approx = true} : vector<8x1xf32> -> vector<8x1xf32>
      %63 = vector.broadcast %62 : vector<8x1xf32> to vector<8x8xf32>
      %64 = arith.mulf %59, %63 : vector<8x8xf32>
      %65 = arith.truncf %64 : vector<8x8xf32> to vector<8x8xbf16>
      %66 = vector.extract_strided_slice %51 {offsets = [0, 0], sizes = [8, 8], strides = [1, 1]} : vector<8x32xbf16> to vector<8x8xbf16>
      %cst_38 = arith.constant dense<0.000000e+00> : vector<8x8xf32>
      %67 = tpu.matmul %65, %66, %cst_38 {dimension_numbers = #tpu.dot_dimension_numbers<[1], [0], [0], [1], [0, 0, 1, 1], [], []>} : vector<8x8xbf16>, vector<8x8xbf16>, vector<8x8xf32> -> vector<8x8xf32>
      %c0_39 = arith.constant 0 : index
      %c0_40 = arith.constant 0 : index
      %68 = vector.load %arg21[%c0_39, %c0_40] : memref<8x32xf32, #tpu.memory_space<vmem>>, vector<8x8xf32>
      tpu.vector_store %arg21[%c0_39, %c0_40], %67 {strides = array<i32>} : memref<8x32xf32, #tpu.memory_space<vmem>>, vector<8x8xf32>,
      %69 = vector.extract_strided_slice %35 {offsets = [0, 8], sizes = [8, 8], strides = [1, 1]} : vector<8x32xbf16> to vector<8x8xbf16>
      %70 = vector.extract_strided_slice %43 {offsets = [0, 8], sizes = [8, 8], strides = [1, 1]} : vector<8x32xbf16> to vector<8x8xbf16>
      %cst_41 = arith.constant dense<0.000000e+00> : vector<8x8xf32>
      %71 = tpu.matmul %69, %70, %cst_41 {dimension_numbers = #tpu.dot_dimension_numbers<[1], [1], [0], [0], [0, 0, 1, 0], [], []>} : vector<8x8xbf16>, vector<8x8xbf16>, vector<8x8xf32> -> vector<8x8xf32>
      %cst_42 = arith.constant dense<0xFF800000> : vector<8xf32>
      %72 = vector.multi_reduction <maximumf>, %71, %cst_42 [1] : vector<8x8xf32> to vector<8xf32>
      %73 = vector.shape_cast %72 : vector<8xf32> to vector<8x1xf32>
      %74 = vector.broadcast %73 : vector<8x1xf32> to vector<8x8xf32>
      %75 = arith.subf %71, %74 : vector<8x8xf32>
      %76 = math.exp %75 : vector<8x8xf32>
      %cst_43 = arith.constant dense<0.000000e+00> : vector<8xf32>
      %77 = vector.multi_reduction <add>, %76, %cst_43 [1] : vector<8x8xf32> to vector<8xf32>
      %78 = vector.shape_cast %77 : vector<8xf32> to vector<8x1xf32>
      %79 = tpu.reciprocal %78 {approx = true} : vector<8x1xf32> -> vector<8x1xf32>
      %80 = vector.broadcast %79 : vector<8x1xf32> to vector<8x8xf32>
      %81 = arith.mulf %76, %80 : vector<8x8xf32>
      %82 = arith.truncf %81 : vector<8x8xf32> to vector<8x8xbf16>
      %83 = vector.extract_strided_slice %51 {offsets = [0, 8], sizes = [8, 8], strides = [1, 1]} : vector<8x32xbf16> to vector<8x8xbf16>
      %cst_44 = arith.constant dense<0.000000e+00> : vector<8x8xf32>
      %84 = tpu.matmul %82, %83, %cst_44 {dimension_numbers = #tpu.dot_dimension_numbers<[1], [0], [0], [1], [0, 0, 1, 1], [], []>} : vector<8x8xbf16>, vector<8x8xbf16>, vector<8x8xf32> -> vector<8x8xf32>
      %c0_45 = arith.constant 0 : index
      %c8 = arith.constant 8 : index
      %85 = vector.load %arg21[%c0_45, %c8] : memref<8x32xf32, #tpu.memory_space<vmem>>, vector<8x8xf32>
      tpu.vector_store %arg21[%c0_45, %c8], %84 {strides = array<i32>} : memref<8x32xf32, #tpu.memory_space<vmem>>, vector<8x8xf32>,
      %86 = vector.extract_strided_slice %35 {offsets = [0, 16], sizes = [8, 8], strides = [1, 1]} : vector<8x32xbf16> to vector<8x8xbf16>
      %87 = vector.extract_strided_slice %43 {offsets = [0, 16], sizes = [8, 8], strides = [1, 1]} : vector<8x32xbf16> to vector<8x8xbf16>
      %cst_46 = arith.constant dense<0.000000e+00> : vector<8x8xf32>
      %88 = tpu.matmul %86, %87, %cst_46 {dimension_numbers = #tpu.dot_dimension_numbers<[1], [1], [0], [0], [0, 0, 1, 0], [], []>} : vector<8x8xbf16>, vector<8x8xbf16>, vector<8x8xf32> -> vector<8x8xf32>
      %cst_47 = arith.constant dense<0xFF800000> : vector<8xf32>
      %89 = vector.multi_reduction <maximumf>, %88, %cst_47 [1] : vector<8x8xf32> to vector<8xf32>
      %90 = vector.shape_cast %89 : vector<8xf32> to vector<8x1xf32>
      %91 = vector.broadcast %90 : vector<8x1xf32> to vector<8x8xf32>
      %92 = arith.subf %88, %91 : vector<8x8xf32>
      %93 = math.exp %92 : vector<8x8xf32>
      %cst_48 = arith.constant dense<0.000000e+00> : vector<8xf32>
      %94 = vector.multi_reduction <add>, %93, %cst_48 [1] : vector<8x8xf32> to vector<8xf32>
      %95 = vector.shape_cast %94 : vector<8xf32> to vector<8x1xf32>
      %96 = tpu.reciprocal %95 {approx = true} : vector<8x1xf32> -> vector<8x1xf32>
      %97 = vector.broadcast %96 : vector<8x1xf32> to vector<8x8xf32>
      %98 = arith.mulf %93, %97 : vector<8x8xf32>
      %99 = arith.truncf %98 : vector<8x8xf32> to vector<8x8xbf16>
      %100 = vector.extract_strided_slice %51 {offsets = [0, 16], sizes = [8, 8], strides = [1, 1]} : vector<8x32xbf16> to vector<8x8xbf16>
      %cst_49 = arith.constant dense<0.000000e+00> : vector<8x8xf32>
      %101 = tpu.matmul %99, %100, %cst_49 {dimension_numbers = #tpu.dot_dimension_numbers<[1], [0], [0], [1], [0, 0, 1, 1], [], []>} : vector<8x8xbf16>, vector<8x8xbf16>, vector<8x8xf32> -> vector<8x8xf32>
      %c0_50 = arith.constant 0 : index
      %c16 = arith.constant 16 : index
      %102 = vector.load %arg21[%c0_50, %c16] : memref<8x32xf32, #tpu.memory_space<vmem>>, vector<8x8xf32>
      tpu.vector_store %arg21[%c0_50, %c16], %101 {strides = array<i32>} : memref<8x32xf32, #tpu.memory_space<vmem>>, vector<8x8xf32>,
      %103 = vector.extract_strided_slice %35 {offsets = [0, 24], sizes = [8, 8], strides = [1, 1]} : vector<8x32xbf16> to vector<8x8xbf16>
      %104 = vector.extract_strided_slice %43 {offsets = [0, 24], sizes = [8, 8], strides = [1, 1]} : vector<8x32xbf16> to vector<8x8xbf16>
      %cst_51 = arith.constant dense<0.000000e+00> : vector<8x8xf32>
      %105 = tpu.matmul %103, %104, %cst_51 {dimension_numbers = #tpu.dot_dimension_numbers<[1], [1], [0], [0], [0, 0, 1, 0], [], []>} : vector<8x8xbf16>, vector<8x8xbf16>, vector<8x8xf32> -> vector<8x8xf32>
      %cst_52 = arith.constant dense<0xFF800000> : vector<8xf32>
      %106 = vector.multi_reduction <maximumf>, %105, %cst_52 [1] : vector<8x8xf32> to vector<8xf32>
      %107 = vector.shape_cast %106 : vector<8xf32> to vector<8x1xf32>
      %108 = vector.broadcast %107 : vector<8x1xf32> to vector<8x8xf32>
      %109 = arith.subf %105, %108 : vector<8x8xf32>
      %110 = math.exp %109 : vector<8x8xf32>
      %cst_53 = arith.constant dense<0.000000e+00> : vector<8xf32>
      %111 = vector.multi_reduction <add>, %110, %cst_53 [1] : vector<8x8xf32> to vector<8xf32>
      %112 = vector.shape_cast %111 : vector<8xf32> to vector<8x1xf32>
      %113 = tpu.reciprocal %112 {approx = true} : vector<8x1xf32> -> vector<8x1xf32>
      %114 = vector.broadcast %113 : vector<8x1xf32> to vector<8x8xf32>
      %115 = arith.mulf %110, %114 : vector<8x8xf32>
      %116 = arith.truncf %115 : vector<8x8xf32> to vector<8x8xbf16>
      %117 = vector.extract_strided_slice %51 {offsets = [0, 24], sizes = [8, 8], strides = [1, 1]} : vector<8x32xbf16> to vector<8x8xbf16>
      %cst_54 = arith.constant dense<0.000000e+00> : vector<8x8xf32>
      %118 = tpu.matmul %116, %117, %cst_54 {dimension_numbers = #tpu.dot_dimension_numbers<[1], [0], [0], [1], [0, 0, 1, 1], [], []>} : vector<8x8xbf16>, vector<8x8xbf16>, vector<8x8xf32> -> vector<8x8xf32>
      %c0_55 = arith.constant 0 : index
      %c24 = arith.constant 24 : index
      %119 = vector.load %arg21[%c0_55, %c24] : memref<8x32xf32, #tpu.memory_space<vmem>>, vector<8x8xf32>
      tpu.vector_store %arg21[%c0_55, %c24], %118 {strides = array<i32>} : memref<8x32xf32, #tpu.memory_space<vmem>>, vector<8x8xf32>,
      %c0_56 = arith.constant 0 : index
      %c0_57 = arith.constant 0 : index
      %120 = vector.load %arg21[%c0_56, %c0_57] : memref<8x32xf32, #tpu.memory_space<vmem>>, vector<8x32xf32>
      %121 = arith.truncf %120 : vector<8x32xf32> to vector<8x32xbf16>
      %c0_58 = arith.constant 0 : index
      %c0_59 = arith.constant 0 : index
      %122 = vector.load %arg9[%c0_58, %c0_59] : memref<32x32xbf16, #tpu.memory_space<vmem>>, vector<32x32xbf16>
      %cst_60 = arith.constant dense<0.000000e+00> : vector<8x32xf32>
      %123 = tpu.matmul %121, %122, %cst_60 {dimension_numbers = #tpu.dot_dimension_numbers<[1], [0], [0], [1], [0, 0, 1, 1], [], []>} : vector<8x32xbf16>, vector<32x32xbf16>, vector<8x32xf32> -> vector<8x32xf32>
      %c0_61 = arith.constant 0 : index
      %c0_62 = arith.constant 0 : index
      %124 = vector.load %arg10[%c0_61, %c0_62] : memref<1x32xf32, #tpu.memory_space<vmem>>, vector<1x32xf32>
      %125 = vector.shape_cast %124 : vector<1x32xf32> to vector<32xf32>
      %126 = vector.shape_cast %125 : vector<32xf32> to vector<1x32xf32>
      %127 = vector.broadcast %126 : vector<1x32xf32> to vector<8x32xf32>
      %128 = arith.addf %123, %127 : vector<8x32xf32>
      %129 = arith.addf %128, %24 : vector<8x32xf32>
      %c0_63 = arith.constant 0 : index
      %c0_64 = arith.constant 0 : index
      %130 = vector.load %arg11[%c0_63, %c0_64] : memref<1x32xf32, #tpu.memory_space<vmem>>, vector<1x32xf32>
      %131 = vector.shape_cast %130 : vector<1x32xf32> to vector<32xf32>
      %c0_65 = arith.constant 0 : index
      %c0_66 = arith.constant 0 : index
      %132 = vector.load %arg12[%c0_65, %c0_66] : memref<1x32xf32, #tpu.memory_space<vmem>>, vector<1x32xf32>
      %133 = vector.shape_cast %132 : vector<1x32xf32> to vector<32xf32>
      %cst_67 = arith.constant dense<0.000000e+00> : vector<8xf32>
      %134 = vector.multi_reduction <add>, %129, %cst_67 [1] : vector<8x32xf32> to vector<8xf32>
      %135 = vector.shape_cast %134 : vector<8xf32> to vector<8x1xf32>
      %cst_68 = arith.constant 3.200000e+01 : f32
      %136 = vector.broadcast %cst_68 : f32 to vector<8x1xf32>
      %137 = arith.divf %135, %136 : vector<8x1xf32>
      %138 = vector.broadcast %137 : vector<8x1xf32> to vector<8x32xf32>
      %139 = arith.subf %129, %138 : vector<8x32xf32>
      %140 = arith.mulf %139, %139 : vector<8x32xf32>
      %cst_69 = arith.constant dense<0.000000e+00> : vector<8xf32>
      %141 = vector.multi_reduction <add>, %140, %cst_69 [1] : vector<8x32xf32> to vector<8xf32>
      %142 = vector.shape_cast %141 : vector<8xf32> to vector<8x1xf32>
      %cst_70 = arith.constant 3.200000e+01 : f32
      %143 = vector.broadcast %cst_70 : f32 to vector<8x1xf32>
      %144 = arith.divf %142, %143 : vector<8x1xf32>
      %145 = vector.broadcast %137 : vector<8x1xf32> to vector<8x32xf32>
      %146 = arith.subf %129, %145 : vector<8x32xf32>
      %cst_71 = arith.constant 9.99999974E-6 : f32
      %147 = vector.broadcast %cst_71 : f32 to vector<8x1xf32>
      %148 = arith.addf %144, %147 : vector<8x1xf32>
      %149 = math.rsqrt %148 : vector<8x1xf32>
      %150 = vector.broadcast %149 : vector<8x1xf32> to vector<8x32xf32>
      %151 = arith.mulf %146, %150 : vector<8x32xf32>
      %152 = vector.shape_cast %131 : vector<32xf32> to vector<1x32xf32>
      %153 = vector.broadcast %152 : vector<1x32xf32> to vector<8x32xf32>
      %154 = arith.mulf %151, %153 : vector<8x32xf32>
      %155 = vector.shape_cast %133 : vector<32xf32> to vector<1x32xf32>
      %156 = vector.broadcast %155 : vector<1x32xf32> to vector<8x32xf32>
      %157 = arith.addf %154, %156 : vector<8x32xf32>
      %c0_72 = arith.constant 0 : index
      %c0_73 = arith.constant 0 : index
      %158 = vector.load %arg20[%c0_72, %c0_73] : memref<8x32xf32, #tpu.memory_space<vmem>>, vector<8x32xf32>
      tpu.vector_store %arg20[%c0_72, %c0_73], %157 {strides = array<i32>} : memref<8x32xf32, #tpu.memory_space<vmem>>, vector<8x32xf32>,
      %cst_74 = arith.constant 0.000000e+00 : f32
      %159 = vector.broadcast %cst_74 : f32 to vector<8x32xf32>
      %c0_75 = arith.constant 0 : index
      %c0_76 = arith.constant 0 : index
      %160 = vector.load %arg22[%c0_75, %c0_76] : memref<8x32xf32, #tpu.memory_space<vmem>>, vector<8x32xf32>
      tpu.vector_store %arg22[%c0_75, %c0_76], %159 {strides = array<i32>} : memref<8x32xf32, #tpu.memory_space<vmem>>, vector<8x32xf32>,
    } else {
    }
    %c0 = arith.constant 0 : index
    %c0_1 = arith.constant 0 : index
    %3 = vector.load %arg20[%c0, %c0_1] : memref<8x32xf32, #tpu.memory_space<vmem>>, vector<8x32xf32>
    %4 = arith.truncf %3 : vector<8x32xf32> to vector<8x32xbf16>
    %c0_2 = arith.constant 0 : index
    %c0_3 = arith.constant 0 : index
    %5 = vector.load %arg13[%c0_2, %c0_3] : memref<32x64xbf16, #tpu.memory_space<vmem>>, vector<32x64xbf16>
    %cst = arith.constant dense<0.000000e+00> : vector<8x64xf32>
    %6 = tpu.matmul %4, %5, %cst {dimension_numbers = #tpu.dot_dimension_numbers<[1], [0], [0], [1], [0, 0, 1, 1], [], []>} : vector<8x32xbf16>, vector<32x64xbf16>, vector<8x64xf32> -> vector<8x64xf32>
    %c0_4 = arith.constant 0 : index
    %c0_5 = arith.constant 0 : index
    %7 = vector.load %arg14[%c0_4, %c0_5] : memref<1x64xf32, #tpu.memory_space<vmem>>, vector<1x64xf32>
    %8 = vector.shape_cast %7 : vector<1x64xf32> to vector<64xf32>
    %9 = vector.shape_cast %8 : vector<64xf32> to vector<1x64xf32>
    %10 = vector.broadcast %9 : vector<1x64xf32> to vector<8x64xf32>
    %11 = arith.addf %6, %10 : vector<8x64xf32>
    %cst_6 = arith.constant 0.000000e+00 : f32
    %12 = vector.broadcast %cst_6 : f32 to vector<8x64xf32>
    %13 = arith.maximumf %11, %12 : vector<8x64xf32>
    %14 = arith.truncf %13 : vector<8x64xf32> to vector<8x64xbf16>
    %c0_7 = arith.constant 0 : index
    %c0_8 = arith.constant 0 : index
    %15 = vector.load %arg22[%c0_7, %c0_8] : memref<8x32xf32, #tpu.memory_space<vmem>>, vector<8x32xf32>
    %c0_9 = arith.constant 0 : index
    %c0_10 = arith.constant 0 : index
    %16 = vector.load %arg15[%c0_9, %c0_10] : memref<64x32xbf16, #tpu.memory_space<vmem>>, vector<64x32xbf16>
    %cst_11 = arith.constant dense<0.000000e+00> : vector<8x32xf32>
    %17 = tpu.matmul %14, %16, %cst_11 {dimension_numbers = #tpu.dot_dimension_numbers<[1], [0], [0], [1], [0, 0, 1, 1], [], []>} : vector<8x64xbf16>, vector<64x32xbf16>, vector<8x32xf32> -> vector<8x32xf32>
    %18 = arith.addf %15, %17 : vector<8x32xf32>
    %c0_12 = arith.constant 0 : index
    %c0_13 = arith.constant 0 : index
    %19 = vector.load %arg22[%c0_12, %c0_13] : memref<8x32xf32, #tpu.memory_space<vmem>>, vector<8x32xf32>
    tpu.vector_store %arg22[%c0_12, %c0_13], %18 {strides = array<i32>} : memref<8x32xf32, #tpu.memory_space<vmem>>, vector<8x32xf32>,
    %c0_i32_14 = arith.constant 0 : i32
    %20 = arith.cmpi eq, %arg1, %c0_i32_14 : i32
    %21 = arith.extui %20 : i1 to i32
    %c0_i32_15 = arith.constant 0 : i32
    %22 = arith.cmpi ne, %21, %c0_i32_15 : i32
    scf.if %22 {
      %c0_16 = arith.constant 0 : index
      %c0_17 = arith.constant 0 : index
      %23 = vector.load %arg22[%c0_16, %c0_17] : memref<8x32xf32, #tpu.memory_space<vmem>>, vector<8x32xf32>
      %c0_18 = arith.constant 0 : index
      %c0_19 = arith.constant 0 : index
      %24 = vector.load %arg16[%c0_18, %c0_19] : memref<1x32xf32, #tpu.memory_space<vmem>>, vector<1x32xf32>
      %25 = vector.shape_cast %24 : vector<1x32xf32> to vector<32xf32>
      %26 = vector.shape_cast %25 : vector<32xf32> to vector<1x32xf32>
      %27 = vector.broadcast %26 : vector<1x32xf32> to vector<8x32xf32>
      %28 = arith.addf %23, %27 : vector<8x32xf32>
      %c0_20 = arith.constant 0 : index
      %c0_21 = arith.constant 0 : index
      %29 = vector.load %arg20[%c0_20, %c0_21] : memref<8x32xf32, #tpu.memory_space<vmem>>, vector<8x32xf32>
      %30 = arith.addf %28, %29 : vector<8x32xf32>
      %c0_22 = arith.constant 0 : index
      %c0_23 = arith.constant 0 : index
      %31 = vector.load %arg17[%c0_22, %c0_23] : memref<1x32xf32, #tpu.memory_space<vmem>>, vector<1x32xf32>
      %32 = vector.shape_cast %31 : vector<1x32xf32> to vector<32xf32>
      %c0_24 = arith.constant 0 : index
      %c0_25 = arith.constant 0 : index
      %33 = vector.load %arg18[%c0_24, %c0_25] : memref<1x32xf32, #tpu.memory_space<vmem>>, vector<1x32xf32>
      %34 = vector.shape_cast %33 : vector<1x32xf32> to vector<32xf32>
      %cst_26 = arith.constant dense<0.000000e+00> : vector<8xf32>
      %35 = vector.multi_reduction <add>, %30, %cst_26 [1] : vector<8x32xf32> to vector<8xf32>
      %36 = vector.shape_cast %35 : vector<8xf32> to vector<8x1xf32>
      %cst_27 = arith.constant 3.200000e+01 : f32
      %37 = vector.broadcast %cst_27 : f32 to vector<8x1xf32>
      %38 = arith.divf %36, %37 : vector<8x1xf32>
      %39 = vector.broadcast %38 : vector<8x1xf32> to vector<8x32xf32>
      %40 = arith.subf %30, %39 : vector<8x32xf32>
      %41 = arith.mulf %40, %40 : vector<8x32xf32>
      %cst_28 = arith.constant dense<0.000000e+00> : vector<8xf32>
      %42 = vector.multi_reduction <add>, %41, %cst_28 [1] : vector<8x32xf32> to vector<8xf32>
      %43 = vector.shape_cast %42 : vector<8xf32> to vector<8x1xf32>
      %cst_29 = arith.constant 3.200000e+01 : f32
      %44 = vector.broadcast %cst_29 : f32 to vector<8x1xf32>
      %45 = arith.divf %43, %44 : vector<8x1xf32>
      %46 = vector.broadcast %38 : vector<8x1xf32> to vector<8x32xf32>
      %47 = arith.subf %30, %46 : vector<8x32xf32>
      %cst_30 = arith.constant 9.99999974E-6 : f32
      %48 = vector.broadcast %cst_30 : f32 to vector<8x1xf32>
      %49 = arith.addf %45, %48 : vector<8x1xf32>
      %50 = math.rsqrt %49 : vector<8x1xf32>
      %51 = vector.broadcast %50 : vector<8x1xf32> to vector<8x32xf32>
      %52 = arith.mulf %47, %51 : vector<8x32xf32>
      %53 = vector.shape_cast %32 : vector<32xf32> to vector<1x32xf32>
      %54 = vector.broadcast %53 : vector<1x32xf32> to vector<8x32xf32>
      %55 = arith.mulf %52, %54 : vector<8x32xf32>
      %56 = vector.shape_cast %34 : vector<32xf32> to vector<1x32xf32>
      %57 = vector.broadcast %56 : vector<1x32xf32> to vector<8x32xf32>
      %58 = arith.addf %55, %57 : vector<8x32xf32>
      %c0_31 = arith.constant 0 : index
      %c0_32 = arith.constant 0 : index
      %c0_33 = arith.constant 0 : index
      %59 = vector.load %arg19[%c0_31, %c0_32, %c0_33] : memref<1x8x32xf32, #tpu.memory_space<vmem>>, vector<1x8x32xf32>
      %60 = vector.shape_cast %59 : vector<1x8x32xf32> to vector<8x32xf32>
      %61 = vector.shape_cast %58 : vector<8x32xf32> to vector<1x8x32xf32>
      tpu.vector_store %arg19[%c0_31, %c0_32, %c0_33], %61 {strides = array<i32>} : memref<1x8x32xf32, #tpu.memory_space<vmem>>, vector<1x8x32xf32>,
    } else {
    }
    return
  }
  func.func @transform_0(%arg0: i32, %arg1: i32) -> (i32, i32, i32) {
    %c0_i32 = arith.constant 0 : i32
    %c0_i32_0 = arith.constant 0 : i32
    %c0_i32_1 = arith.constant 0 : i32
    return %arg0, %c0_i32, %c0_i32_0 : i32, i32, i32
  }
  func.func @transform_1(%arg0: i32, %arg1: i32) -> (i32, i32) {
    %c0_i32 = arith.constant 0 : i32
    %c0_i32_0 = arith.constant 0 : i32
    %c0_i32_1 = arith.constant 0 : i32
    return %c0_i32, %c0_i32_0 : i32, i32
  }
  func.func @transform_2(%arg0: i32, %arg1: i32) -> (i32, i32) {
    %c0_i32 = arith.constant 0 : i32
    %c0_i32_0 = arith.constant 0 : i32
    %c0_i32_1 = arith.constant 0 : i32
    return %c0_i32, %c0_i32_0 : i32, i32
  }
  func.func @transform_3(%arg0: i32, %arg1: i32) -> (i32, i32) {
    %c0_i32 = arith.constant 0 : i32
    %c0_i32_0 = arith.constant 0 : i32
    %c0_i32_1 = arith.constant 0 : i32
    return %c0_i32, %c0_i32_0 : i32, i32
  }
  func.func @transform_4(%arg0: i32, %arg1: i32) -> (i32, i32) {
    %c0_i32 = arith.constant 0 : i32
    %c0_i32_0 = arith.constant 0 : i32
    %c0_i32_1 = arith.constant 0 : i32
    return %c0_i32, %c0_i32_0 : i32, i32
  }
  func.func @transform_5(%arg0: i32, %arg1: i32) -> (i32, i32) {
    %c0_i32 = arith.constant 0 : i32
    %c0_i32_0 = arith.constant 0 : i32
    %c0_i32_1 = arith.constant 0 : i32
    return %c0_i32, %c0_i32_0 : i32, i32
  }
  func.func @transform_6(%arg0: i32, %arg1: i32) -> (i32, i32) {
    %c0_i32 = arith.constant 0 : i32
    %c0_i32_0 = arith.constant 0 : i32
    %c0_i32_1 = arith.constant 0 : i32
    return %c0_i32, %c0_i32_0 : i32, i32
  }
  func.func @transform_7(%arg0: i32, %arg1: i32) -> (i32, i32) {
    %c0_i32 = arith.constant 0 : i32
    %c0_i32_0 = arith.constant 0 : i32
    %c0_i32_1 = arith.constant 0 : i32
    return %c0_i32, %c0_i32_0 : i32, i32
  }
  func.func @transform_8(%arg0: i32, %arg1: i32) -> (i32, i32) {
    %c0_i32 = arith.constant 0 : i32
    %c0_i32_0 = arith.constant 0 : i32
    %c0_i32_1 = arith.constant 0 : i32
    return %c0_i32, %c0_i32_0 : i32, i32
  }
  func.func @transform_9(%arg0: i32, %arg1: i32) -> (i32, i32) {
    %c0_i32 = arith.constant 0 : i32
    %c0_i32_0 = arith.constant 0 : i32
    %c0_i32_1 = arith.constant 0 : i32
    return %c0_i32, %c0_i32_0 : i32, i32
  }
  func.func @transform_10(%arg0: i32, %arg1: i32) -> (i32, i32) {
    %c0_i32 = arith.constant 0 : i32
    %c0_i32_0 = arith.constant 0 : i32
    %c0_i32_1 = arith.constant 0 : i32
    return %c0_i32, %c0_i32_0 : i32, i32
  }
  func.func @transform_11(%arg0: i32, %arg1: i32) -> (i32, i32) {
    %c0_i32 = arith.constant 0 : i32
    %c0_i32_0 = arith.constant 0 : i32
    return %c0_i32, %arg1 : i32, i32
  }
  func.func @transform_12(%arg0: i32, %arg1: i32) -> (i32, i32) {
    %c0_i32 = arith.constant 0 : i32
    %c0_i32_0 = arith.constant 0 : i32
    return %c0_i32, %arg1 : i32, i32
  }
  func.func @transform_13(%arg0: i32, %arg1: i32) -> (i32, i32) {
    %c0_i32 = arith.constant 0 : i32
    %c0_i32_0 = arith.constant 0 : i32
    return %arg1, %c0_i32 : i32, i32
  }
  func.func @transform_14(%arg0: i32, %arg1: i32) -> (i32, i32) {
    %c0_i32 = arith.constant 0 : i32
    %c0_i32_0 = arith.constant 0 : i32
    %c0_i32_1 = arith.constant 0 : i32
    return %c0_i32, %c0_i32_0 : i32, i32
  }
  func.func @transform_15(%arg0: i32, %arg1: i32) -> (i32, i32) {
    %c0_i32 = arith.constant 0 : i32
    %c0_i32_0 = arith.constant 0 : i32
    %c0_i32_1 = arith.constant 0 : i32
    return %c0_i32, %c0_i32_0 : i32, i32
  }
  func.func @transform_16(%arg0: i32, %arg1: i32) -> (i32, i32) {
    %c0_i32 = arith.constant 0 : i32
    %c0_i32_0 = arith.constant 0 : i32
    %c0_i32_1 = arith.constant 0 : i32
    return %c0_i32, %c0_i32_0 : i32, i32
  }
  func.func @transform_17(%arg0: i32, %arg1: i32) -> (i32, i32, i32) {
    %c0_i32 = arith.constant 0 : i32
    %c0_i32_0 = arith.constant 0 : i32
    %c0_i32_1 = arith.constant 0 : i32
    return %arg0, %c0_i32, %c0_i32_0 : i32, i32, i32
  }
}

</mosaic_0001>

<llo_original>
// kernel: bert_encoder_forward.5
$region0: #{bert_encoder_forward.5}
  #allocation0 [shape = 'u32[]', space=smem, size = 0x4, offset = 0x4, fixed_abs, tag = 'smem constant byte address 0x4 - core index']
  #allocation1 [shape = 'u32[72,128]{1,0:T(1,128)}', space=vmem, size = 0x9000, scoped, tag = 'internal scratch']
  %s0 = inlined_call_operand.vmem [shape: f32[2,8,32], index: 0, kind: input, shape index: {}]
  %s1 = inlined_call_operand.hbm [shape: bf16[32,128], index: 1, kind: input, shape index: {}]
  %s2 = inlined_call_operand.vmem [shape: f32[1,128], index: 2, kind: input, shape index: {}]
  %s3 = inlined_call_operand.hbm [shape: f32[2,8,128], index: 3, kind: output, shape index: {}]
  %s4 = sld [smem:[#allocation0]]
  $region49: #{bert_encoder_forward.5} parent=0
    _
  %s6 = ssub.s32 1, %s4
  %s7 = scalar_select 0, %s6, %s4
  $region1: #{bert_encoder_forward.5} parent=0
    #allocation2 [shape = 'u8[8192]{0}', space=vmem, size = 0x2000, scoped, tag = 'input window, operand 1, single buffered']
    #allocation3 [shape = 's32[2]{0}', space=sflag, size = 0x8, scoped, tag = 'scoped memory for bert_encoder_forward.5']
    #allocation4 [shape = 's32[2]{0}', space=sflag, size = 0x8, scoped, tag = 'scoped memory for bert_encoder_forward.5']
    #allocation5 [shape = 'u8[8192]{0}', space=vmem, size = 0x2000, scoped, tag = 'output window, operand 0']
    %8 = vsyncpa [#allocation3], 0
    %9 = vsyncpa [#allocation4], 0
    %s10 = scalar_lea.sflag [#allocation4], 1
    %11 = vsyncpa %s10, 0
    loop: start=0, step=1, limit=4
    $region2: #{bert_encoder_forward.5} parent=1 // loop_pre_header
      _
    $region3: #{bert_encoder_forward.5} parent=1 // loop_header
      %s13 = sphi 0, %s17
      %p14 = scmp.ge.s32.totalorder %s13, 4
      %s23 = sphi 0, %s25
      %s26 = sphi 0, %s23
      %s27 = sphi 0, %s26
      %s43 = sphi 0, %s27
      %s47 = sphi 0, %s47
      %s49 = sphi 0, %s47
      %s50 = sphi 0, %s49
      %s64 = sphi 0, %s50
      %s68 = sphi 0, %s68
      %s70 = sphi 0, %s68
      %s71 = sphi 0, %s70
      %s85 = sphi 0, %s71
      %s91 = sphi 0, %s93
      %s94 = sphi 0, %s91
      %s95 = sphi 0, %s94
      %s111 = sphi 0, %s95
    $region4: #{bert_encoder_forward.5} parent=1 // loop_header_branch
      %16 = sbr.rel (%p14) target = $region8
    $region5: #{bert_encoder_forward.5} parent=1 // loop_body
      %s18 = ssub.s32 %s13, 1
      %s19 = ssub.s32 %s13, 2
      %s20 = sadd.s32 %s13, 1
      %s21 = ssub.s32 %s13, %s20
      %p22 = scmp.eq.s32.totalorder %s21, 0
      %s24 = sadd.s32 %s23, 1
      %s25 = scalar_select %p22, %s23, %s24
      %p28 = pneg %p22
      %p29 = scmp.eq.s32.totalorder %s13, 1
      %p30 = por %p28, %p29
      %p31 = scmp.ne.s32.totalorder %s23, %s26
      %p32 = scmp.eq.s32.totalorder %s13, 0
      %p33 = por %p31, %p32
      %p34 = scmp.ne.s32.totalorder %s23, %s26
      %p35 = scmp.eq.s32.totalorder %s18, 1
      %p36 = por %p34, %p35
      %p37 = scmp.ne.s32.totalorder %s26, %s27
      %p38 = scmp.eq.s32.totalorder %s18, 0
      %p39 = por %p37, %p38
      %p40 = scmp.ne.s32.totalorder %s26, %s27
      %p41 = scmp.eq.s32.totalorder %s19, 1
      %p42 = por %p40, %p41
      %p44 = scmp.ne.s32.totalorder %s27, %s43
      %p45 = scmp.eq.s32.totalorder %s19, 0
      %p46 = por %p44, %p45
      %s48 = sadd.s32 %s47, 1
      %p51 = scmp.eq.s32.totalorder %s13, 1
      %p52 = scmp.ne.s32.totalorder %s47, %s49
      %p53 = scmp.eq.s32.totalorder %s13, 0
      %p54 = por %p52, %p53
      %p55 = scmp.ne.s32.totalorder %s47, %s49
      %p56 = scmp.eq.s32.totalorder %s18, 1
      %p57 = por %p55, %p56
      %p58 = scmp.ne.s32.totalorder %s49, %s50
      %p59 = scmp.eq.s32.totalorder %s18, 0
      %p60 = por %p58, %p59
      %p61 = scmp.ne.s32.totalorder %s49, %s50
      %p62 = scmp.eq.s32.totalorder %s19, 1
      %p63 = por %p61, %p62
      %p65 = scmp.ne.s32.totalorder %s50, %s64
      %p66 = scmp.eq.s32.totalorder %s19, 0
      %p67 = por %p65, %p66
      %s69 = sadd.s32 %s68, 1
      %p72 = scmp.eq.s32.totalorder %s13, 1
      %p73 = scmp.ne.s32.totalorder %s68, %s70
      %p74 = scmp.eq.s32.totalorder %s13, 0
      %p75 = por %p73, %p74
      %p76 = scmp.ne.s32.totalorder %s68, %s70
      %p77 = scmp.eq.s32.totalorder %s18, 1
      %p78 = por %p76, %p77
      %p79 = scmp.ne.s32.totalorder %s70, %s71
      %p80 = scmp.eq.s32.totalorder %s18, 0
      %p81 = por %p79, %p80
      %p82 = scmp.ne.s32.totalorder %s70, %s71
      %p83 = scmp.eq.s32.totalorder %s19, 1
      %p84 = por %p82, %p83
      %p86 = scmp.ne.s32.totalorder %s71, %s85
      %p87 = scmp.eq.s32.totalorder %s19, 0
      %p88 = por %p86, %p87
      %s89 = ssub.s32 %s13, %s20
      %p90 = scmp.eq.s32.totalorder %s89, 0
      %s92 = sadd.s32 %s91, 1
      %s93 = scalar_select %p90, %s91, %s92
      %p96 = pneg %p90
      %p97 = scmp.eq.s32.totalorder %s13, 1
      %p98 = por %p96, %p97
      %p99 = scmp.ne.s32.totalorder %s91, %s94
      %p100 = scmp.eq.s32.totalorder %s13, 0
      %p101 = por %p99, %p100
      %p102 = scmp.ne.s32.totalorder %s91, %s94
      %p103 = scmp.eq.s32.totalorder %s18, 1
      %p104 = por %p102, %p103
      %p105 = scmp.ne.s32.totalorder %s94, %s95
      %p106 = scmp.eq.s32.totalorder %s18, 0
      %p107 = por %p105, %p106
      %p108 = scmp.ne.s32.totalorder %s94, %s95
      %p109 = scmp.eq.s32.totalorder %s19, 1
      %p110 = por %p108, %p109
      %p112 = scmp.ne.s32.totalorder %s95, %s111
      %p113 = scmp.eq.s32.totalorder %s19, 0
      %p114 = por %p112, %p113
      %p115 = scmp.le.s32.totalorder 1, %s13
      %p116 = scmp.lt.s32.totalorder %s13, 3
      %p117 = pnand %p115, %p116
      %p118 = pneg %p117
      // Predicated region
      $region9: #{bert_encoder_forward.5} parent=5 // pred_check
        _
      $region10: #{bert_encoder_forward.5} parent=5 // pred_check_branch
        %120 = sbr.rel (%p117) target = $region12
      $region11: #{bert_encoder_forward.5} parent=5 // pred_region
        %s121 = ssub.s32 %s13, 1
        // Predicated region
        $region13: #{bert_encoder_forward.5} parent=11 // pred_check
          %p122 = pneg %p60
        $region14: #{bert_encoder_forward.5} parent=11 // pred_check_branch
          %124 = sbr.rel (%p122) target = $region16
        $region15: #{bert_encoder_forward.5} parent=11 // pred_region
          %126 = vsyncadd [#allocation3], 0
          %s127 = sshll.u32 %s1, 4
          %s128 = int_to_ptr.hbm [resolvable:$true] %s127
          %s129 = sshll.u32 [#allocation2], 4
          %s130 = int_to_ptr.vmem [resolvable:$true] %s129
          %135 = dma.hbm_to_vmem [thread:$0]  %s128, 256, %s130, [#allocation3], 64, 64, 4
        $region16: #{bert_encoder_forward.5} parent=11 // pred_fallthru
          _
        // Predicated region
        $region17: #{bert_encoder_forward.5} parent=11 // pred_check
          %p136 = pneg %p81
        $region18: #{bert_encoder_forward.5} parent=11 // pred_check_branch
          %138 = sbr.rel (%p136) target = $region20
        $region19: #{bert_encoder_forward.5} parent=11 // pred_region
          _
        $region20: #{bert_encoder_forward.5} parent=11 // pred_fallthru
          _
      $region12: #{bert_encoder_forward.5} parent=5 // pred_fallthru
        _
      %p139 = scmp.lt.s32.totalorder %s13, 2
      // Predicated region
      $region21: #{bert_encoder_forward.5} parent=5 // pred_check
        %p140 = pneg %p139
      $region22: #{bert_encoder_forward.5} parent=5 // pred_check_branch
        %142 = sbr.rel (%p140) target = $region24
      $region23: #{bert_encoder_forward.5} parent=5 // pred_region
        // Predicated region
        $region25: #{bert_encoder_forward.5} parent=23 // pred_check
          %p143 = pneg %p33
        $region26: #{bert_encoder_forward.5} parent=23 // pred_check_branch
          %145 = sbr.rel (%p143) target = $region28
        $region27: #{bert_encoder_forward.5} parent=23 // pred_region
          %p146 = scmp.lt.s32.totalorder %s13, 1
          %s147 = scalar_select %p146, %s13, 1
          %s148 = smul.addr %s147, 8
          %s149 = scalar_lea.vmem %s0, %s148
        $region28: #{bert_encoder_forward.5} parent=23 // pred_fallthru
          _
      $region24: #{bert_encoder_forward.5} parent=5 // pred_fallthru
        _
      %p150 = scmp.le.s32.totalorder 1, %s13
      %p151 = scmp.lt.s32.totalorder %s13, 3
      %p152 = pnand %p150, %p151
      %p153 = pneg %p152
      // Predicated region
      $region29: #{bert_encoder_forward.5} parent=5 // pred_check
        _
      $region30: #{bert_encoder_forward.5} parent=5 // pred_check_branch
        %155 = sbr.rel (%p152) target = $region32
      $region31: #{bert_encoder_forward.5} parent=5 // pred_region
        %s156 = ssub.s32 %s13, 1
        // Predicated region
        $region33: #{bert_encoder_forward.5} parent=31 // pred_check
          %p157 = pneg %p60
        $region34: #{bert_encoder_forward.5} parent=31 // pred_check_branch
          %159 = sbr.rel (%p157) target = $region36
        $region35: #{bert_encoder_forward.5} parent=31 // pred_region
          %161 = dma.done [#allocation3], 256
        $region36: #{bert_encoder_forward.5} parent=31 // pred_fallthru
          _
        %p162 = scmp.lt.s32.totalorder %s18, 1
        %s163 = scalar_select %p162, %s18, 1
        %s164 = smul.addr %s163, 8
        %s165 = scalar_lea.vmem %s0, %s164
        %p166 = pneg %p39
        %p167 = pneg %p36
        %p168 = pneg %p60
        %p169 = pneg %p57
        %p170 = pneg %p81
        %p171 = pneg %p78
        %p172 = pneg %p107
        %p173 = pneg %p104
        %s174 = sand.u32 %s94, 1
        %s175 = scalar_lea.sflag [#allocation4], %s174
        %s176 = sand.u32 %s94, 1
        %s177 = smul.addr %s176, 8
        %s178 = scalar_lea.vmem [#allocation5], %s177
        %p179 = scmp.lt.s32.totalorder %s18, 1
        %s180 = scalar_select %p179, %s18, 1
        %s181 = smul.addr %s180, 8
        %s182 = scalar_lea.vmem %s0, %s181
        %v184 = vld [vmem:[%s182] sm:$0xff]
        %v185 = vpack.c.bf16 %v184, %v184
        %v186 = vld [vmem:[#allocation2] sm:$0xf]
        %v187 = vld [vmem:[#allocation2 + $0x4] sm:$0xf]
        %v188 = vld [vmem:[#allocation2 + $0x8] sm:$0xf]
        %v189 = vld [vmem:[#allocation2 + $0xc] sm:$0xf]
        %v190 = vld [vmem:[%s2] sm:$0x1]
        %v192 = vperm.slane %v190, 0
        %v198 = vunpack.c.l.b16 %v186
        %v199 = vunpack.c.l.b16 %v187
        %v200 = vunpack.c.l.b16 %v188
        %v201 = vunpack.c.l.b16 %v189
        %v202 = vpack.c.b16 %v199, %v198
        %v203 = vpack.c.b16 %v201, %v200
        %vm206 = vcmask 261120
        %v208 = vsel %vm206, %v185, 0
        %210 = vmatpush.bf16.msra.mxu0 0
        %211 = vmatpush.bf16.msra.mxu0 0
        %212 = vmatpush.bf16.msra.mxu0 0
        %213 = vmatpush.bf16.msra.mxu0 0
        %214 = vmatpush.bf16.msra.mxu0 0
        %215 = vmatpush.bf16.msra.mxu0 0
        %216 = vmatpush.bf16.msra.mxu0 %v203
        %217 = vmatpush.bf16.msra.mxu0 %v202
        %218 = vmatmul.bf16.gmra.mxu0 %v208
        %v219 = vpop.f32.mrf.mxu0
        %v220 = vadd.f32 %v192, %v219
        %v221 = vpop.f32.mrf.mxu0
        %222 = vdwg.mxu0
        %223 = vst [vmem:[%s178] sm:$0xff] %v220
        %s224 = sand.u32 %s94, 1
        %s225 = scalar_lea.sflag [#allocation4], %s224
        %s226 = sand.u32 %s94, 1
        %s227 = smul.addr %s226, 8
        %s228 = scalar_lea.vmem [#allocation5], %s227
        // Predicated region
        $region37: #{bert_encoder_forward.5} parent=31 // pred_check
          %p229 = pneg %p104
        $region38: #{bert_encoder_forward.5} parent=31 // pred_check_branch
          %231 = sbr.rel (%p229) target = $region40
        $region39: #{bert_encoder_forward.5} parent=31 // pred_region
          %233 = vsyncadd %s225, 0
          %s234 = smul.addr %s18, 8
          %s235 = scalar_lea.hbm %s3, %s234
          %s237 = sshll.u32 %s228, 4
          %s238 = int_to_ptr.vmem [resolvable:$true] %s237
          %s239 = sshll.u32 %s235, 4
          %s240 = int_to_ptr.hbm [resolvable:$true] %s239
          %242 = dma.vmem_to_hbm [thread:$0]  %s238, 128, %s240, %s225
        $region40: #{bert_encoder_forward.5} parent=31 // pred_fallthru
          _
      $region32: #{bert_encoder_forward.5} parent=5 // pred_fallthru
        _
      %p243 = scmp.le.s32.totalorder 2, %s13
      // Predicated region
      $region41: #{bert_encoder_forward.5} parent=5 // pred_check
        %p244 = pneg %p243
      $region42: #{bert_encoder_forward.5} parent=5 // pred_check_branch
        %246 = sbr.rel (%p244) target = $region44
      $region43: #{bert_encoder_forward.5} parent=5 // pred_region
        %s247 = ssub.s32 %s13, 2
        // Predicated region
        $region45: #{bert_encoder_forward.5} parent=43 // pred_check
          %p248 = pneg %p110
        $region46: #{bert_encoder_forward.5} parent=43 // pred_check_branch
          %250 = sbr.rel (%p248) target = $region48
        $region47: #{bert_encoder_forward.5} parent=43 // pred_region
          %s251 = sand.u32 %s95, 1
          %s252 = scalar_lea.sflag [#allocation4], %s251
          %s253 = sand.u32 %s95, 1
          %s254 = smul.addr %s253, 8
          %s255 = scalar_lea.vmem [#allocation5], %s254
          %257 = dma.done %s252, 128
        $region48: #{bert_encoder_forward.5} parent=43 // pred_fallthru
          _
      $region44: #{bert_encoder_forward.5} parent=5 // pred_fallthru
        _
    $region6: #{bert_encoder_forward.5} parent=1 // loop_footer
      %s17 = sadd.s32 1, %s13
    $region7: #{bert_encoder_forward.5} parent=1 // loop_footer_branch
      %12 = sbr.rel target = $region3
    $region8: #{bert_encoder_forward.5} parent=1 // loop_exit
      _
    %258 = vsyncpa [#allocation3], 1
    %s259 = scalar_lea.sflag [#allocation3], 1
    %260 = vsyncpa %s259, 1
    %261 = vsyncpa [#allocation4], 1
    %s262 = scalar_lea.sflag [#allocation4], 1
    %263 = vsyncpa %s262, 1

// kernel: bert_encoder_forward.4
$region0: #{bert_encoder_forward.4}
  #allocation0 [shape = 'u32[]', space=smem, size = 0x4, offset = 0x4, fixed_abs, tag = 'smem constant byte address 0x4 - core index']
  #allocation1 [shape = 'u32[72,128]{1,0:T(1,128)}', space=vmem, size = 0x9000, scoped, tag = 'internal scratch']
  #allocation2 [shape = 'f32[8,32]{1,0:T(8,128)}', space=vmem, size = 0x1000, scoped, tag = 'scratch operand']
  #allocation3 [shape = 'f32[8,32]{1,0:T(8,128)}', space=vmem, size = 0x1000, scoped, tag = 'scratch operand']
  #allocation4 [shape = 'f32[8,32]{1,0:T(8,128)}', space=vmem, size = 0x1000, scoped, tag = 'scratch operand']
  %s0 = inlined_call_operand.vmem [shape: f32[2,8,32], index: 0, kind: input, shape index: {}, may-alias: {0,17}]
  %s1 = inlined_call_operand.vmem [shape: bf16[32,32], index: 1, kind: input, shape index: {}]
  %s2 = inlined_call_operand.vmem [shape: f32[1,32], index: 2, kind: input, shape index: {}]
  %s3 = inlined_call_operand.vmem [shape: bf16[32,32], index: 3, kind: input, shape index: {}]
  %s4 = inlined_call_operand.hbm [shape: f32[1,32], index: 4, kind: input, shape index: {}]
  %s5 = inlined_call_operand.vmem [shape: bf16[32,32], index: 5, kind: input, shape index: {}]
  %s6 = inlined_call_operand.vmem [shape: f32[1,32], index: 6, kind: input, shape index: {}]
  %s7 = inlined_call_operand.vmem [shape: bf16[32,32], index: 7, kind: input, shape index: {}]
  %s8 = inlined_call_operand.hbm [shape: f32[1,32], index: 8, kind: input, shape index: {}]
  %s9 = inlined_call_operand.vmem [shape: f32[1,32], index: 9, kind: input, shape index: {}]
  %s10 = inlined_call_operand.vmem [shape: f32[1,32], index: 10, kind: input, shape index: {}]
  %s11 = inlined_call_operand.hbm [shape: bf16[32,64], index: 11, kind: input, shape index: {}]
  %s12 = inlined_call_operand.hbm [shape: f32[1,64], index: 12, kind: input, shape index: {}]
  %s13 = inlined_call_operand.vmem [shape: bf16[64,32], index: 13, kind: input, shape index: {}]
  %s14 = inlined_call_operand.hbm [shape: f32[1,32], index: 14, kind: input, shape index: {}]
  %s15 = inlined_call_operand.vmem [shape: f32[1,32], index: 15, kind: input, shape index: {}]
  %s16 = inlined_call_operand.vmem [shape: f32[1,32], index: 16, kind: input, shape index: {}]
  %s17 = inlined_call_operand.vmem [shape: f32[2,8,32], index: 17, kind: output, shape index: {}, may-alias: {0,17}]
  %s18 = sld [smem:[#allocation0]]
  $region129: #{bert_encoder_forward.4} parent=0
    _
  %s20 = ssub.s32 1, %s18
  %s21 = scalar_select 0, %s20, %s18
  $region1: #{bert_encoder_forward.4} parent=0
    #allocation5 [shape = 'u8[512]{0}', space=vmem, size = 0x400, scoped, tag = 'input window, operand 4, single buffered']
    #allocation6 [shape = 's32[2]{0}', space=sflag, size = 0x8, scoped, tag = 'scoped memory for bert_encoder_forward.4']
    #allocation7 [shape = 'u8[512]{0}', space=vmem, size = 0x400, scoped, tag = 'input window, operand 8, single buffered']
    #allocation8 [shape = 's32[1]{0}', space=sflag, size = 0x4, scoped, tag = 'scoped memory for bert_encoder_forward.4']
    #allocation9 [shape = 'u8[8192]{0}', space=vmem, size = 0x2000, scoped, tag = 'input window, operand 11, single buffered']
    #allocation10 [shape = 'u8[512]{0}', space=vmem, size = 0x400, scoped, tag = 'input window, operand 12, single buffered']
    #allocation11 [shape = 's32[1]{0}', space=sflag, size = 0x4, scoped, tag = 'scoped memory for bert_encoder_forward.4']
    #allocation12 [shape = 'u8[512]{0}', space=vmem, size = 0x400, scoped, tag = 'input window, operand 14, single buffered']
    %22 = vsyncpa [#allocation6], 0
    %23 = vsyncpa [#allocation8], 0
    %24 = vsyncpa [#allocation11], 0
    loop: start=0, step=1, limit=4
    $region2: #{bert_encoder_forward.4} parent=1 // loop_pre_header
      _
    $region3: #{bert_encoder_forward.4} parent=1 // loop_header
      %s26 = sphi 0, %s30
      %p27 = scmp.ge.s32.totalorder %s26, 4
      %s33 = sphi 0, %s45
      %s34 = sphi 0, %s41
      %s35 = sphi 0, %s33
      %s36 = sphi 0, %s34
      %s37 = sphi 0, %s35
      %s38 = sphi 0, %s36
      %s48 = sphi 0, %s50
      %s51 = sphi 0, %s48
      %s52 = sphi 0, %s51
      %s68 = sphi 0, %s52
      %s72 = sphi 0, %s72
      %s74 = sphi 0, %s72
      %s75 = sphi 0, %s74
      %s89 = sphi 0, %s75
      %s93 = sphi 0, %s93
      %s95 = sphi 0, %s93
      %s96 = sphi 0, %s95
      %s110 = sphi 0, %s96
      %s114 = sphi 0, %s114
      %s116 = sphi 0, %s114
      %s117 = sphi 0, %s116
      %s131 = sphi 0, %s117
      %s135 = sphi 0, %s135
      %s137 = sphi 0, %s135
      %s138 = sphi 0, %s137
      %s152 = sphi 0, %s138
      %s156 = sphi 0, %s156
      %s158 = sphi 0, %s156
      %s159 = sphi 0, %s158
      %s173 = sphi 0, %s159
      %s177 = sphi 0, %s177
      %s179 = sphi 0, %s177
      %s180 = sphi 0, %s179
      %s194 = sphi 0, %s180
      %s198 = sphi 0, %s198
      %s200 = sphi 0, %s198
      %s201 = sphi 0, %s200
      %s215 = sphi 0, %s201
      %s219 = sphi 0, %s219
      %s221 = sphi 0, %s219
      %s222 = sphi 0, %s221
      %s236 = sphi 0, %s222
      %s240 = sphi 0, %s240
      %s242 = sphi 0, %s240
      %s243 = sphi 0, %s242
      %s257 = sphi 0, %s243
      %s261 = sphi 0, %s261
      %s263 = sphi 0, %s261
      %s264 = sphi 0, %s263
      %s278 = sphi 0, %s264
      %s284 = sphi 0, %s286
      %s287 = sphi 0, %s284
      %s288 = sphi 0, %s287
      %s304 = sphi 0, %s288
      %s310 = sphi 0, %s312
      %s313 = sphi 0, %s310
      %s314 = sphi 0, %s313
      %s330 = sphi 0, %s314
      %s336 = sphi 0, %s338
      %s339 = sphi 0, %s336
      %s340 = sphi 0, %s339
      %s356 = sphi 0, %s340
      %s360 = sphi 0, %s360
      %s362 = sphi 0, %s360
      %s363 = sphi 0, %s362
      %s377 = sphi 0, %s363
      %s381 = sphi 0, %s381
      %s383 = sphi 0, %s381
      %s384 = sphi 0, %s383
      %s398 = sphi 0, %s384
      %s402 = sphi 0, %s402
      %s404 = sphi 0, %s402
      %s405 = sphi 0, %s404
      %s419 = sphi 0, %s405
      %s425 = sphi 0, %s427
      %s428 = sphi 0, %s425
      %s429 = sphi 0, %s428
      %s445 = sphi 0, %s429
    $region4: #{bert_encoder_forward.4} parent=1 // loop_header_branch
      %29 = sbr.rel (%p27) target = $region8
    $region5: #{bert_encoder_forward.4} parent=1 // loop_body
      %s31 = ssub.s32 %s26, 1
      %s32 = ssub.s32 %s26, 2
      %s39 = sadd.s32 1, %s34
      %p40 = scmp.ge.s32.totalorder %s39, 1
      %s41 = scalar_select %p40, 0, %s39
      %s42 = sadd.s32 1, %s33
      %s43 = scalar_select %p40, %s42, %s33
      %p44 = scmp.ge.s32.totalorder %s43, 2
      %s45 = scalar_select %p44, 0, %s43
      %s46 = ssub.s32 %s33, %s45
      %p47 = scmp.eq.s32.totalorder %s46, 0
      %s49 = sadd.s32 %s48, 1
      %s50 = scalar_select %p47, %s48, %s49
      %p53 = pneg %p47
      %p54 = scmp.eq.s32.totalorder %s26, 1
      %p55 = por %p53, %p54
      %p56 = scmp.ne.s32.totalorder %s48, %s51
      %p57 = scmp.eq.s32.totalorder %s26, 0
      %p58 = por %p56, %p57
      %p59 = scmp.ne.s32.totalorder %s48, %s51
      %p60 = scmp.eq.s32.totalorder %s31, 1
      %p61 = por %p59, %p60
      %p62 = scmp.ne.s32.totalorder %s51, %s52
      %p63 = scmp.eq.s32.totalorder %s31, 0
      %p64 = por %p62, %p63
      %p65 = scmp.ne.s32.totalorder %s51, %s52
      %p66 = scmp.eq.s32.totalorder %s32, 1
      %p67 = por %p65, %p66
      %p69 = scmp.ne.s32.totalorder %s52, %s68
      %p70 = scmp.eq.s32.totalorder %s32, 0
      %p71 = por %p69, %p70
      %s73 = sadd.s32 %s72, 1
      %p76 = scmp.eq.s32.totalorder %s26, 1
      %p77 = scmp.ne.s32.totalorder %s72, %s74
      %p78 = scmp.eq.s32.totalorder %s26, 0
      %p79 = por %p77, %p78
      %p80 = scmp.ne.s32.totalorder %s72, %s74
      %p81 = scmp.eq.s32.totalorder %s31, 1
      %p82 = por %p80, %p81
      %p83 = scmp.ne.s32.totalorder %s74, %s75
      %p84 = scmp.eq.s32.totalorder %s31, 0
      %p85 = por %p83, %p84
      %p86 = scmp.ne.s32.totalorder %s74, %s75
      %p87 = scmp.eq.s32.totalorder %s32, 1
      %p88 = por %p86, %p87
      %p90 = scmp.ne.s32.totalorder %s75, %s89
      %p91 = scmp.eq.s32.totalorder %s32, 0
      %p92 = por %p90, %p91
      %s94 = sadd.s32 %s93, 1
      %p97 = scmp.eq.s32.totalorder %s26, 1
      %p98 = scmp.ne.s32.totalorder %s93, %s95
      %p99 = scmp.eq.s32.totalorder %s26, 0
      %p100 = por %p98, %p99
      %p101 = scmp.ne.s32.totalorder %s93, %s95
      %p102 = scmp.eq.s32.totalorder %s31, 1
      %p103 = por %p101, %p102
      %p104 = scmp.ne.s32.totalorder %s95, %s96
      %p105 = scmp.eq.s32.totalorder %s31, 0
      %p106 = por %p104, %p105
      %p107 = scmp.ne.s32.totalorder %s95, %s96
      %p108 = scmp.eq.s32.totalorder %s32, 1
      %p109 = por %p107, %p108
      %p111 = scmp.ne.s32.totalorder %s96, %s110
      %p112 = scmp.eq.s32.totalorder %s32, 0
      %p113 = por %p111, %p112
      %s115 = sadd.s32 %s114, 1
      %p118 = scmp.eq.s32.totalorder %s26, 1
      %p119 = scmp.ne.s32.totalorder %s114, %s116
      %p120 = scmp.eq.s32.totalorder %s26, 0
      %p121 = por %p119, %p120
      %p122 = scmp.ne.s32.totalorder %s114, %s116
      %p123 = scmp.eq.s32.totalorder %s31, 1
      %p124 = por %p122, %p123
      %p125 = scmp.ne.s32.totalorder %s116, %s117
      %p126 = scmp.eq.s32.totalorder %s31, 0
      %p127 = por %p125, %p126
      %p128 = scmp.ne.s32.totalorder %s116, %s117
      %p129 = scmp.eq.s32.totalorder %s32, 1
      %p130 = por %p128, %p129
      %p132 = scmp.ne.s32.totalorder %s117, %s131
      %p133 = scmp.eq.s32.totalorder %s32, 0
      %p134 = por %p132, %p133
      %s136 = sadd.s32 %s135, 1
      %p139 = scmp.eq.s32.totalorder %s26, 1
      %p140 = scmp.ne.s32.totalorder %s135, %s137
      %p141 = scmp.eq.s32.totalorder %s26, 0
      %p142 = por %p140, %p141
      %p143 = scmp.ne.s32.totalorder %s135, %s137
      %p144 = scmp.eq.s32.totalorder %s31, 1
      %p145 = por %p143, %p144
      %p146 = scmp.ne.s32.totalorder %s137, %s138
      %p147 = scmp.eq.s32.totalorder %s31, 0
      %p148 = por %p146, %p147
      %p149 = scmp.ne.s32.totalorder %s137, %s138
      %p150 = scmp.eq.s32.totalorder %s32, 1
      %p151 = por %p149, %p150
      %p153 = scmp.ne.s32.totalorder %s138, %s152
      %p154 = scmp.eq.s32.totalorder %s32, 0
      %p155 = por %p153, %p154
      %s157 = sadd.s32 %s156, 1
      %p160 = scmp.eq.s32.totalorder %s26, 1
      %p161 = scmp.ne.s32.totalorder %s156, %s158
      %p162 = scmp.eq.s32.totalorder %s26, 0
      %p163 = por %p161, %p162
      %p164 = scmp.ne.s32.totalorder %s156, %s158
      %p165 = scmp.eq.s32.totalorder %s31, 1
      %p166 = por %p164, %p165
      %p167 = scmp.ne.s32.totalorder %s158, %s159
      %p168 = scmp.eq.s32.totalorder %s31, 0
      %p169 = por %p167, %p168
      %p170 = scmp.ne.s32.totalorder %s158, %s159
      %p171 = scmp.eq.s32.totalorder %s32, 1
      %p172 = por %p170, %p171
      %p174 = scmp.ne.s32.totalorder %s159, %s173
      %p175 = scmp.eq.s32.totalorder %s32, 0
      %p176 = por %p174, %p175
      %s178 = sadd.s32 %s177, 1
      %p181 = scmp.eq.s32.totalorder %s26, 1
      %p182 = scmp.ne.s32.totalorder %s177, %s179
      %p183 = scmp.eq.s32.totalorder %s26, 0
      %p184 = por %p182, %p183
      %p185 = scmp.ne.s32.totalorder %s177, %s179
      %p186 = scmp.eq.s32.totalorder %s31, 1
      %p187 = por %p185, %p186
      %p188 = scmp.ne.s32.totalorder %s179, %s180
      %p189 = scmp.eq.s32.totalorder %s31, 0
      %p190 = por %p188, %p189
      %p191 = scmp.ne.s32.totalorder %s179, %s180
      %p192 = scmp.eq.s32.totalorder %s32, 1
      %p193 = por %p191, %p192
      %p195 = scmp.ne.s32.totalorder %s180, %s194
      %p196 = scmp.eq.s32.totalorder %s32, 0
      %p197 = por %p195, %p196
      %s199 = sadd.s32 %s198, 1
      %p202 = scmp.eq.s32.totalorder %s26, 1
      %p203 = scmp.ne.s32.totalorder %s198, %s200
      %p204 = scmp.eq.s32.totalorder %s26, 0
      %p205 = por %p203, %p204
      %p206 = scmp.ne.s32.totalorder %s198, %s200
      %p207 = scmp.eq.s32.totalorder %s31, 1
      %p208 = por %p206, %p207
      %p209 = scmp.ne.s32.totalorder %s200, %s201
      %p210 = scmp.eq.s32.totalorder %s31, 0
      %p211 = por %p209, %p210
      %p212 = scmp.ne.s32.totalorder %s200, %s201
      %p213 = scmp.eq.s32.totalorder %s32, 1
      %p214 = por %p212, %p213
      %p216 = scmp.ne.s32.totalorder %s201, %s215
      %p217 = scmp.eq.s32.totalorder %s32, 0
      %p218 = por %p216, %p217
      %s220 = sadd.s32 %s219, 1
      %p223 = scmp.eq.s32.totalorder %s26, 1
      %p224 = scmp.ne.s32.totalorder %s219, %s221
      %p225 = scmp.eq.s32.totalorder %s26, 0
      %p226 = por %p224, %p225
      %p227 = scmp.ne.s32.totalorder %s219, %s221
      %p228 = scmp.eq.s32.totalorder %s31, 1
      %p229 = por %p227, %p228
      %p230 = scmp.ne.s32.totalorder %s221, %s222
      %p231 = scmp.eq.s32.totalorder %s31, 0
      %p232 = por %p230, %p231
      %p233 = scmp.ne.s32.totalorder %s221, %s222
      %p234 = scmp.eq.s32.totalorder %s32, 1
      %p235 = por %p233, %p234
      %p237 = scmp.ne.s32.totalorder %s222, %s236
      %p238 = scmp.eq.s32.totalorder %s32, 0
      %p239 = por %p237, %p238
      %s241 = sadd.s32 %s240, 1
      %p244 = scmp.eq.s32.totalorder %s26, 1
      %p245 = scmp.ne.s32.totalorder %s240, %s242
      %p246 = scmp.eq.s32.totalorder %s26, 0
      %p247 = por %p245, %p246
      %p248 = scmp.ne.s32.totalorder %s240, %s242
      %p249 = scmp.eq.s32.totalorder %s31, 1
      %p250 = por %p248, %p249
      %p251 = scmp.ne.s32.totalorder %s242, %s243
      %p252 = scmp.eq.s32.totalorder %s31, 0
      %p253 = por %p251, %p252
      %p254 = scmp.ne.s32.totalorder %s242, %s243
      %p255 = scmp.eq.s32.totalorder %s32, 1
      %p256 = por %p254, %p255
      %p258 = scmp.ne.s32.totalorder %s243, %s257
      %p259 = scmp.eq.s32.totalorder %s32, 0
      %p260 = por %p258, %p259
      %s262 = sadd.s32 %s261, 1
      %p265 = scmp.eq.s32.totalorder %s26, 1
      %p266 = scmp.ne.s32.totalorder %s261, %s263
      %p267 = scmp.eq.s32.totalorder %s26, 0
      %p268 = por %p266, %p267
      %p269 = scmp.ne.s32.totalorder %s261, %s263
      %p270 = scmp.eq.s32.totalorder %s31, 1
      %p271 = por %p269, %p270
      %p272 = scmp.ne.s32.totalorder %s263, %s264
      %p273 = scmp.eq.s32.totalorder %s31, 0
      %p274 = por %p272, %p273
      %p275 = scmp.ne.s32.totalorder %s263, %s264
      %p276 = scmp.eq.s32.totalorder %s32, 1
      %p277 = por %p275, %p276
      %p279 = scmp.ne.s32.totalorder %s264, %s278
      %p280 = scmp.eq.s32.totalorder %s32, 0
      %p281 = por %p279, %p280
      %s282 = ssub.s32 %s34, %s41
      %p283 = scmp.eq.s32.totalorder %s282, 0
      %s285 = sadd.s32 %s284, 1
      %s286 = scalar_select %p283, %s284, %s285
      %p289 = pneg %p283
      %p290 = scmp.eq.s32.totalorder %s26, 1
      %p291 = por %p289, %p290
      %p292 = scmp.ne.s32.totalorder %s284, %s287
      %p293 = scmp.eq.s32.totalorder %s26, 0
      %p294 = por %p292, %p293
      %p295 = scmp.ne.s32.totalorder %s284, %s287
      %p296 = scmp.eq.s32.totalorder %s31, 1
      %p297 = por %p295, %p296
      %p298 = scmp.ne.s32.totalorder %s287, %s288
      %p299 = scmp.eq.s32.totalorder %s31, 0
      %p300 = por %p298, %p299
      %p301 = scmp.ne.s32.totalorder %s287, %s288
      %p302 = scmp.eq.s32.totalorder %s32, 1
      %p303 = por %p301, %p302
      %p305 = scmp.ne.s32.totalorder %s288, %s304
      %p306 = scmp.eq.s32.totalorder %s32, 0
      %p307 = por %p305, %p306
      %s308 = ssub.s32 %s34, %s41
      %p309 = scmp.eq.s32.totalorder %s308, 0
      %s311 = sadd.s32 %s310, 1
      %s312 = scalar_select %p309, %s310, %s311
      %p315 = pneg %p309
      %p316 = scmp.eq.s32.totalorder %s26, 1
      %p317 = por %p315, %p316
      %p318 = scmp.ne.s32.totalorder %s310, %s313
      %p319 = scmp.eq.s32.totalorder %s26, 0
      %p320 = por %p318, %p319
      %p321 = scmp.ne.s32.totalorder %s310, %s313
      %p322 = scmp.eq.s32.totalorder %s31, 1
      %p323 = por %p321, %p322
      %p324 = scmp.ne.s32.totalorder %s313, %s314
      %p325 = scmp.eq.s32.totalorder %s31, 0
      %p326 = por %p324, %p325
      %p327 = scmp.ne.s32.totalorder %s313, %s314
      %p328 = scmp.eq.s32.totalorder %s32, 1
      %p329 = por %p327, %p328
      %p331 = scmp.ne.s32.totalorder %s314, %s330
      %p332 = scmp.eq.s32.totalorder %s32, 0
      %p333 = por %p331, %p332
      %s334 = ssub.s32 %s34, %s41
      %p335 = scmp.eq.s32.totalorder %s334, 0
      %s337 = sadd.s32 %s336, 1
      %s338 = scalar_select %p335, %s336, %s337
      %p341 = pneg %p335
      %p342 = scmp.eq.s32.totalorder %s26, 1
      %p343 = por %p341, %p342
      %p344 = scmp.ne.s32.totalorder %s336, %s339
      %p345 = scmp.eq.s32.totalorder %s26, 0
      %p346 = por %p344, %p345
      %p347 = scmp.ne.s32.totalorder %s336, %s339
      %p348 = scmp.eq.s32.totalorder %s31, 1
      %p349 = por %p347, %p348
      %p350 = scmp.ne.s32.totalorder %s339, %s340
      %p351 = scmp.eq.s32.totalorder %s31, 0
      %p352 = por %p350, %p351
      %p353 = scmp.ne.s32.totalorder %s339, %s340
      %p354 = scmp.eq.s32.totalorder %s32, 1
      %p355 = por %p353, %p354
      %p357 = scmp.ne.s32.totalorder %s340, %s356
      %p358 = scmp.eq.s32.totalorder %s32, 0
      %p359 = por %p357, %p358
      %s361 = sadd.s32 %s360, 1
      %p364 = scmp.eq.s32.totalorder %s26, 1
      %p365 = scmp.ne.s32.totalorder %s360, %s362
      %p366 = scmp.eq.s32.totalorder %s26, 0
      %p367 = por %p365, %p366
      %p368 = scmp.ne.s32.totalorder %s360, %s362
      %p369 = scmp.eq.s32.totalorder %s31, 1
      %p370 = por %p368, %p369
      %p371 = scmp.ne.s32.totalorder %s362, %s363
      %p372 = scmp.eq.s32.totalorder %s31, 0
      %p373 = por %p371, %p372
      %p374 = scmp.ne.s32.totalorder %s362, %s363
      %p375 = scmp.eq.s32.totalorder %s32, 1
      %p376 = por %p374, %p375
      %p378 = scmp.ne.s32.totalorder %s363, %s377
      %p379 = scmp.eq.s32.totalorder %s32, 0
      %p380 = por %p378, %p379
      %s382 = sadd.s32 %s381, 1
      %p385 = scmp.eq.s32.totalorder %s26, 1
      %p386 = scmp.ne.s32.totalorder %s381, %s383
      %p387 = scmp.eq.s32.totalorder %s26, 0
      %p388 = por %p386, %p387
      %p389 = scmp.ne.s32.totalorder %s381, %s383
      %p390 = scmp.eq.s32.totalorder %s31, 1
      %p391 = por %p389, %p390
      %p392 = scmp.ne.s32.totalorder %s383, %s384
      %p393 = scmp.eq.s32.totalorder %s31, 0
      %p394 = por %p392, %p393
      %p395 = scmp.ne.s32.totalorder %s383, %s384
      %p396 = scmp.eq.s32.totalorder %s32, 1
      %p397 = por %p395, %p396
      %p399 = scmp.ne.s32.totalorder %s384, %s398
      %p400 = scmp.eq.s32.totalorder %s32, 0
      %p401 = por %p399, %p400
      %s403 = sadd.s32 %s402, 1
      %p406 = scmp.eq.s32.totalorder %s26, 1
      %p407 = scmp.ne.s32.totalorder %s402, %s404
      %p408 = scmp.eq.s32.totalorder %s26, 0
      %p409 = por %p407, %p408
      %p410 = scmp.ne.s32.totalorder %s402, %s404
      %p411 = scmp.eq.s32.totalorder %s31, 1
      %p412 = por %p410, %p411
      %p413 = scmp.ne.s32.totalorder %s404, %s405
      %p414 = scmp.eq.s32.totalorder %s31, 0
      %p415 = por %p413, %p414
      %p416 = scmp.ne.s32.totalorder %s404, %s405
      %p417 = scmp.eq.s32.totalorder %s32, 1
      %p418 = por %p416, %p417
      %p420 = scmp.ne.s32.totalorder %s405, %s419
      %p421 = scmp.eq.s32.totalorder %s32, 0
      %p422 = por %p420, %p421
      %s423 = ssub.s32 %s33, %s45
      %p424 = scmp.eq.s32.totalorder %s423, 0
      %s426 = sadd.s32 %s425, 1
      %s427 = scalar_select %p424, %s425, %s426
      %p430 = pneg %p424
      %p431 = scmp.eq.s32.totalorder %s26, 1
      %p432 = por %p430, %p431
      %p433 = scmp.ne.s32.totalorder %s425, %s428
      %p434 = scmp.eq.s32.totalorder %s26, 0
      %p435 = por %p433, %p434
      %p436 = scmp.ne.s32.totalorder %s425, %s428
      %p437 = scmp.eq.s32.totalorder %s31, 1
      %p438 = por %p436, %p437
      %p439 = scmp.ne.s32.totalorder %s428, %s429
      %p440 = scmp.eq.s32.totalorder %s31, 0
      %p441 = por %p439, %p440
      %p442 = scmp.ne.s32.totalorder %s428, %s429
      %p443 = scmp.eq.s32.totalorder %s32, 1
      %p444 = por %p442, %p443
      %p446 = scmp.ne.s32.totalorder %s429, %s445
      %p447 = scmp.eq.s32.totalorder %s32, 0
      %p448 = por %p446, %p447
      %p449 = scmp.le.s32.totalorder 1, %s26
      %p450 = scmp.lt.s32.totalorder %s26, 3
      %p451 = pnand %p449, %p450
      %p452 = pneg %p451
      // Predicated region
      $region9: #{bert_encoder_forward.4} parent=5 // pred_check
        _
      $region10: #{bert_encoder_forward.4} parent=5 // pred_check_branch
        %454 = sbr.rel (%p451) target = $region12
      $region11: #{bert_encoder_forward.4} parent=5 // pred_region
        %s455 = ssub.s32 %s26, 1
        // Predicated region
        $region13: #{bert_encoder_forward.4} parent=11 // pred_check
          %p456 = pneg %p85
        $region14: #{bert_encoder_forward.4} parent=11 // pred_check_branch
          %458 = sbr.rel (%p456) target = $region16
        $region15: #{bert_encoder_forward.4} parent=11 // pred_region
          _
        $region16: #{bert_encoder_forward.4} parent=11 // pred_fallthru
          _
        // Predicated region
        $region17: #{bert_encoder_forward.4} parent=11 // pred_check
          %p459 = pneg %p106
        $region18: #{bert_encoder_forward.4} parent=11 // pred_check_branch
          %461 = sbr.rel (%p459) target = $region20
        $region19: #{bert_encoder_forward.4} parent=11 // pred_region
          _
        $region20: #{bert_encoder_forward.4} parent=11 // pred_fallthru
          _
        // Predicated region
        $region21: #{bert_encoder_forward.4} parent=11 // pred_check
          %p462 = pneg %p127
        $region22: #{bert_encoder_forward.4} parent=11 // pred_check_branch
          %464 = sbr.rel (%p462) target = $region24
        $region23: #{bert_encoder_forward.4} parent=11 // pred_region
          _
        $region24: #{bert_encoder_forward.4} parent=11 // pred_fallthru
          _
        // Predicated region
        $region25: #{bert_encoder_forward.4} parent=11 // pred_check
          %p465 = pneg %p148
        $region26: #{bert_encoder_forward.4} parent=11 // pred_check_branch
          %467 = sbr.rel (%p465) target = $region28
        $region27: #{bert_encoder_forward.4} parent=11 // pred_region
          %469 = vsyncadd [#allocation6], 0
          %s471 = sshll.u32 %s4, 4
          %s472 = int_to_ptr.hbm [resolvable:$true] %s471
          %s473 = sshll.u32 [#allocation5], 4
          %s474 = int_to_ptr.vmem [resolvable:$true] %s473
          %476 = dma.hbm_to_vmem [thread:$0]  %s472, 16, %s474, [#allocation6]
        $region28: #{bert_encoder_forward.4} parent=11 // pred_fallthru
          _
        // Predicated region
        $region29: #{bert_encoder_forward.4} parent=11 // pred_check
          %p477 = pneg %p169
        $region30: #{bert_encoder_forward.4} parent=11 // pred_check_branch
          %479 = sbr.rel (%p477) target = $region32
        $region31: #{bert_encoder_forward.4} parent=11 // pred_region
          _
        $region32: #{bert_encoder_forward.4} parent=11 // pred_fallthru
          _
        // Predicated region
        $region33: #{bert_encoder_forward.4} parent=11 // pred_check
          %p480 = pneg %p190
        $region34: #{bert_encoder_forward.4} parent=11 // pred_check_branch
          %482 = sbr.rel (%p480) target = $region36
        $region35: #{bert_encoder_forward.4} parent=11 // pred_region
          _
        $region36: #{bert_encoder_forward.4} parent=11 // pred_fallthru
          _
        // Predicated region
        $region37: #{bert_encoder_forward.4} parent=11 // pred_check
          %p483 = pneg %p211
        $region38: #{bert_encoder_forward.4} parent=11 // pred_check_branch
          %485 = sbr.rel (%p483) target = $region40
        $region39: #{bert_encoder_forward.4} parent=11 // pred_region
          _
        $region40: #{bert_encoder_forward.4} parent=11 // pred_fallthru
          _
        // Predicated region
        $region41: #{bert_encoder_forward.4} parent=11 // pred_check
          %p486 = pneg %p232
        $region42: #{bert_encoder_forward.4} parent=11 // pred_check_branch
          %488 = sbr.rel (%p486) target = $region44
        $region43: #{bert_encoder_forward.4} parent=11 // pred_region
          %490 = vsyncadd [#allocation8], 0
          %s492 = sshll.u32 %s8, 4
          %s493 = int_to_ptr.hbm [resolvable:$true] %s492
          %s494 = sshll.u32 [#allocation7], 4
          %s495 = int_to_ptr.vmem [resolvable:$true] %s494
          %497 = dma.hbm_to_vmem [thread:$0]  %s493, 16, %s495, [#allocation8]
        $region44: #{bert_encoder_forward.4} parent=11 // pred_fallthru
          _
        // Predicated region
        $region45: #{bert_encoder_forward.4} parent=11 // pred_check
          %p498 = pneg %p253
        $region46: #{bert_encoder_forward.4} parent=11 // pred_check_branch
          %500 = sbr.rel (%p498) target = $region48
        $region47: #{bert_encoder_forward.4} parent=11 // pred_region
          _
        $region48: #{bert_encoder_forward.4} parent=11 // pred_fallthru
          _
        // Predicated region
        $region49: #{bert_encoder_forward.4} parent=11 // pred_check
          %p501 = pneg %p274
        $region50: #{bert_encoder_forward.4} parent=11 // pred_check_branch
          %503 = sbr.rel (%p501) target = $region52
        $region51: #{bert_encoder_forward.4} parent=11 // pred_region
          _
        $region52: #{bert_encoder_forward.4} parent=11 // pred_fallthru
          _
        // Predicated region
        $region53: #{bert_encoder_forward.4} parent=11 // pred_check
          %p504 = pneg %p300
        $region54: #{bert_encoder_forward.4} parent=11 // pred_check_branch
          %506 = sbr.rel (%p504) target = $region56
        $region55: #{bert_encoder_forward.4} parent=11 // pred_region
          %508 = vsyncadd [#allocation8], 0
          %s509 = smul.addr %s36, 4
          %s510 = scalar_lea.hbm %s11, %s509
          %s511 = sshll.u32 %s510, 4
          %s512 = int_to_ptr.hbm [resolvable:$true] %s511
          %s513 = sshll.u32 [#allocation9], 4
          %s514 = int_to_ptr.vmem [resolvable:$true] %s513
          %519 = dma.hbm_to_vmem [thread:$0]  %s512, 256, %s514, [#allocation8], 64, 64, 4
        $region56: #{bert_encoder_forward.4} parent=11 // pred_fallthru
          _
        // Predicated region
        $region57: #{bert_encoder_forward.4} parent=11 // pred_check
          %p520 = pneg %p326
        $region58: #{bert_encoder_forward.4} parent=11 // pred_check_branch
          %522 = sbr.rel (%p520) target = $region60
        $region59: #{bert_encoder_forward.4} parent=11 // pred_region
          %524 = vsyncadd [#allocation11], 0
          %s525 = scalar_lea.hbm %s12, %s36
          %s527 = sshll.u32 %s525, 4
          %s528 = int_to_ptr.hbm [resolvable:$true] %s527
          %s529 = sshll.u32 [#allocation10], 4
          %s530 = int_to_ptr.vmem [resolvable:$true] %s529
          %532 = dma.hbm_to_vmem [thread:$0]  %s528, 16, %s530, [#allocation11]
        $region60: #{bert_encoder_forward.4} parent=11 // pred_fallthru
          _
        // Predicated region
        $region61: #{bert_encoder_forward.4} parent=11 // pred_check
          %p533 = pneg %p352
        $region62: #{bert_encoder_forward.4} parent=11 // pred_check_branch
          %535 = sbr.rel (%p533) target = $region64
        $region63: #{bert_encoder_forward.4} parent=11 // pred_region
          %s536 = smul.u32 8, %s36
          %p537 = scmp.lt.s32.totalorder %s536, 7
          %s538 = scalar_select %p537, %s536, 7
          %s539 = smul.addr %s538, 4
          %s540 = scalar_lea.vmem %s13, %s539
          %s541 = smul.u32 8, %s36
        $region64: #{bert_encoder_forward.4} parent=11 // pred_fallthru
          _
        // Predicated region
        $region65: #{bert_encoder_forward.4} parent=11 // pred_check
          %p542 = pneg %p373
        $region66: #{bert_encoder_forward.4} parent=11 // pred_check_branch
          %544 = sbr.rel (%p542) target = $region68
        $region67: #{bert_encoder_forward.4} parent=11 // pred_region
          %546 = vsyncadd [#allocation11], 0
          %s548 = sshll.u32 %s14, 4
          %s549 = int_to_ptr.hbm [resolvable:$true] %s548
          %s550 = sshll.u32 [#allocation12], 4
          %s551 = int_to_ptr.vmem [resolvable:$true] %s550
          %553 = dma.hbm_to_vmem [thread:$0]  %s549, 16, %s551, [#allocation11]
        $region68: #{bert_encoder_forward.4} parent=11 // pred_fallthru
          _
        // Predicated region
        $region69: #{bert_encoder_forward.4} parent=11 // pred_check
          %p554 = pneg %p394
        $region70: #{bert_encoder_forward.4} parent=11 // pred_check_branch
          %556 = sbr.rel (%p554) target = $region72
        $region71: #{bert_encoder_forward.4} parent=11 // pred_region
          _
        $region72: #{bert_encoder_forward.4} parent=11 // pred_fallthru
          _
        // Predicated region
        $region73: #{bert_encoder_forward.4} parent=11 // pred_check
          %p557 = pneg %p415
        $region74: #{bert_encoder_forward.4} parent=11 // pred_check_branch
          %559 = sbr.rel (%p557) target = $region76
        $region75: #{bert_encoder_forward.4} parent=11 // pred_region
          _
        $region76: #{bert_encoder_forward.4} parent=11 // pred_fallthru
          _
      $region12: #{bert_encoder_forward.4} parent=5 // pred_fallthru
        _
      %p560 = scmp.lt.s32.totalorder %s26, 2
      // Predicated region
      $region77: #{bert_encoder_forward.4} parent=5 // pred_check
        %p561 = pneg %p560
      $region78: #{bert_encoder_forward.4} parent=5 // pred_check_branch
        %563 = sbr.rel (%p561) target = $region80
      $region79: #{bert_encoder_forward.4} parent=5 // pred_region
        // Predicated region
        $region81: #{bert_encoder_forward.4} parent=79 // pred_check
          %p564 = pneg %p58
        $region82: #{bert_encoder_forward.4} parent=79 // pred_check_branch
          %566 = sbr.rel (%p564) target = $region84
        $region83: #{bert_encoder_forward.4} parent=79 // pred_region
          %p567 = scmp.lt.s32.totalorder %s33, 1
          %s568 = scalar_select %p567, %s33, 1
          %s569 = smul.addr %s568, 8
          %s570 = scalar_lea.vmem %s0, %s569
        $region84: #{bert_encoder_forward.4} parent=79 // pred_fallthru
          _
      $region80: #{bert_encoder_forward.4} parent=5 // pred_fallthru
        _
      %p571 = scmp.le.s32.totalorder 1, %s26
      %p572 = scmp.lt.s32.totalorder %s26, 3
      %p573 = pnand %p571, %p572
      %p574 = pneg %p573
      // Predicated region
      $region85: #{bert_encoder_forward.4} parent=5 // pred_check
        _
      $region86: #{bert_encoder_forward.4} parent=5 // pred_check_branch
        %576 = sbr.rel (%p573) target = $region88
      $region87: #{bert_encoder_forward.4} parent=5 // pred_region
        %s577 = ssub.s32 %s26, 1
        // Predicated region
        $region89: #{bert_encoder_forward.4} parent=87 // pred_check
          %p578 = pneg %p148
        $region90: #{bert_encoder_forward.4} parent=87 // pred_check_branch
          %580 = sbr.rel (%p578) target = $region92
        $region91: #{bert_encoder_forward.4} parent=87 // pred_region
          %582 = dma.done [#allocation6], 16
        $region92: #{bert_encoder_forward.4} parent=87 // pred_fallthru
          _
        // Predicated region
        $region93: #{bert_encoder_forward.4} parent=87 // pred_check
          %p583 = pneg %p232
        $region94: #{bert_encoder_forward.4} parent=87 // pred_check_branch
          %585 = sbr.rel (%p583) target = $region96
        $region95: #{bert_encoder_forward.4} parent=87 // pred_region
          %587 = dma.done [#allocation8], 16
        $region96: #{bert_encoder_forward.4} parent=87 // pred_fallthru
          _
        // Predicated region
        $region97: #{bert_encoder_forward.4} parent=87 // pred_check
          %p588 = pneg %p300
        $region98: #{bert_encoder_forward.4} parent=87 // pred_check_branch
          %590 = sbr.rel (%p588) target = $region100
        $region99: #{bert_encoder_forward.4} parent=87 // pred_region
          %592 = dma.done [#allocation8], 256
        $region100: #{bert_encoder_forward.4} parent=87 // pred_fallthru
          _
        // Predicated region
        $region101: #{bert_encoder_forward.4} parent=87 // pred_check
          %p593 = pneg %p326
        $region102: #{bert_encoder_forward.4} parent=87 // pred_check_branch
          %595 = sbr.rel (%p593) target = $region104
        $region103: #{bert_encoder_forward.4} parent=87 // pred_region
          %597 = dma.done [#allocation11], 16
        $region104: #{bert_encoder_forward.4} parent=87 // pred_fallthru
          _
        // Predicated region
        $region105: #{bert_encoder_forward.4} parent=87 // pred_check
          %p598 = pneg %p373
        $region106: #{bert_encoder_forward.4} parent=87 // pred_check_branch
          %600 = sbr.rel (%p598) target = $region108
        $region107: #{bert_encoder_forward.4} parent=87 // pred_region
          %602 = dma.done [#allocation11], 16
        $region108: #{bert_encoder_forward.4} parent=87 // pred_fallthru
          _
        %p603 = scmp.lt.s32.totalorder %s35, 1
        %s604 = scalar_select %p603, %s35, 1
        %s605 = smul.addr %s604, 8
        %s606 = scalar_lea.vmem %s0, %s605
        %p607 = pneg %p64
        %p608 = pneg %p61
        %p609 = pneg %p85
        %p610 = pneg %p82
        %p611 = pneg %p106
        %p612 = pneg %p103
        %p613 = pneg %p127
        %p614 = pneg %p124
        %p615 = pneg %p148
        %p616 = pneg %p145
        %p617 = pneg %p169
        %p618 = pneg %p166
        %p619 = pneg %p190
        %p620 = pneg %p187
        %p621 = pneg %p211
        %p622 = pneg %p208
        %p623 = pneg %p232
        %p624 = pneg %p229
        %p625 = pneg %p253
        %p626 = pneg %p250
        %p627 = pneg %p274
        %p628 = pneg %p271
        %p629 = pneg %p300
        %p630 = pneg %p297
        %p631 = pneg %p326
        %p632 = pneg %p323
        %s633 = smul.u32 8, %s36
        %p634 = scmp.lt.s32.totalorder %s633, 7
        %s635 = scalar_select %p634, %s633, 7
        %s636 = smul.addr %s635, 4
        %s637 = scalar_lea.vmem %s13, %s636
        %p638 = pneg %p352
        %p639 = pneg %p349
        %p640 = pneg %p373
        %p641 = pneg %p370
        %p642 = pneg %p394
        %p643 = pneg %p391
        %p644 = pneg %p415
        %p645 = pneg %p412
        %p646 = pneg %p441
        %p647 = pneg %p438
        %p648 = scmp.lt.s32.totalorder %s35, 1
        %s649 = scalar_select %p648, %s35, 1
        %s650 = smul.addr %s649, 8
        %s651 = scalar_lea.vmem %s17, %s650
        %p652 = scmp.lt.s32.totalorder %s35, 1
        %s653 = scalar_select %p652, %s35, 1
        %s654 = smul.addr %s653, 8
        %s655 = scalar_lea.vmem %s0, %s654
        %s656 = smul.u32 8, %s36
        %p657 = scmp.lt.s32.totalorder %s656, 7
        %s658 = scalar_select %p657, %s656, 7
        %s659 = smul.addr %s658, 4
        %s660 = scalar_lea.vmem %s13, %s659
        %s661 = smul.u32 8, %s36
        %p662 = scmp.lt.s32.totalorder %s35, 1
        %s663 = scalar_select %p662, %s35, 1
        %s664 = smul.addr %s663, 8
        %s665 = scalar_lea.vmem %s17, %s664
        %p667 = scmp.eq.s32.totalorder %s36, 0
        // Predicated region
        $region109: #{bert_encoder_forward.4} parent=87 // pred_check
          %p668 = pneg %p667
        $region110: #{bert_encoder_forward.4} parent=87 // pred_check_branch
          %670 = sbr.rel (%p668) target = $region112
        $region111: #{bert_encoder_forward.4} parent=87 // pred_region
          %v671 = vld [vmem:[%s655] sm:$0xff]
          %v672 = vpack.c.bf16 %v671, %v671
          %v673 = vld [vmem:[%s1] sm:$0xf]
          %v674 = vld [vmem:[%s1 + $0x4] sm:$0xf]
          %v675 = vld [vmem:[%s1 + $0x8] sm:$0xf]
          %v676 = vld [vmem:[%s1 + $0xc] sm:$0xf]
          %v677 = vld [vmem:[%s2] sm:$0x1]
          %v679 = vperm.slane %v677, 0
          %v685 = vunpack.c.l.b16 %v673
          %v686 = vunpack.c.l.b16 %v674
          %v687 = vunpack.c.l.b16 %v675
          %v688 = vunpack.c.l.b16 %v676
          %v689 = vpack.c.b16 %v686, %v685
          %v690 = vpack.c.b16 %v688, %v687
          %vm693 = vcmask 261120
          %v695 = vsel %vm693, %v672, 0
          %697 = vmatpush.bf16.msra.mxu0 0
          %698 = vmatpush.bf16.msra.mxu0 0
          %699 = vmatpush.bf16.msra.mxu0 0
          %700 = vmatpush.bf16.msra.mxu0 0
          %701 = vmatpush.bf16.msra.mxu0 0
          %702 = vmatpush.bf16.msra.mxu0 0
          %703 = vmatpush.bf16.msra.mxu0 %v690
          %704 = vmatpush.bf16.msra.mxu0 %v689
          %705 = vmatmul.bf16.gmra.mxu0 %v695
          %v706 = vpop.f32.mrf.mxu0
          %v707 = vadd.f32 %v679, %v706
          %v708 = vpop.f32.mrf.mxu0
          %709 = vdwg.mxu0
          %v710 = vmul.f32 %v707, 0.35355338
          %v711 = vpack.c.bf16 %v710, %v710
          %v712 = vld [vmem:[%s3] sm:$0xf]
          %v713 = vld [vmem:[%s3 + $0x4] sm:$0xf]
          %v714 = vld [vmem:[%s3 + $0x8] sm:$0xf]
          %v715 = vld [vmem:[%s3 + $0xc] sm:$0xf]
          %v716 = vld [vmem:[#allocation5] sm:$0x1]
          %v718 = vperm.slane %v716, 0
          %v724 = vunpack.c.l.b16 %v712
          %v725 = vunpack.c.l.b16 %v713
          %v726 = vunpack.c.l.b16 %v714
          %v727 = vunpack.c.l.b16 %v715
          %v728 = vpack.c.b16 %v725, %v724
          %v729 = vpack.c.b16 %v727, %v726
          %732 = vmatpush.bf16.msra.mxu0 0
          %733 = vmatpush.bf16.msra.mxu0 0
          %734 = vmatpush.bf16.msra.mxu0 0
          %735 = vmatpush.bf16.msra.mxu0 0
          %736 = vmatpush.bf16.msra.mxu0 0
          %737 = vmatpush.bf16.msra.mxu0 0
          %738 = vmatpush.bf16.msra.mxu0 %v729
          %739 = vmatpush.bf16.msra.mxu0 %v728
          %740 = vmatmul.bf16.gmra.mxu0 %v695
          %v741 = vpop.f32.mrf.mxu0
          %v742 = vadd.f32 %v718, %v741
          %v743 = vpop.f32.mrf.mxu0
          %744 = vdwg.mxu0
          %v745 = vpack.c.bf16 %v742, %v742
          %v746 = vld [vmem:[%s5] sm:$0xf]
          %v747 = vld [vmem:[%s5 + $0x4] sm:$0xf]
          %v748 = vld [vmem:[%s5 + $0x8] sm:$0xf]
          %v749 = vld [vmem:[%s5 + $0xc] sm:$0xf]
          %v750 = vld [vmem:[%s6] sm:$0x1]
          %v752 = vperm.slane %v750, 0
          %v758 = vunpack.c.l.b16 %v746
          %v759 = vunpack.c.l.b16 %v747
          %v760 = vunpack.c.l.b16 %v748
          %v761 = vunpack.c.l.b16 %v749
          %v762 = vpack.c.b16 %v759, %v758
          %v763 = vpack.c.b16 %v761, %v760
          %766 = vmatpush.bf16.msra.mxu0 0
          %767 = vmatpush.bf16.msra.mxu0 0
          %768 = vmatpush.bf16.msra.mxu0 0
          %769 = vmatpush.bf16.msra.mxu0 0
          %770 = vmatpush.bf16.msra.mxu0 0
          %771 = vmatpush.bf16.msra.mxu0 0
          %772 = vmatpush.bf16.msra.mxu0 %v763
          %773 = vmatpush.bf16.msra.mxu0 %v762
          %774 = vmatmul.bf16.gmra.mxu0 %v695
          %v775 = vpop.f32.mrf.mxu0
          %v776 = vadd.f32 %v752, %v775
          %v777 = vpop.f32.mrf.mxu0
          %778 = vdwg.mxu0
          %v779 = vpack.c.bf16 %v776, %v776
          %vm780 = vcmask 64512
          %v782 = vsel %vm780, %v711, 0
          %v785 = vsel %vm780, %v745, 0
          %787 = vmatpush.bf16.xpose.msra.mxu0 0
          %788 = vmatpush.bf16.xpose.msra.mxu0 0
          %789 = vmatpush.bf16.xpose.msra.mxu0 0
          %790 = vmatpush.bf16.xpose.msra.mxu0 0
          %791 = vmatpush.bf16.xpose.msra.mxu0 0
          %792 = vmatpush.bf16.xpose.msra.mxu0 0
          %793 = vmatpush.bf16.xpose.msra.mxu0 0
          %794 = vmatpush.bf16.xpose.msra.mxu0 %v785
          %795 = vmatmul.bf16.gmra.mxu0 %v782
          %v796 = vpop.f32.mrf.mxu0
          %v797 = vadd.f32 0.0, %v796
          %v798 = vpop.f32.mrf.mxu0
          %799 = vdwg.mxu0
          %v800 = vsel %vm780, %v797, -inf
          %801 = vmax.xlane.f32.xlu0 %v800
          %v802 = vpop.xlane.xlu0 %801
          %v803 = vsub.f32 %v797, %v802
          %v804 = vmul.f32 %v803, 1.442695
          %v805 = vpow.pop %v804
          %v806 = vsel %vm780, %v805, 0.0
          %807 = vadd.xlane.f32.xlu0 %v806
          %v808 = vpop.xlane.xlu0 %807
          %v809 = vrcp.pop %v808
          %v810 = vmul.f32 %v805, %v809
          %v811 = vpack.c.bf16 %v810, %v810
          %v813 = vsel %vm780, %v811, 0
          %vm815 = vcmask 1043456
          %v817 = vsel %vm815, %v779, 0
          %819 = vmatpush.bf16.msra.mxu0 0
          %820 = vmatpush.bf16.msra.mxu0 0
          %821 = vmatpush.bf16.msra.mxu0 0
          %822 = vmatpush.bf16.msra.mxu0 0
          %823 = vmatpush.bf16.msra.mxu0 0
          %824 = vmatpush.bf16.msra.mxu0 0
          %825 = vmatpush.bf16.msra.mxu0 0
          %826 = vmatpush.bf16.msra.mxu0 %v817
          %827 = vmatmul.bf16.gmra.mxu0 %v813
          %v828 = vpop.f32.mrf.mxu0
          %v829 = vadd.f32 0.0, %v828
          %v830 = vpop.f32.mrf.mxu0
          %831 = vdwg.mxu0
          %832 = vst.msk [vmem:[#allocation3] sm:$0xff] %vm780, %v829
          %v834 = vunpack.c.l.b16 %v711
          %v835 = vpack.c.b16 %v834, %v834
          %836 = vrot.lane.b32.xlu0 %v835, 120
          %v837 = vpop.permute.xlu0 %836
          %v839 = vunpack.c.l.b16 %v745
          %v840 = vpack.c.b16 %v839, %v839
          %841 = vrot.lane.b32.xlu0 %v840, 120
          %v842 = vpop.permute.xlu0 %841
          %v844 = vsel %vm780, %v837, 0
          %v847 = vsel %vm780, %v842, 0
          %849 = vmatpush.bf16.xpose.msra.mxu0 0
          %850 = vmatpush.bf16.xpose.msra.mxu0 0
          %851 = vmatpush.bf16.xpose.msra.mxu0 0
          %852 = vmatpush.bf16.xpose.msra.mxu0 0
          %853 = vmatpush.bf16.xpose.msra.mxu0 0
          %854 = vmatpush.bf16.xpose.msra.mxu0 0
          %855 = vmatpush.bf16.xpose.msra.mxu0 0
          %856 = vmatpush.bf16.xpose.msra.mxu0 %v847
          %857 = vmatmul.bf16.gmra.mxu0 %v844
          %v858 = vpop.f32.mrf.mxu0
          %v859 = vadd.f32 0.0, %v858
          %v860 = vpop.f32.mrf.mxu0
          %861 = vdwg.mxu0
          %v862 = vsel %vm780, %v859, -inf
          %863 = vmax.xlane.f32.xlu0 %v862
          %v864 = vpop.xlane.xlu0 %863
          %v865 = vsub.f32 %v859, %v864
          %v866 = vmul.f32 %v865, 1.442695
          %v867 = vpow.pop %v866
          %v868 = vsel %vm780, %v867, 0.0
          %869 = vadd.xlane.f32.xlu0 %v868
          %v870 = vpop.xlane.xlu0 %869
          %v871 = vrcp.pop %v870
          %v872 = vmul.f32 %v867, %v871
          %v873 = vpack.c.bf16 %v872, %v872
          %v875 = vunpack.c.l.b16 %v779
          %v876 = vpack.c.b16 %v875, %v875
          %877 = vrot.lane.b32.xlu0 %v876, 120
          %v878 = vpop.permute.xlu0 %877
          %v880 = vsel %vm780, %v873, 0
          %v883 = vsel %vm815, %v878, 0
          %885 = vmatpush.bf16.msra.mxu0 0
          %886 = vmatpush.bf16.msra.mxu0 0
          %887 = vmatpush.bf16.msra.mxu0 0
          %888 = vmatpush.bf16.msra.mxu0 0
          %889 = vmatpush.bf16.msra.mxu0 0
          %890 = vmatpush.bf16.msra.mxu0 0
          %891 = vmatpush.bf16.msra.mxu0 0
          %892 = vmatpush.bf16.msra.mxu0 %v883
          %893 = vmatmul.bf16.gmra.mxu0 %v880
          %v894 = vpop.f32.mrf.mxu0
          %v895 = vadd.f32 0.0, %v894
          %v896 = vpop.f32.mrf.mxu0
          %897 = vdwg.mxu0
          %899 = vrot.lane.b32.xlu0 %v895, 8
          %v900 = vpop.permute.xlu0 %899
          %vm902 = vcmask 130112
          %903 = vst.msk [vmem:[#allocation3] sm:$0xff] %vm902, %v900
          %904 = vrot.lane.b32.xlu0 %v835, 112
          %v905 = vpop.permute.xlu0 %904
          %906 = vrot.lane.b32.xlu0 %v840, 112
          %v907 = vpop.permute.xlu0 %906
          %v909 = vsel %vm780, %v905, 0
          %v912 = vsel %vm780, %v907, 0
          %914 = vmatpush.bf16.xpose.msra.mxu0 0
          %915 = vmatpush.bf16.xpose.msra.mxu0 0
          %916 = vmatpush.bf16.xpose.msra.mxu0 0
          %917 = vmatpush.bf16.xpose.msra.mxu0 0
          %918 = vmatpush.bf16.xpose.msra.mxu0 0
          %919 = vmatpush.bf16.xpose.msra.mxu0 0
          %920 = vmatpush.bf16.xpose.msra.mxu0 0
          %921 = vmatpush.bf16.xpose.msra.mxu0 %v912
          %922 = vmatmul.bf16.gmra.mxu0 %v909
          %v923 = vpop.f32.mrf.mxu0
          %v924 = vadd.f32 0.0, %v923
          %v925 = vpop.f32.mrf.mxu0
          %926 = vdwg.mxu0
          %v927 = vsel %vm780, %v924, -inf
          %928 = vmax.xlane.f32.xlu0 %v927
          %v929 = vpop.xlane.xlu0 %928
          %v930 = vsub.f32 %v924, %v929
          %v931 = vmul.f32 %v930, 1.442695
          %v932 = vpow.pop %v931
          %v933 = vsel %vm780, %v932, 0.0
          %934 = vadd.xlane.f32.xlu0 %v933
          %v935 = vpop.xlane.xlu0 %934
          %v936 = vrcp.pop %v935
          %v937 = vmul.f32 %v932, %v936
          %v938 = vpack.c.bf16 %v937, %v937
          %939 = vrot.lane.b32.xlu0 %v876, 112
          %v940 = vpop.permute.xlu0 %939
          %v942 = vsel %vm780, %v938, 0
          %v945 = vsel %vm815, %v940, 0
          %947 = vmatpush.bf16.msra.mxu0 0
          %948 = vmatpush.bf16.msra.mxu0 0
          %949 = vmatpush.bf16.msra.mxu0 0
          %950 = vmatpush.bf16.msra.mxu0 0
          %951 = vmatpush.bf16.msra.mxu0 0
          %952 = vmatpush.bf16.msra.mxu0 0
          %953 = vmatpush.bf16.msra.mxu0 0
          %954 = vmatpush.bf16.msra.mxu0 %v945
          %955 = vmatmul.bf16.gmra.mxu0 %v942
          %v956 = vpop.f32.mrf.mxu0
          %v957 = vadd.f32 0.0, %v956
          %v958 = vpop.f32.mrf.mxu0
          %959 = vdwg.mxu0
          %961 = vrot.lane.b32.xlu0 %v957, 16
          %v962 = vpop.permute.xlu0 %961
          %vm964 = vcmask 195712
          %965 = vst.msk [vmem:[#allocation3] sm:$0xff] %vm964, %v962
          %966 = vrot.lane.b32.xlu0 %v835, 104
          %v967 = vpop.permute.xlu0 %966
          %968 = vrot.lane.b32.xlu0 %v840, 104
          %v969 = vpop.permute.xlu0 %968
          %v971 = vsel %vm780, %v967, 0
          %v974 = vsel %vm780, %v969, 0
          %976 = vmatpush.bf16.xpose.msra.mxu0 0
          %977 = vmatpush.bf16.xpose.msra.mxu0 0
          %978 = vmatpush.bf16.xpose.msra.mxu0 0
          %979 = vmatpush.bf16.xpose.msra.mxu0 0
          %980 = vmatpush.bf16.xpose.msra.mxu0 0
          %981 = vmatpush.bf16.xpose.msra.mxu0 0
          %982 = vmatpush.bf16.xpose.msra.mxu0 0
          %983 = vmatpush.bf16.xpose.msra.mxu0 %v974
          %984 = vmatmul.bf16.gmra.mxu0 %v971
          %v985 = vpop.f32.mrf.mxu0
          %v986 = vadd.f32 0.0, %v985
          %v987 = vpop.f32.mrf.mxu0
          %988 = vdwg.mxu0
          %v989 = vsel %vm780, %v986, -inf
          %990 = vmax.xlane.f32.xlu0 %v989
          %v991 = vpop.xlane.xlu0 %990
          %v992 = vsub.f32 %v986, %v991
          %v993 = vmul.f32 %v992, 1.442695
          %v994 = vpow.pop %v993
          %v995 = vsel %vm780, %v994, 0.0
          %996 = vadd.xlane.f32.xlu0 %v995
          %v997 = vpop.xlane.xlu0 %996
          %v998 = vrcp.pop %v997
          %v999 = vmul.f32 %v994, %v998
          %v1000 = vpack.c.bf16 %v999, %v999
          %1001 = vrot.lane.b32.xlu0 %v876, 104
          %v1002 = vpop.permute.xlu0 %1001
          %v1004 = vsel %vm780, %v1000, 0
          %v1007 = vsel %vm815, %v1002, 0
          %1009 = vmatpush.bf16.msra.mxu0 0
          %1010 = vmatpush.bf16.msra.mxu0 0
          %1011 = vmatpush.bf16.msra.mxu0 0
          %1012 = vmatpush.bf16.msra.mxu0 0
          %1013 = vmatpush.bf16.msra.mxu0 0
          %1014 = vmatpush.bf16.msra.mxu0 0
          %1015 = vmatpush.bf16.msra.mxu0 0
          %1016 = vmatpush.bf16.msra.mxu0 %v1007
          %1017 = vmatmul.bf16.gmra.mxu0 %v1004
          %v1018 = vpop.f32.mrf.mxu0
          %v1019 = vadd.f32 0.0, %v1018
          %v1020 = vpop.f32.mrf.mxu0
          %1021 = vdwg.mxu0
          %1023 = vrot.lane.b32.xlu0 %v1019, 24
          %v1024 = vpop.permute.xlu0 %1023
          %vm1026 = vcmask 261312
          %1027 = vst.msk [vmem:[#allocation3] sm:$0xff] %vm1026, %v1024
          %v1028 = vld [vmem:[#allocation3] sm:$0xff]
          %v1029 = vpack.c.bf16 %v1028, %v1028
          %v1030 = vld [vmem:[%s7] sm:$0xf]
          %v1031 = vld [vmem:[%s7 + $0x4] sm:$0xf]
          %v1032 = vld [vmem:[%s7 + $0x8] sm:$0xf]
          %v1033 = vld [vmem:[%s7 + $0xc] sm:$0xf]
          %v1034 = vld [vmem:[#allocation7] sm:$0x1]
          %v1036 = vperm.slane %v1034, 0
          %v1042 = vunpack.c.l.b16 %v1030
          %v1043 = vunpack.c.l.b16 %v1031
          %v1044 = vunpack.c.l.b16 %v1032
          %v1045 = vunpack.c.l.b16 %v1033
          %v1046 = vpack.c.b16 %v1043, %v1042
          %v1047 = vpack.c.b16 %v1045, %v1044
          %v1051 = vsel %vm693, %v1029, 0
          %1053 = vmatpush.bf16.msra.mxu0 0
          %1054 = vmatpush.bf16.msra.mxu0 0
          %1055 = vmatpush.bf16.msra.mxu0 0
          %1056 = vmatpush.bf16.msra.mxu0 0
          %1057 = vmatpush.bf16.msra.mxu0 0
          %1058 = vmatpush.bf16.msra.mxu0 0
          %1059 = vmatpush.bf16.msra.mxu0 %v1047
          %1060 = vmatpush.bf16.msra.mxu0 %v1046
          %1061 = vmatmul.bf16.gmra.mxu0 %v1051
          %v1062 = vpop.f32.mrf.mxu0
          %v1063 = vadd.f32 %v1036, %v1062
          %v1064 = vpop.f32.mrf.mxu0
          %1065 = vdwg.mxu0
          %v1066 = vadd.f32 %v1063, %v671
          %v1067 = vld [vmem:[%s9] sm:$0x1]
          %v1068 = vld [vmem:[%s10] sm:$0x1]
          %v1069 = vsel %vm693, %v1066, 0.0
          %1070 = vadd.xlane.f32.xlu0 %v1069
          %v1071 = vpop.xlane.xlu0 %1070
          %v1072 = vrcp.pop 32.0
          %v1073 = vmul.f32 32.0, %v1072
          %v1074 = vsub.f32 1.0, %v1073
          %v1075 = vmul.f32 %v1072, %v1074
          %v1076 = vadd.f32 %v1072, %v1075
          %vm1077 = vweird.f32 %v1072
          %v1078 = vsel %vm1077, %v1072, %v1076
          %v1079 = vmul.f32 %v1071, %v1078
          %v1080 = vsub.f32 %v1066, %v1079
          %v1081 = vmul.f32 %v1080, %v1080
          %v1082 = vsel %vm693, %v1081, 0.0
          %1083 = vadd.xlane.f32.xlu0 %v1082
          %v1084 = vpop.xlane.xlu0 %1083
          %v1085 = vmul.f32 %v1084, %v1078
          %v1086 = vadd.f32 %v1085, 1e-05
          %v1087 = vrsqrt.pop %v1086
          %v1088 = vmul.f32 %v1087, %v1086
          %v1089 = vmul.f32 %v1088, %v1087
          %v1090 = vmul.f32 0.5, %v1089
          %v1091 = vsub.f32 1.5, %v1090
          %v1092 = vmul.f32 %v1087, %v1091
          %vm1093 = vweird.f32 %v1086
          %vm1094 = vweird.f32 %v1087
          %vm1095 = vmor %vm1093, %vm1094
          %v1096 = vsel %vm1095, %v1087, %v1092
          %v1097 = vmul.f32 %v1080, %v1096
          %v1099 = vperm.slane %v1067, 0
          %v1101 = vmul.f32 %v1097, %v1099
          %v1103 = vperm.slane %v1068, 0
          %v1105 = vadd.f32 %v1101, %v1103
          %1106 = vst.msk [vmem:[#allocation2] sm:$0xff] %vm693, %v1105
          %1107 = vst.msk [vmem:[#allocation4] sm:$0xff] %vm693, 0.0
        $region112: #{bert_encoder_forward.4} parent=87 // pred_fallthru
          _
        %v1108 = vld [vmem:[#allocation2] sm:$0xff]
        %v1109 = vpack.c.bf16 %v1108, %v1108
        %v1110 = vld [vmem:[#allocation9] sm:$0xf]
        %v1111 = vld [vmem:[#allocation9 + $0x4] sm:$0xf]
        %v1112 = vld [vmem:[#allocation9 + $0x8] sm:$0xf]
        %v1113 = vld [vmem:[#allocation9 + $0xc] sm:$0xf]
        %v1114 = vld [vmem:[#allocation10] sm:$0x1]
        %v1116 = vperm.slane %v1114, 0
        %v1122 = vunpack.c.l.b16 %v1110
        %v1123 = vunpack.c.l.b16 %v1111
        %v1124 = vunpack.c.l.b16 %v1112
        %v1125 = vunpack.c.l.b16 %v1113
        %v1126 = vpack.c.b16 %v1123, %v1122
        %v1127 = vpack.c.b16 %v1125, %v1124
        %vm1130 = vcmask 261120
        %v1132 = vsel %vm1130, %v1109, 0
        %1134 = vmatpush.bf16.msra.mxu0 0
        %1135 = vmatpush.bf16.msra.mxu0 0
        %1136 = vmatpush.bf16.msra.mxu0 0
        %1137 = vmatpush.bf16.msra.mxu0 0
        %1138 = vmatpush.bf16.msra.mxu0 0
        %1139 = vmatpush.bf16.msra.mxu0 0
        %1140 = vmatpush.bf16.msra.mxu0 %v1127
        %1141 = vmatpush.bf16.msra.mxu0 %v1126
        %1142 = vmatmul.bf16.gmra.mxu0 %v1132
        %v1143 = vpop.f32.mrf.mxu0
        %v1144 = vadd.f32 %v1116, %v1143
        %v1145 = vpop.f32.mrf.mxu0
        %1146 = vdwg.mxu0
        %v1147 = vmax.f32 %v1144, 0.0
        %v1148 = vpack.c.bf16 %v1147, %v1147
        %v1149 = vld [vmem:[#allocation4] sm:$0xff]
        %v1150 = vld [vmem:[%s660] sm:$0xf]
        %v1151 = vld [vmem:[%s660 + $0x4] sm:$0xf]
        %v1152 = vld [vmem:[%s660 + $0x8] sm:$0xf]
        %v1153 = vld [vmem:[%s660 + $0xc] sm:$0xf]
        %v1154 = vld [vmem:[%s660 + $0x10] sm:$0xf]
        %v1155 = vld [vmem:[%s660 + $0x14] sm:$0xf]
        %v1156 = vld [vmem:[%s660 + $0x18] sm:$0xf]
        %v1157 = vld [vmem:[%s660 + $0x1c] sm:$0xf]
        %v1166 = vunpack.c.l.b16 %v1150
        %v1167 = vunpack.c.l.b16 %v1151
        %v1168 = vunpack.c.l.b16 %v1152
        %v1169 = vunpack.c.l.b16 %v1153
        %v1170 = vunpack.c.l.b16 %v1154
        %v1171 = vunpack.c.l.b16 %v1155
        %v1172 = vunpack.c.l.b16 %v1156
        %v1173 = vunpack.c.l.b16 %v1157
        %v1174 = vpack.c.b16 %v1167, %v1166
        %v1175 = vpack.c.b16 %v1169, %v1168
        %v1176 = vpack.c.b16 %v1171, %v1170
        %v1177 = vpack.c.b16 %v1173, %v1172
        %vm1182 = vcmask 523264
        %v1184 = vsel %vm1182, %v1148, 0
        %1186 = vmatpush.bf16.msra.mxu0 0
        %1187 = vmatpush.bf16.msra.mxu0 0
        %1188 = vmatpush.bf16.msra.mxu0 0
        %1189 = vmatpush.bf16.msra.mxu0 0
        %1190 = vmatpush.bf16.msra.mxu0 %v1177
        %1191 = vmatpush.bf16.msra.mxu0 %v1176
        %1192 = vmatpush.bf16.msra.mxu0 %v1175
        %1193 = vmatpush.bf16.msra.mxu0 %v1174
        %1194 = vmatmul.bf16.gmra.mxu0 %v1184
        %v1195 = vpop.f32.mrf.mxu0
        %v1196 = vadd.f32 0.0, %v1195
        %v1197 = vpop.f32.mrf.mxu0
        %1198 = vdwg.mxu0
        %v1199 = vadd.f32 %v1149, %v1196
        %1200 = vst.msk [vmem:[#allocation4] sm:$0xff] %vm1130, %v1199
        // Predicated region
        $region113: #{bert_encoder_forward.4} parent=87 // pred_check
          %p1201 = pneg %p667
        $region114: #{bert_encoder_forward.4} parent=87 // pred_check_branch
          %1203 = sbr.rel (%p1201) target = $region116
        $region115: #{bert_encoder_forward.4} parent=87 // pred_region
          %v1204 = vld [vmem:[#allocation4] sm:$0xff]
          %v1205 = vld [vmem:[#allocation12] sm:$0x1]
          %v1207 = vperm.slane %v1205, 0
          %v1209 = vadd.f32 %v1204, %v1207
          %v1210 = vld [vmem:[#allocation2] sm:$0xff]
          %v1211 = vadd.f32 %v1209, %v1210
          %v1212 = vld [vmem:[%s15] sm:$0x1]
          %v1213 = vld [vmem:[%s16] sm:$0x1]
          %v1214 = vsel %vm1130, %v1211, 0.0
          %1215 = vadd.xlane.f32.xlu0 %v1214
          %v1216 = vpop.xlane.xlu0 %1215
          %v1217 = vrcp.pop 32.0
          %v1218 = vmul.f32 32.0, %v1217
          %v1219 = vsub.f32 1.0, %v1218
          %v1220 = vmul.f32 %v1217, %v1219
          %v1221 = vadd.f32 %v1217, %v1220
          %vm1222 = vweird.f32 %v1217
          %v1223 = vsel %vm1222, %v1217, %v1221
          %v1224 = vmul.f32 %v1216, %v1223
          %v1225 = vsub.f32 %v1211, %v1224
          %v1226 = vmul.f32 %v1225, %v1225
          %v1227 = vsel %vm1130, %v1226, 0.0
          %1228 = vadd.xlane.f32.xlu0 %v1227
          %v1229 = vpop.xlane.xlu0 %1228
          %v1230 = vmul.f32 %v1229, %v1223
          %v1231 = vadd.f32 %v1230, 1e-05
          %v1232 = vrsqrt.pop %v1231
          %v1233 = vmul.f32 %v1232, %v1231
          %v1234 = vmul.f32 %v1233, %v1232
          %v1235 = vmul.f32 0.5, %v1234
          %v1236 = vsub.f32 1.5, %v1235
          %v1237 = vmul.f32 %v1232, %v1236
          %vm1238 = vweird.f32 %v1231
          %vm1239 = vweird.f32 %v1232
          %vm1240 = vmor %vm1238, %vm1239
          %v1241 = vsel %vm1240, %v1232, %v1237
          %v1242 = vmul.f32 %v1225, %v1241
          %v1244 = vperm.slane %v1212, 0
          %v1246 = vmul.f32 %v1242, %v1244
          %v1248 = vperm.slane %v1213, 0
          %v1250 = vadd.f32 %v1246, %v1248
          %1251 = vst.msk [vmem:[%s665] sm:$0xff] %vm1130, %v1250
        $region116: #{bert_encoder_forward.4} parent=87 // pred_fallthru
          _
        %p1252 = scmp.lt.s32.totalorder %s35, 1
        %s1253 = scalar_select %p1252, %s35, 1
        %s1254 = smul.addr %s1253, 8
        %s1255 = scalar_lea.vmem %s17, %s1254
        // Predicated region
        $region117: #{bert_encoder_forward.4} parent=87 // pred_check
          %p1256 = pneg %p438
        $region118: #{bert_encoder_forward.4} parent=87 // pred_check_branch
          %1258 = sbr.rel (%p1256) target = $region120
        $region119: #{bert_encoder_forward.4} parent=87 // pred_region
          _
        $region120: #{bert_encoder_forward.4} parent=87 // pred_fallthru
          _
      $region88: #{bert_encoder_forward.4} parent=5 // pred_fallthru
        _
      %p1259 = scmp.le.s32.totalorder 2, %s26
      // Predicated region
      $region121: #{bert_encoder_forward.4} parent=5 // pred_check
        %p1260 = pneg %p1259
      $region122: #{bert_encoder_forward.4} parent=5 // pred_check_branch
        %1262 = sbr.rel (%p1260) target = $region124
      $region123: #{bert_encoder_forward.4} parent=5 // pred_region
        %s1263 = ssub.s32 %s26, 2
        // Predicated region
        $region125: #{bert_encoder_forward.4} parent=123 // pred_check
          %p1264 = pneg %p444
        $region126: #{bert_encoder_forward.4} parent=123 // pred_check_branch
          %1266 = sbr.rel (%p1264) target = $region128
        $region127: #{bert_encoder_forward.4} parent=123 // pred_region
          %p1267 = scmp.lt.s32.totalorder %s37, 1
          %s1268 = scalar_select %p1267, %s37, 1
          %s1269 = smul.addr %s1268, 8
          %s1270 = scalar_lea.vmem %s17, %s1269
        $region128: #{bert_encoder_forward.4} parent=123 // pred_fallthru
          _
      $region124: #{bert_encoder_forward.4} parent=5 // pred_fallthru
        _
    $region6: #{bert_encoder_forward.4} parent=1 // loop_footer
      %s30 = sadd.s32 1, %s26
    $region7: #{bert_encoder_forward.4} parent=1 // loop_footer_branch
      %25 = sbr.rel target = $region3
    $region8: #{bert_encoder_forward.4} parent=1 // loop_exit
      _
    %1271 = vsyncpa [#allocation6], 1
    %s1272 = scalar_lea.sflag [#allocation6], 1
    %1273 = vsyncpa %s1272, 1
    %1274 = vsyncpa [#allocation8], 1
    %1275 = vsyncpa [#allocation11], 1

// kernel: bert_encoder_forward.3
$region0: #{bert_encoder_forward.3}
  #allocation0 [shape = 'u32[]', space=smem, size = 0x4, offset = 0x4, fixed_abs, tag = 'smem constant byte address 0x4 - core index']
  #allocation1 [shape = 'u32[72,128]{1,0:T(1,128)}', space=vmem, size = 0x9000, scoped, tag = 'internal scratch']
  #allocation2 [shape = 'f32[8,32]{1,0:T(8,128)}', space=vmem, size = 0x1000, scoped, tag = 'scratch operand']
  #allocation3 [shape = 'f32[8,32]{1,0:T(8,128)}', space=vmem, size = 0x1000, scoped, tag = 'scratch operand']
  #allocation4 [shape = 'f32[8,32]{1,0:T(8,128)}', space=vmem, size = 0x1000, scoped, tag = 'scratch operand']
  %s0 = inlined_call_operand.vmem [shape: f32[2,8,32], index: 0, kind: input, shape index: {}, may-alias: {0,17}]
  %s1 = inlined_call_operand.vmem [shape: bf16[32,32], index: 1, kind: input, shape index: {}]
  %s2 = inlined_call_operand.vmem [shape: f32[1,32], index: 2, kind: input, shape index: {}]
  %s3 = inlined_call_operand.vmem [shape: bf16[32,32], index: 3, kind: input, shape index: {}]
  %s4 = inlined_call_operand.hbm [shape: f32[1,32], index: 4, kind: input, shape index: {}]
  %s5 = inlined_call_operand.hbm [shape: bf16[32,32], index: 5, kind: input, shape index: {}]
  %s6 = inlined_call_operand.hbm [shape: f32[1,32], index: 6, kind: input, shape index: {}]
  %s7 = inlined_call_operand.hbm [shape: bf16[32,32], index: 7, kind: input, shape index: {}]
  %s8 = inlined_call_operand.hbm [shape: f32[1,32], index: 8, kind: input, shape index: {}]
  %s9 = inlined_call_operand.hbm [shape: f32[1,32], index: 9, kind: input, shape index: {}]
  %s10 = inlined_call_operand.hbm [shape: f32[1,32], index: 10, kind: input, shape index: {}]
  %s11 = inlined_call_operand.hbm [shape: bf16[32,64], index: 11, kind: input, shape index: {}]
  %s12 = inlined_call_operand.hbm [shape: f32[1,64], index: 12, kind: input, shape index: {}]
  %s13 = inlined_call_operand.vmem [shape: bf16[64,32], index: 13, kind: input, shape index: {}]
  %s14 = inlined_call_operand.hbm [shape: f32[1,32], index: 14, kind: input, shape index: {}]
  %s15 = inlined_call_operand.hbm [shape: f32[1,32], index: 15, kind: input, shape index: {}]
  %s16 = inlined_call_operand.hbm [shape: f32[1,32], index: 16, kind: input, shape index: {}]
  %s17 = inlined_call_operand.vmem [shape: f32[2,8,32], index: 17, kind: output, shape index: {}, may-alias: {0,17}]
  %s18 = sld [smem:[#allocation0]]
  $region157: #{bert_encoder_forward.3} parent=0
    _
  %s20 = ssub.s32 1, %s18
  %s21 = scalar_select 0, %s20, %s18
  $region1: #{bert_encoder_forward.3} parent=0
    #allocation5 [shape = 'u8[512]{0}', space=vmem, size = 0x400, scoped, tag = 'input window, operand 4, single buffered']
    #allocation6 [shape = 's32[2]{0}', space=sflag, size = 0x8, scoped, tag = 'scoped memory for bert_encoder_forward.3']
    #allocation7 [shape = 'u8[8192]{0}', space=vmem, size = 0x2000, scoped, tag = 'input window, operand 5, single buffered']
    #allocation8 [shape = 's32[1]{0}', space=sflag, size = 0x4, scoped, tag = 'scoped memory for bert_encoder_forward.3']
    #allocation9 [shape = 'u8[512]{0}', space=vmem, size = 0x400, scoped, tag = 'input window, operand 6, single buffered']
    #allocation10 [shape = 'u8[8192]{0}', space=vmem, size = 0x2000, scoped, tag = 'input window, operand 7, single buffered']
    #allocation11 [shape = 's32[1]{0}', space=sflag, size = 0x4, scoped, tag = 'scoped memory for bert_encoder_forward.3']
    #allocation12 [shape = 'u8[512]{0}', space=vmem, size = 0x400, scoped, tag = 'input window, operand 8, single buffered']
    #allocation13 [shape = 'u8[512]{0}', space=vmem, size = 0x400, scoped, tag = 'input window, operand 9, single buffered']
    #allocation14 [shape = 's32[1]{0}', space=sflag, size = 0x4, scoped, tag = 'scoped memory for bert_encoder_forward.3']
    #allocation15 [shape = 'u8[512]{0}', space=vmem, size = 0x400, scoped, tag = 'input window, operand 10, single buffered']
    #allocation16 [shape = 'u8[8192]{0}', space=vmem, size = 0x2000, scoped, tag = 'input window, operand 11, single buffered']
    #allocation17 [shape = 's32[1]{0}', space=sflag, size = 0x4, scoped, tag = 'scoped memory for bert_encoder_forward.3']
    #allocation18 [shape = 'u8[512]{0}', space=vmem, size = 0x400, scoped, tag = 'input window, operand 12, single buffered']
    #allocation19 [shape = 'u8[512]{0}', space=vmem, size = 0x400, scoped, tag = 'input window, operand 14, single buffered']
    #allocation20 [shape = 's32[1]{0}', space=sflag, size = 0x4, scoped, tag = 'scoped memory for bert_encoder_forward.3']
    #allocation21 [shape = 'u8[512]{0}', space=vmem, size = 0x400, scoped, tag = 'input window, operand 15, single buffered']
    #allocation22 [shape = 'u8[512]{0}', space=vmem, size = 0x400, scoped, tag = 'input window, operand 16, single buffered']
    #allocation23 [shape = 's32[1]{0}', space=sflag, size = 0x4, scoped, tag = 'scoped memory for bert_encoder_forward.3']
    %22 = vsyncpa [#allocation6], 0
    %23 = vsyncpa [#allocation8], 0
    %24 = vsyncpa [#allocation11], 0
    %25 = vsyncpa [#allocation14], 0
    %26 = vsyncpa [#allocation17], 0
    %27 = vsyncpa [#allocation20], 0
    %28 = vsyncpa [#allocation23], 0
    loop: start=0, step=1, limit=4
    $region2: #{bert_encoder_forward.3} parent=1 // loop_pre_header
      _
    $region3: #{bert_encoder_forward.3} parent=1 // loop_header
      %s30 = sphi 0, %s34
      %p31 = scmp.ge.s32.totalorder %s30, 4
      %s37 = sphi 0, %s49
      %s38 = sphi 0, %s45
      %s39 = sphi 0, %s37
      %s40 = sphi 0, %s38
      %s41 = sphi 0, %s39
      %s42 = sphi 0, %s40
      %s52 = sphi 0, %s54
      %s55 = sphi 0, %s52
      %s56 = sphi 0, %s55
      %s72 = sphi 0, %s56
      %s76 = sphi 0, %s76
      %s78 = sphi 0, %s76
      %s79 = sphi 0, %s78
      %s93 = sphi 0, %s79
      %s97 = sphi 0, %s97
      %s99 = sphi 0, %s97
      %s100 = sphi 0, %s99
      %s114 = sphi 0, %s100
      %s118 = sphi 0, %s118
      %s120 = sphi 0, %s118
      %s121 = sphi 0, %s120
      %s135 = sphi 0, %s121
      %s139 = sphi 0, %s139
      %s141 = sphi 0, %s139
      %s142 = sphi 0, %s141
      %s156 = sphi 0, %s142
      %s160 = sphi 0, %s160
      %s162 = sphi 0, %s160
      %s163 = sphi 0, %s162
      %s177 = sphi 0, %s163
      %s181 = sphi 0, %s181
      %s183 = sphi 0, %s181
      %s184 = sphi 0, %s183
      %s198 = sphi 0, %s184
      %s202 = sphi 0, %s202
      %s204 = sphi 0, %s202
      %s205 = sphi 0, %s204
      %s219 = sphi 0, %s205
      %s223 = sphi 0, %s223
      %s225 = sphi 0, %s223
      %s226 = sphi 0, %s225
      %s240 = sphi 0, %s226
      %s244 = sphi 0, %s244
      %s246 = sphi 0, %s244
      %s247 = sphi 0, %s246
      %s261 = sphi 0, %s247
      %s265 = sphi 0, %s265
      %s267 = sphi 0, %s265
      %s268 = sphi 0, %s267
      %s282 = sphi 0, %s268
      %s288 = sphi 0, %s290
      %s291 = sphi 0, %s288
      %s292 = sphi 0, %s291
      %s308 = sphi 0, %s292
      %s314 = sphi 0, %s316
      %s317 = sphi 0, %s314
      %s318 = sphi 0, %s317
      %s334 = sphi 0, %s318
      %s340 = sphi 0, %s342
      %s343 = sphi 0, %s340
      %s344 = sphi 0, %s343
      %s360 = sphi 0, %s344
      %s364 = sphi 0, %s364
      %s366 = sphi 0, %s364
      %s367 = sphi 0, %s366
      %s381 = sphi 0, %s367
      %s385 = sphi 0, %s385
      %s387 = sphi 0, %s385
      %s388 = sphi 0, %s387
      %s402 = sphi 0, %s388
      %s406 = sphi 0, %s406
      %s408 = sphi 0, %s406
      %s409 = sphi 0, %s408
      %s423 = sphi 0, %s409
      %s429 = sphi 0, %s431
      %s432 = sphi 0, %s429
      %s433 = sphi 0, %s432
      %s449 = sphi 0, %s433
    $region4: #{bert_encoder_forward.3} parent=1 // loop_header_branch
      %33 = sbr.rel (%p31) target = $region8
    $region5: #{bert_encoder_forward.3} parent=1 // loop_body
      %s35 = ssub.s32 %s30, 1
      %s36 = ssub.s32 %s30, 2
      %s43 = sadd.s32 1, %s38
      %p44 = scmp.ge.s32.totalorder %s43, 1
      %s45 = scalar_select %p44, 0, %s43
      %s46 = sadd.s32 1, %s37
      %s47 = scalar_select %p44, %s46, %s37
      %p48 = scmp.ge.s32.totalorder %s47, 2
      %s49 = scalar_select %p48, 0, %s47
      %s50 = ssub.s32 %s37, %s49
      %p51 = scmp.eq.s32.totalorder %s50, 0
      %s53 = sadd.s32 %s52, 1
      %s54 = scalar_select %p51, %s52, %s53
      %p57 = pneg %p51
      %p58 = scmp.eq.s32.totalorder %s30, 1
      %p59 = por %p57, %p58
      %p60 = scmp.ne.s32.totalorder %s52, %s55
      %p61 = scmp.eq.s32.totalorder %s30, 0
      %p62 = por %p60, %p61
      %p63 = scmp.ne.s32.totalorder %s52, %s55
      %p64 = scmp.eq.s32.totalorder %s35, 1
      %p65 = por %p63, %p64
      %p66 = scmp.ne.s32.totalorder %s55, %s56
      %p67 = scmp.eq.s32.totalorder %s35, 0
      %p68 = por %p66, %p67
      %p69 = scmp.ne.s32.totalorder %s55, %s56
      %p70 = scmp.eq.s32.totalorder %s36, 1
      %p71 = por %p69, %p70
      %p73 = scmp.ne.s32.totalorder %s56, %s72
      %p74 = scmp.eq.s32.totalorder %s36, 0
      %p75 = por %p73, %p74
      %s77 = sadd.s32 %s76, 1
      %p80 = scmp.eq.s32.totalorder %s30, 1
      %p81 = scmp.ne.s32.totalorder %s76, %s78
      %p82 = scmp.eq.s32.totalorder %s30, 0
      %p83 = por %p81, %p82
      %p84 = scmp.ne.s32.totalorder %s76, %s78
      %p85 = scmp.eq.s32.totalorder %s35, 1
      %p86 = por %p84, %p85
      %p87 = scmp.ne.s32.totalorder %s78, %s79
      %p88 = scmp.eq.s32.totalorder %s35, 0
      %p89 = por %p87, %p88
      %p90 = scmp.ne.s32.totalorder %s78, %s79
      %p91 = scmp.eq.s32.totalorder %s36, 1
      %p92 = por %p90, %p91
      %p94 = scmp.ne.s32.totalorder %s79, %s93
      %p95 = scmp.eq.s32.totalorder %s36, 0
      %p96 = por %p94, %p95
      %s98 = sadd.s32 %s97, 1
      %p101 = scmp.eq.s32.totalorder %s30, 1
      %p102 = scmp.ne.s32.totalorder %s97, %s99
      %p103 = scmp.eq.s32.totalorder %s30, 0
      %p104 = por %p102, %p103
      %p105 = scmp.ne.s32.totalorder %s97, %s99
      %p106 = scmp.eq.s32.totalorder %s35, 1
      %p107 = por %p105, %p106
      %p108 = scmp.ne.s32.totalorder %s99, %s100
      %p109 = scmp.eq.s32.totalorder %s35, 0
      %p110 = por %p108, %p109
      %p111 = scmp.ne.s32.totalorder %s99, %s100
      %p112 = scmp.eq.s32.totalorder %s36, 1
      %p113 = por %p111, %p112
      %p115 = scmp.ne.s32.totalorder %s100, %s114
      %p116 = scmp.eq.s32.totalorder %s36, 0
      %p117 = por %p115, %p116
      %s119 = sadd.s32 %s118, 1
      %p122 = scmp.eq.s32.totalorder %s30, 1
      %p123 = scmp.ne.s32.totalorder %s118, %s120
      %p124 = scmp.eq.s32.totalorder %s30, 0
      %p125 = por %p123, %p124
      %p126 = scmp.ne.s32.totalorder %s118, %s120
      %p127 = scmp.eq.s32.totalorder %s35, 1
      %p128 = por %p126, %p127
      %p129 = scmp.ne.s32.totalorder %s120, %s121
      %p130 = scmp.eq.s32.totalorder %s35, 0
      %p131 = por %p129, %p130
      %p132 = scmp.ne.s32.totalorder %s120, %s121
      %p133 = scmp.eq.s32.totalorder %s36, 1
      %p134 = por %p132, %p133
      %p136 = scmp.ne.s32.totalorder %s121, %s135
      %p137 = scmp.eq.s32.totalorder %s36, 0
      %p138 = por %p136, %p137
      %s140 = sadd.s32 %s139, 1
      %p143 = scmp.eq.s32.totalorder %s30, 1
      %p144 = scmp.ne.s32.totalorder %s139, %s141
      %p145 = scmp.eq.s32.totalorder %s30, 0
      %p146 = por %p144, %p145
      %p147 = scmp.ne.s32.totalorder %s139, %s141
      %p148 = scmp.eq.s32.totalorder %s35, 1
      %p149 = por %p147, %p148
      %p150 = scmp.ne.s32.totalorder %s141, %s142
      %p151 = scmp.eq.s32.totalorder %s35, 0
      %p152 = por %p150, %p151
      %p153 = scmp.ne.s32.totalorder %s141, %s142
      %p154 = scmp.eq.s32.totalorder %s36, 1
      %p155 = por %p153, %p154
      %p157 = scmp.ne.s32.totalorder %s142, %s156
      %p158 = scmp.eq.s32.totalorder %s36, 0
      %p159 = por %p157, %p158
      %s161 = sadd.s32 %s160, 1
      %p164 = scmp.eq.s32.totalorder %s30, 1
      %p165 = scmp.ne.s32.totalorder %s160, %s162
      %p166 = scmp.eq.s32.totalorder %s30, 0
      %p167 = por %p165, %p166
      %p168 = scmp.ne.s32.totalorder %s160, %s162
      %p169 = scmp.eq.s32.totalorder %s35, 1
      %p170 = por %p168, %p169
      %p171 = scmp.ne.s32.totalorder %s162, %s163
      %p172 = scmp.eq.s32.totalorder %s35, 0
      %p173 = por %p171, %p172
      %p174 = scmp.ne.s32.totalorder %s162, %s163
      %p175 = scmp.eq.s32.totalorder %s36, 1
      %p176 = por %p174, %p175
      %p178 = scmp.ne.s32.totalorder %s163, %s177
      %p179 = scmp.eq.s32.totalorder %s36, 0
      %p180 = por %p178, %p179
      %s182 = sadd.s32 %s181, 1
      %p185 = scmp.eq.s32.totalorder %s30, 1
      %p186 = scmp.ne.s32.totalorder %s181, %s183
      %p187 = scmp.eq.s32.totalorder %s30, 0
      %p188 = por %p186, %p187
      %p189 = scmp.ne.s32.totalorder %s181, %s183
      %p190 = scmp.eq.s32.totalorder %s35, 1
      %p191 = por %p189, %p190
      %p192 = scmp.ne.s32.totalorder %s183, %s184
      %p193 = scmp.eq.s32.totalorder %s35, 0
      %p194 = por %p192, %p193
      %p195 = scmp.ne.s32.totalorder %s183, %s184
      %p196 = scmp.eq.s32.totalorder %s36, 1
      %p197 = por %p195, %p196
      %p199 = scmp.ne.s32.totalorder %s184, %s198
      %p200 = scmp.eq.s32.totalorder %s36, 0
      %p201 = por %p199, %p200
      %s203 = sadd.s32 %s202, 1
      %p206 = scmp.eq.s32.totalorder %s30, 1
      %p207 = scmp.ne.s32.totalorder %s202, %s204
      %p208 = scmp.eq.s32.totalorder %s30, 0
      %p209 = por %p207, %p208
      %p210 = scmp.ne.s32.totalorder %s202, %s204
      %p211 = scmp.eq.s32.totalorder %s35, 1
      %p212 = por %p210, %p211
      %p213 = scmp.ne.s32.totalorder %s204, %s205
      %p214 = scmp.eq.s32.totalorder %s35, 0
      %p215 = por %p213, %p214
      %p216 = scmp.ne.s32.totalorder %s204, %s205
      %p217 = scmp.eq.s32.totalorder %s36, 1
      %p218 = por %p216, %p217
      %p220 = scmp.ne.s32.totalorder %s205, %s219
      %p221 = scmp.eq.s32.totalorder %s36, 0
      %p222 = por %p220, %p221
      %s224 = sadd.s32 %s223, 1
      %p227 = scmp.eq.s32.totalorder %s30, 1
      %p228 = scmp.ne.s32.totalorder %s223, %s225
      %p229 = scmp.eq.s32.totalorder %s30, 0
      %p230 = por %p228, %p229
      %p231 = scmp.ne.s32.totalorder %s223, %s225
      %p232 = scmp.eq.s32.totalorder %s35, 1
      %p233 = por %p231, %p232
      %p234 = scmp.ne.s32.totalorder %s225, %s226
      %p235 = scmp.eq.s32.totalorder %s35, 0
      %p236 = por %p234, %p235
      %p237 = scmp.ne.s32.totalorder %s225, %s226
      %p238 = scmp.eq.s32.totalorder %s36, 1
      %p239 = por %p237, %p238
      %p241 = scmp.ne.s32.totalorder %s226, %s240
      %p242 = scmp.eq.s32.totalorder %s36, 0
      %p243 = por %p241, %p242
      %s245 = sadd.s32 %s244, 1
      %p248 = scmp.eq.s32.totalorder %s30, 1
      %p249 = scmp.ne.s32.totalorder %s244, %s246
      %p250 = scmp.eq.s32.totalorder %s30, 0
      %p251 = por %p249, %p250
      %p252 = scmp.ne.s32.totalorder %s244, %s246
      %p253 = scmp.eq.s32.totalorder %s35, 1
      %p254 = por %p252, %p253
      %p255 = scmp.ne.s32.totalorder %s246, %s247
      %p256 = scmp.eq.s32.totalorder %s35, 0
      %p257 = por %p255, %p256
      %p258 = scmp.ne.s32.totalorder %s246, %s247
      %p259 = scmp.eq.s32.totalorder %s36, 1
      %p260 = por %p258, %p259
      %p262 = scmp.ne.s32.totalorder %s247, %s261
      %p263 = scmp.eq.s32.totalorder %s36, 0
      %p264 = por %p262, %p263
      %s266 = sadd.s32 %s265, 1
      %p269 = scmp.eq.s32.totalorder %s30, 1
      %p270 = scmp.ne.s32.totalorder %s265, %s267
      %p271 = scmp.eq.s32.totalorder %s30, 0
      %p272 = por %p270, %p271
      %p273 = scmp.ne.s32.totalorder %s265, %s267
      %p274 = scmp.eq.s32.totalorder %s35, 1
      %p275 = por %p273, %p274
      %p276 = scmp.ne.s32.totalorder %s267, %s268
      %p277 = scmp.eq.s32.totalorder %s35, 0
      %p278 = por %p276, %p277
      %p279 = scmp.ne.s32.totalorder %s267, %s268
      %p280 = scmp.eq.s32.totalorder %s36, 1
      %p281 = por %p279, %p280
      %p283 = scmp.ne.s32.totalorder %s268, %s282
      %p284 = scmp.eq.s32.totalorder %s36, 0
      %p285 = por %p283, %p284
      %s286 = ssub.s32 %s38, %s45
      %p287 = scmp.eq.s32.totalorder %s286, 0
      %s289 = sadd.s32 %s288, 1
      %s290 = scalar_select %p287, %s288, %s289
      %p293 = pneg %p287
      %p294 = scmp.eq.s32.totalorder %s30, 1
      %p295 = por %p293, %p294
      %p296 = scmp.ne.s32.totalorder %s288, %s291
      %p297 = scmp.eq.s32.totalorder %s30, 0
      %p298 = por %p296, %p297
      %p299 = scmp.ne.s32.totalorder %s288, %s291
      %p300 = scmp.eq.s32.totalorder %s35, 1
      %p301 = por %p299, %p300
      %p302 = scmp.ne.s32.totalorder %s291, %s292
      %p303 = scmp.eq.s32.totalorder %s35, 0
      %p304 = por %p302, %p303
      %p305 = scmp.ne.s32.totalorder %s291, %s292
      %p306 = scmp.eq.s32.totalorder %s36, 1
      %p307 = por %p305, %p306
      %p309 = scmp.ne.s32.totalorder %s292, %s308
      %p310 = scmp.eq.s32.totalorder %s36, 0
      %p311 = por %p309, %p310
      %s312 = ssub.s32 %s38, %s45
      %p313 = scmp.eq.s32.totalorder %s312, 0
      %s315 = sadd.s32 %s314, 1
      %s316 = scalar_select %p313, %s314, %s315
      %p319 = pneg %p313
      %p320 = scmp.eq.s32.totalorder %s30, 1
      %p321 = por %p319, %p320
      %p322 = scmp.ne.s32.totalorder %s314, %s317
      %p323 = scmp.eq.s32.totalorder %s30, 0
      %p324 = por %p322, %p323
      %p325 = scmp.ne.s32.totalorder %s314, %s317
      %p326 = scmp.eq.s32.totalorder %s35, 1
      %p327 = por %p325, %p326
      %p328 = scmp.ne.s32.totalorder %s317, %s318
      %p329 = scmp.eq.s32.totalorder %s35, 0
      %p330 = por %p328, %p329
      %p331 = scmp.ne.s32.totalorder %s317, %s318
      %p332 = scmp.eq.s32.totalorder %s36, 1
      %p333 = por %p331, %p332
      %p335 = scmp.ne.s32.totalorder %s318, %s334
      %p336 = scmp.eq.s32.totalorder %s36, 0
      %p337 = por %p335, %p336
      %s338 = ssub.s32 %s38, %s45
      %p339 = scmp.eq.s32.totalorder %s338, 0
      %s341 = sadd.s32 %s340, 1
      %s342 = scalar_select %p339, %s340, %s341
      %p345 = pneg %p339
      %p346 = scmp.eq.s32.totalorder %s30, 1
      %p347 = por %p345, %p346
      %p348 = scmp.ne.s32.totalorder %s340, %s343
      %p349 = scmp.eq.s32.totalorder %s30, 0
      %p350 = por %p348, %p349
      %p351 = scmp.ne.s32.totalorder %s340, %s343
      %p352 = scmp.eq.s32.totalorder %s35, 1
      %p353 = por %p351, %p352
      %p354 = scmp.ne.s32.totalorder %s343, %s344
      %p355 = scmp.eq.s32.totalorder %s35, 0
      %p356 = por %p354, %p355
      %p357 = scmp.ne.s32.totalorder %s343, %s344
      %p358 = scmp.eq.s32.totalorder %s36, 1
      %p359 = por %p357, %p358
      %p361 = scmp.ne.s32.totalorder %s344, %s360
      %p362 = scmp.eq.s32.totalorder %s36, 0
      %p363 = por %p361, %p362
      %s365 = sadd.s32 %s364, 1
      %p368 = scmp.eq.s32.totalorder %s30, 1
      %p369 = scmp.ne.s32.totalorder %s364, %s366
      %p370 = scmp.eq.s32.totalorder %s30, 0
      %p371 = por %p369, %p370
      %p372 = scmp.ne.s32.totalorder %s364, %s366
      %p373 = scmp.eq.s32.totalorder %s35, 1
      %p374 = por %p372, %p373
      %p375 = scmp.ne.s32.totalorder %s366, %s367
      %p376 = scmp.eq.s32.totalorder %s35, 0
      %p377 = por %p375, %p376
      %p378 = scmp.ne.s32.totalorder %s366, %s367
      %p379 = scmp.eq.s32.totalorder %s36, 1
      %p380 = por %p378, %p379
      %p382 = scmp.ne.s32.totalorder %s367, %s381
      %p383 = scmp.eq.s32.totalorder %s36, 0
      %p384 = por %p382, %p383
      %s386 = sadd.s32 %s385, 1
      %p389 = scmp.eq.s32.totalorder %s30, 1
      %p390 = scmp.ne.s32.totalorder %s385, %s387
      %p391 = scmp.eq.s32.totalorder %s30, 0
      %p392 = por %p390, %p391
      %p393 = scmp.ne.s32.totalorder %s385, %s387
      %p394 = scmp.eq.s32.totalorder %s35, 1
      %p395 = por %p393, %p394
      %p396 = scmp.ne.s32.totalorder %s387, %s388
      %p397 = scmp.eq.s32.totalorder %s35, 0
      %p398 = por %p396, %p397
      %p399 = scmp.ne.s32.totalorder %s387, %s388
      %p400 = scmp.eq.s32.totalorder %s36, 1
      %p401 = por %p399, %p400
      %p403 = scmp.ne.s32.totalorder %s388, %s402
      %p404 = scmp.eq.s32.totalorder %s36, 0
      %p405 = por %p403, %p404
      %s407 = sadd.s32 %s406, 1
      %p410 = scmp.eq.s32.totalorder %s30, 1
      %p411 = scmp.ne.s32.totalorder %s406, %s408
      %p412 = scmp.eq.s32.totalorder %s30, 0
      %p413 = por %p411, %p412
      %p414 = scmp.ne.s32.totalorder %s406, %s408
      %p415 = scmp.eq.s32.totalorder %s35, 1
      %p416 = por %p414, %p415
      %p417 = scmp.ne.s32.totalorder %s408, %s409
      %p418 = scmp.eq.s32.totalorder %s35, 0
      %p419 = por %p417, %p418
      %p420 = scmp.ne.s32.totalorder %s408, %s409
      %p421 = scmp.eq.s32.totalorder %s36, 1
      %p422 = por %p420, %p421
      %p424 = scmp.ne.s32.totalorder %s409, %s423
      %p425 = scmp.eq.s32.totalorder %s36, 0
      %p426 = por %p424, %p425
      %s427 = ssub.s32 %s37, %s49
      %p428 = scmp.eq.s32.totalorder %s427, 0
      %s430 = sadd.s32 %s429, 1
      %s431 = scalar_select %p428, %s429, %s430
      %p434 = pneg %p428
      %p435 = scmp.eq.s32.totalorder %s30, 1
      %p436 = por %p434, %p435
      %p437 = scmp.ne.s32.totalorder %s429, %s432
      %p438 = scmp.eq.s32.totalorder %s30, 0
      %p439 = por %p437, %p438
      %p440 = scmp.ne.s32.totalorder %s429, %s432
      %p441 = scmp.eq.s32.totalorder %s35, 1
      %p442 = por %p440, %p441
      %p443 = scmp.ne.s32.totalorder %s432, %s433
      %p444 = scmp.eq.s32.totalorder %s35, 0
      %p445 = por %p443, %p444
      %p446 = scmp.ne.s32.totalorder %s432, %s433
      %p447 = scmp.eq.s32.totalorder %s36, 1
      %p448 = por %p446, %p447
      %p450 = scmp.ne.s32.totalorder %s433, %s449
      %p451 = scmp.eq.s32.totalorder %s36, 0
      %p452 = por %p450, %p451
      %p453 = scmp.le.s32.totalorder 1, %s30
      %p454 = scmp.lt.s32.totalorder %s30, 3
      %p455 = pnand %p453, %p454
      %p456 = pneg %p455
      // Predicated region
      $region9: #{bert_encoder_forward.3} parent=5 // pred_check
        _
      $region10: #{bert_encoder_forward.3} parent=5 // pred_check_branch
        %458 = sbr.rel (%p455) target = $region12
      $region11: #{bert_encoder_forward.3} parent=5 // pred_region
        %s459 = ssub.s32 %s30, 1
        // Predicated region
        $region13: #{bert_encoder_forward.3} parent=11 // pred_check
          %p460 = pneg %p89
        $region14: #{bert_encoder_forward.3} parent=11 // pred_check_branch
          %462 = sbr.rel (%p460) target = $region16
        $region15: #{bert_encoder_forward.3} parent=11 // pred_region
          _
        $region16: #{bert_encoder_forward.3} parent=11 // pred_fallthru
          _
        // Predicated region
        $region17: #{bert_encoder_forward.3} parent=11 // pred_check
          %p463 = pneg %p110
        $region18: #{bert_encoder_forward.3} parent=11 // pred_check_branch
          %465 = sbr.rel (%p463) target = $region20
        $region19: #{bert_encoder_forward.3} parent=11 // pred_region
          _
        $region20: #{bert_encoder_forward.3} parent=11 // pred_fallthru
          _
        // Predicated region
        $region21: #{bert_encoder_forward.3} parent=11 // pred_check
          %p466 = pneg %p131
        $region22: #{bert_encoder_forward.3} parent=11 // pred_check_branch
          %468 = sbr.rel (%p466) target = $region24
        $region23: #{bert_encoder_forward.3} parent=11 // pred_region
          _
        $region24: #{bert_encoder_forward.3} parent=11 // pred_fallthru
          _
        // Predicated region
        $region25: #{bert_encoder_forward.3} parent=11 // pred_check
          %p469 = pneg %p152
        $region26: #{bert_encoder_forward.3} parent=11 // pred_check_branch
          %471 = sbr.rel (%p469) target = $region28
        $region27: #{bert_encoder_forward.3} parent=11 // pred_region
          %473 = vsyncadd [#allocation6], 0
          %s475 = sshll.u32 %s4, 4
          %s476 = int_to_ptr.hbm [resolvable:$true] %s475
          %s477 = sshll.u32 [#allocation5], 4
          %s478 = int_to_ptr.vmem [resolvable:$true] %s477
          %480 = dma.hbm_to_vmem [thread:$0]  %s476, 16, %s478, [#allocation6]
        $region28: #{bert_encoder_forward.3} parent=11 // pred_fallthru
          _
        // Predicated region
        $region29: #{bert_encoder_forward.3} parent=11 // pred_check
          %p481 = pneg %p173
        $region30: #{bert_encoder_forward.3} parent=11 // pred_check_branch
          %483 = sbr.rel (%p481) target = $region32
        $region31: #{bert_encoder_forward.3} parent=11 // pred_region
          %485 = vsyncadd [#allocation8], 0
          %s486 = sshll.u32 %s5, 4
          %s487 = int_to_ptr.hbm [resolvable:$true] %s486
          %s488 = sshll.u32 [#allocation7], 4
          %s489 = int_to_ptr.vmem [resolvable:$true] %s488
          %494 = dma.hbm_to_vmem [thread:$0]  %s487, 256, %s489, [#allocation8], 64, 64, 4
        $region32: #{bert_encoder_forward.3} parent=11 // pred_fallthru
          _
        // Predicated region
        $region33: #{bert_encoder_forward.3} parent=11 // pred_check
          %p495 = pneg %p194
        $region34: #{bert_encoder_forward.3} parent=11 // pred_check_branch
          %497 = sbr.rel (%p495) target = $region36
        $region35: #{bert_encoder_forward.3} parent=11 // pred_region
          %499 = vsyncadd [#allocation8], 0
          %s501 = sshll.u32 %s6, 4
          %s502 = int_to_ptr.hbm [resolvable:$true] %s501
          %s503 = sshll.u32 [#allocation9], 4
          %s504 = int_to_ptr.vmem [resolvable:$true] %s503
          %506 = dma.hbm_to_vmem [thread:$0]  %s502, 16, %s504, [#allocation8]
        $region36: #{bert_encoder_forward.3} parent=11 // pred_fallthru
          _
        // Predicated region
        $region37: #{bert_encoder_forward.3} parent=11 // pred_check
          %p507 = pneg %p215
        $region38: #{bert_encoder_forward.3} parent=11 // pred_check_branch
          %509 = sbr.rel (%p507) target = $region40
        $region39: #{bert_encoder_forward.3} parent=11 // pred_region
          %511 = vsyncadd [#allocation11], 0
          %s512 = sshll.u32 %s7, 4
          %s513 = int_to_ptr.hbm [resolvable:$true] %s512
          %s514 = sshll.u32 [#allocation10], 4
          %s515 = int_to_ptr.vmem [resolvable:$true] %s514
          %520 = dma.hbm_to_vmem [thread:$0]  %s513, 256, %s515, [#allocation11], 64, 64, 4
        $region40: #{bert_encoder_forward.3} parent=11 // pred_fallthru
          _
        // Predicated region
        $region41: #{bert_encoder_forward.3} parent=11 // pred_check
          %p521 = pneg %p236
        $region42: #{bert_encoder_forward.3} parent=11 // pred_check_branch
          %523 = sbr.rel (%p521) target = $region44
        $region43: #{bert_encoder_forward.3} parent=11 // pred_region
          %525 = vsyncadd [#allocation11], 0
          %s527 = sshll.u32 %s8, 4
          %s528 = int_to_ptr.hbm [resolvable:$true] %s527
          %s529 = sshll.u32 [#allocation12], 4
          %s530 = int_to_ptr.vmem [resolvable:$true] %s529
          %532 = dma.hbm_to_vmem [thread:$0]  %s528, 16, %s530, [#allocation11]
        $region44: #{bert_encoder_forward.3} parent=11 // pred_fallthru
          _
        // Predicated region
        $region45: #{bert_encoder_forward.3} parent=11 // pred_check
          %p533 = pneg %p257
        $region46: #{bert_encoder_forward.3} parent=11 // pred_check_branch
          %535 = sbr.rel (%p533) target = $region48
        $region47: #{bert_encoder_forward.3} parent=11 // pred_region
          %537 = vsyncadd [#allocation14], 0
          %s539 = sshll.u32 %s9, 4
          %s540 = int_to_ptr.hbm [resolvable:$true] %s539
          %s541 = sshll.u32 [#allocation13], 4
          %s542 = int_to_ptr.vmem [resolvable:$true] %s541
          %544 = dma.hbm_to_vmem [thread:$0]  %s540, 16, %s542, [#allocation14]
        $region48: #{bert_encoder_forward.3} parent=11 // pred_fallthru
          _
        // Predicated region
        $region49: #{bert_encoder_forward.3} parent=11 // pred_check
          %p545 = pneg %p278
        $region50: #{bert_encoder_forward.3} parent=11 // pred_check_branch
          %547 = sbr.rel (%p545) target = $region52
        $region51: #{bert_encoder_forward.3} parent=11 // pred_region
          %549 = vsyncadd [#allocation14], 0
          %s551 = sshll.u32 %s10, 4
          %s552 = int_to_ptr.hbm [resolvable:$true] %s551
          %s553 = sshll.u32 [#allocation15], 4
          %s554 = int_to_ptr.vmem [resolvable:$true] %s553
          %556 = dma.hbm_to_vmem [thread:$0]  %s552, 16, %s554, [#allocation14]
        $region52: #{bert_encoder_forward.3} parent=11 // pred_fallthru
          _
        // Predicated region
        $region53: #{bert_encoder_forward.3} parent=11 // pred_check
          %p557 = pneg %p304
        $region54: #{bert_encoder_forward.3} parent=11 // pred_check_branch
          %559 = sbr.rel (%p557) target = $region56
        $region55: #{bert_encoder_forward.3} parent=11 // pred_region
          %561 = vsyncadd [#allocation17], 0
          %s562 = smul.addr %s40, 4
          %s563 = scalar_lea.hbm %s11, %s562
          %s564 = sshll.u32 %s563, 4
          %s565 = int_to_ptr.hbm [resolvable:$true] %s564
          %s566 = sshll.u32 [#allocation16], 4
          %s567 = int_to_ptr.vmem [resolvable:$true] %s566
          %572 = dma.hbm_to_vmem [thread:$0]  %s565, 256, %s567, [#allocation17], 64, 64, 4
        $region56: #{bert_encoder_forward.3} parent=11 // pred_fallthru
          _
        // Predicated region
        $region57: #{bert_encoder_forward.3} parent=11 // pred_check
          %p573 = pneg %p330
        $region58: #{bert_encoder_forward.3} parent=11 // pred_check_branch
          %575 = sbr.rel (%p573) target = $region60
        $region59: #{bert_encoder_forward.3} parent=11 // pred_region
          %577 = vsyncadd [#allocation17], 0
          %s578 = scalar_lea.hbm %s12, %s40
          %s580 = sshll.u32 %s578, 4
          %s581 = int_to_ptr.hbm [resolvable:$true] %s580
          %s582 = sshll.u32 [#allocation18], 4
          %s583 = int_to_ptr.vmem [resolvable:$true] %s582
          %585 = dma.hbm_to_vmem [thread:$0]  %s581, 16, %s583, [#allocation17]
        $region60: #{bert_encoder_forward.3} parent=11 // pred_fallthru
          _
        // Predicated region
        $region61: #{bert_encoder_forward.3} parent=11 // pred_check
          %p586 = pneg %p356
        $region62: #{bert_encoder_forward.3} parent=11 // pred_check_branch
          %588 = sbr.rel (%p586) target = $region64
        $region63: #{bert_encoder_forward.3} parent=11 // pred_region
          %s589 = smul.u32 8, %s40
          %p590 = scmp.lt.s32.totalorder %s589, 7
          %s591 = scalar_select %p590, %s589, 7
          %s592 = smul.addr %s591, 4
          %s593 = scalar_lea.vmem %s13, %s592
          %s594 = smul.u32 8, %s40
        $region64: #{bert_encoder_forward.3} parent=11 // pred_fallthru
          _
        // Predicated region
        $region65: #{bert_encoder_forward.3} parent=11 // pred_check
          %p595 = pneg %p377
        $region66: #{bert_encoder_forward.3} parent=11 // pred_check_branch
          %597 = sbr.rel (%p595) target = $region68
        $region67: #{bert_encoder_forward.3} parent=11 // pred_region
          %599 = vsyncadd [#allocation20], 0
          %s601 = sshll.u32 %s14, 4
          %s602 = int_to_ptr.hbm [resolvable:$true] %s601
          %s603 = sshll.u32 [#allocation19], 4
          %s604 = int_to_ptr.vmem [resolvable:$true] %s603
          %606 = dma.hbm_to_vmem [thread:$0]  %s602, 16, %s604, [#allocation20]
        $region68: #{bert_encoder_forward.3} parent=11 // pred_fallthru
          _
        // Predicated region
        $region69: #{bert_encoder_forward.3} parent=11 // pred_check
          %p607 = pneg %p398
        $region70: #{bert_encoder_forward.3} parent=11 // pred_check_branch
          %609 = sbr.rel (%p607) target = $region72
        $region71: #{bert_encoder_forward.3} parent=11 // pred_region
          %611 = vsyncadd [#allocation20], 0
          %s613 = sshll.u32 %s15, 4
          %s614 = int_to_ptr.hbm [resolvable:$true] %s613
          %s615 = sshll.u32 [#allocation21], 4
          %s616 = int_to_ptr.vmem [resolvable:$true] %s615
          %618 = dma.hbm_to_vmem [thread:$0]  %s614, 16, %s616, [#allocation20]
        $region72: #{bert_encoder_forward.3} parent=11 // pred_fallthru
          _
        // Predicated region
        $region73: #{bert_encoder_forward.3} parent=11 // pred_check
          %p619 = pneg %p419
        $region74: #{bert_encoder_forward.3} parent=11 // pred_check_branch
          %621 = sbr.rel (%p619) target = $region76
        $region75: #{bert_encoder_forward.3} parent=11 // pred_region
          %623 = vsyncadd [#allocation23], 0
          %s625 = sshll.u32 %s16, 4
          %s626 = int_to_ptr.hbm [resolvable:$true] %s625
          %s627 = sshll.u32 [#allocation22], 4
          %s628 = int_to_ptr.vmem [resolvable:$true] %s627
          %630 = dma.hbm_to_vmem [thread:$0]  %s626, 16, %s628, [#allocation23]
        $region76: #{bert_encoder_forward.3} parent=11 // pred_fallthru
          _
      $region12: #{bert_encoder_forward.3} parent=5 // pred_fallthru
        _
      %p631 = scmp.lt.s32.totalorder %s30, 2
      // Predicated region
      $region77: #{bert_encoder_forward.3} parent=5 // pred_check
        %p632 = pneg %p631
      $region78: #{bert_encoder_forward.3} parent=5 // pred_check_branch
        %634 = sbr.rel (%p632) target = $region80
      $region79: #{bert_encoder_forward.3} parent=5 // pred_region
        // Predicated region
        $region81: #{bert_encoder_forward.3} parent=79 // pred_check
          %p635 = pneg %p62
        $region82: #{bert_encoder_forward.3} parent=79 // pred_check_branch
          %637 = sbr.rel (%p635) target = $region84
        $region83: #{bert_encoder_forward.3} parent=79 // pred_region
          %p638 = scmp.lt.s32.totalorder %s37, 1
          %s639 = scalar_select %p638, %s37, 1
          %s640 = smul.addr %s639, 8
          %s641 = scalar_lea.vmem %s0, %s640
        $region84: #{bert_encoder_forward.3} parent=79 // pred_fallthru
          _
      $region80: #{bert_encoder_forward.3} parent=5 // pred_fallthru
        _
      %p642 = scmp.le.s32.totalorder 1, %s30
      %p643 = scmp.lt.s32.totalorder %s30, 3
      %p644 = pnand %p642, %p643
      %p645 = pneg %p644
      // Predicated region
      $region85: #{bert_encoder_forward.3} parent=5 // pred_check
        _
      $region86: #{bert_encoder_forward.3} parent=5 // pred_check_branch
        %647 = sbr.rel (%p644) target = $region88
      $region87: #{bert_encoder_forward.3} parent=5 // pred_region
        %s648 = ssub.s32 %s30, 1
        // Predicated region
        $region89: #{bert_encoder_forward.3} parent=87 // pred_check
          %p649 = pneg %p152
        $region90: #{bert_encoder_forward.3} parent=87 // pred_check_branch
          %651 = sbr.rel (%p649) target = $region92
        $region91: #{bert_encoder_forward.3} parent=87 // pred_region
          %653 = dma.done [#allocation6], 16
        $region92: #{bert_encoder_forward.3} parent=87 // pred_fallthru
          _
        // Predicated region
        $region93: #{bert_encoder_forward.3} parent=87 // pred_check
          %p654 = pneg %p173
        $region94: #{bert_encoder_forward.3} parent=87 // pred_check_branch
          %656 = sbr.rel (%p654) target = $region96
        $region95: #{bert_encoder_forward.3} parent=87 // pred_region
          %658 = dma.done [#allocation8], 256
        $region96: #{bert_encoder_forward.3} parent=87 // pred_fallthru
          _
        // Predicated region
        $region97: #{bert_encoder_forward.3} parent=87 // pred_check
          %p659 = pneg %p194
        $region98: #{bert_encoder_forward.3} parent=87 // pred_check_branch
          %661 = sbr.rel (%p659) target = $region100
        $region99: #{bert_encoder_forward.3} parent=87 // pred_region
          %663 = dma.done [#allocation8], 16
        $region100: #{bert_encoder_forward.3} parent=87 // pred_fallthru
          _
        // Predicated region
        $region101: #{bert_encoder_forward.3} parent=87 // pred_check
          %p664 = pneg %p215
        $region102: #{bert_encoder_forward.3} parent=87 // pred_check_branch
          %666 = sbr.rel (%p664) target = $region104
        $region103: #{bert_encoder_forward.3} parent=87 // pred_region
          %668 = dma.done [#allocation11], 256
        $region104: #{bert_encoder_forward.3} parent=87 // pred_fallthru
          _
        // Predicated region
        $region105: #{bert_encoder_forward.3} parent=87 // pred_check
          %p669 = pneg %p236
        $region106: #{bert_encoder_forward.3} parent=87 // pred_check_branch
          %671 = sbr.rel (%p669) target = $region108
        $region107: #{bert_encoder_forward.3} parent=87 // pred_region
          %673 = dma.done [#allocation11], 16
        $region108: #{bert_encoder_forward.3} parent=87 // pred_fallthru
          _
        // Predicated region
        $region109: #{bert_encoder_forward.3} parent=87 // pred_check
          %p674 = pneg %p257
        $region110: #{bert_encoder_forward.3} parent=87 // pred_check_branch
          %676 = sbr.rel (%p674) target = $region112
        $region111: #{bert_encoder_forward.3} parent=87 // pred_region
          %678 = dma.done [#allocation14], 16
        $region112: #{bert_encoder_forward.3} parent=87 // pred_fallthru
          _
        // Predicated region
        $region113: #{bert_encoder_forward.3} parent=87 // pred_check
          %p679 = pneg %p278
        $region114: #{bert_encoder_forward.3} parent=87 // pred_check_branch
          %681 = sbr.rel (%p679) target = $region116
        $region115: #{bert_encoder_forward.3} parent=87 // pred_region
          %683 = dma.done [#allocation14], 16
        $region116: #{bert_encoder_forward.3} parent=87 // pred_fallthru
          _
        // Predicated region
        $region117: #{bert_encoder_forward.3} parent=87 // pred_check
          %p684 = pneg %p304
        $region118: #{bert_encoder_forward.3} parent=87 // pred_check_branch
          %686 = sbr.rel (%p684) target = $region120
        $region119: #{bert_encoder_forward.3} parent=87 // pred_region
          %688 = dma.done [#allocation17], 256
        $region120: #{bert_encoder_forward.3} parent=87 // pred_fallthru
          _
        // Predicated region
        $region121: #{bert_encoder_forward.3} parent=87 // pred_check
          %p689 = pneg %p330
        $region122: #{bert_encoder_forward.3} parent=87 // pred_check_branch
          %691 = sbr.rel (%p689) target = $region124
        $region123: #{bert_encoder_forward.3} parent=87 // pred_region
          %693 = dma.done [#allocation17], 16
        $region124: #{bert_encoder_forward.3} parent=87 // pred_fallthru
          _
        // Predicated region
        $region125: #{bert_encoder_forward.3} parent=87 // pred_check
          %p694 = pneg %p377
        $region126: #{bert_encoder_forward.3} parent=87 // pred_check_branch
          %696 = sbr.rel (%p694) target = $region128
        $region127: #{bert_encoder_forward.3} parent=87 // pred_region
          %698 = dma.done [#allocation20], 16
        $region128: #{bert_encoder_forward.3} parent=87 // pred_fallthru
          _
        // Predicated region
        $region129: #{bert_encoder_forward.3} parent=87 // pred_check
          %p699 = pneg %p398
        $region130: #{bert_encoder_forward.3} parent=87 // pred_check_branch
          %701 = sbr.rel (%p699) target = $region132
        $region131: #{bert_encoder_forward.3} parent=87 // pred_region
          %703 = dma.done [#allocation20], 16
        $region132: #{bert_encoder_forward.3} parent=87 // pred_fallthru
          _
        // Predicated region
        $region133: #{bert_encoder_forward.3} parent=87 // pred_check
          %p704 = pneg %p419
        $region134: #{bert_encoder_forward.3} parent=87 // pred_check_branch
          %706 = sbr.rel (%p704) target = $region136
        $region135: #{bert_encoder_forward.3} parent=87 // pred_region
          %708 = dma.done [#allocation23], 16
        $region136: #{bert_encoder_forward.3} parent=87 // pred_fallthru
          _
        %p709 = scmp.lt.s32.totalorder %s39, 1
        %s710 = scalar_select %p709, %s39, 1
        %s711 = smul.addr %s710, 8
        %s712 = scalar_lea.vmem %s0, %s711
        %p713 = pneg %p68
        %p714 = pneg %p65
        %p715 = pneg %p89
        %p716 = pneg %p86
        %p717 = pneg %p110
        %p718 = pneg %p107
        %p719 = pneg %p131
        %p720 = pneg %p128
        %p721 = pneg %p152
        %p722 = pneg %p149
        %p723 = pneg %p173
        %p724 = pneg %p170
        %p725 = pneg %p194
        %p726 = pneg %p191
        %p727 = pneg %p215
        %p728 = pneg %p212
        %p729 = pneg %p236
        %p730 = pneg %p233
        %p731 = pneg %p257
        %p732 = pneg %p254
        %p733 = pneg %p278
        %p734 = pneg %p275
        %p735 = pneg %p304
        %p736 = pneg %p301
        %p737 = pneg %p330
        %p738 = pneg %p327
        %s739 = smul.u32 8, %s40
        %p740 = scmp.lt.s32.totalorder %s739, 7
        %s741 = scalar_select %p740, %s739, 7
        %s742 = smul.addr %s741, 4
        %s743 = scalar_lea.vmem %s13, %s742
        %p744 = pneg %p356
        %p745 = pneg %p353
        %p746 = pneg %p377
        %p747 = pneg %p374
        %p748 = pneg %p398
        %p749 = pneg %p395
        %p750 = pneg %p419
        %p751 = pneg %p416
        %p752 = pneg %p445
        %p753 = pneg %p442
        %p754 = scmp.lt.s32.totalorder %s39, 1
        %s755 = scalar_select %p754, %s39, 1
        %s756 = smul.addr %s755, 8
        %s757 = scalar_lea.vmem %s17, %s756
        %p758 = scmp.lt.s32.totalorder %s39, 1
        %s759 = scalar_select %p758, %s39, 1
        %s760 = smul.addr %s759, 8
        %s761 = scalar_lea.vmem %s0, %s760
        %s762 = smul.u32 8, %s40
        %p763 = scmp.lt.s32.totalorder %s762, 7
        %s764 = scalar_select %p763, %s762, 7
        %s765 = smul.addr %s764, 4
        %s766 = scalar_lea.vmem %s13, %s765
        %s767 = smul.u32 8, %s40
        %p768 = scmp.lt.s32.totalorder %s39, 1
        %s769 = scalar_select %p768, %s39, 1
        %s770 = smul.addr %s769, 8
        %s771 = scalar_lea.vmem %s17, %s770
        %p773 = scmp.eq.s32.totalorder %s40, 0
        // Predicated region
        $region137: #{bert_encoder_forward.3} parent=87 // pred_check
          %p774 = pneg %p773
        $region138: #{bert_encoder_forward.3} parent=87 // pred_check_branch
          %776 = sbr.rel (%p774) target = $region140
        $region139: #{bert_encoder_forward.3} parent=87 // pred_region
          %v777 = vld [vmem:[%s761] sm:$0xff]
          %v778 = vpack.c.bf16 %v777, %v777
          %v779 = vld [vmem:[%s1] sm:$0xf]
          %v780 = vld [vmem:[%s1 + $0x4] sm:$0xf]
          %v781 = vld [vmem:[%s1 + $0x8] sm:$0xf]
          %v782 = vld [vmem:[%s1 + $0xc] sm:$0xf]
          %v783 = vld [vmem:[%s2] sm:$0x1]
          %v785 = vperm.slane %v783, 0
          %v791 = vunpack.c.l.b16 %v779
          %v792 = vunpack.c.l.b16 %v780
          %v793 = vunpack.c.l.b16 %v781
          %v794 = vunpack.c.l.b16 %v782
          %v795 = vpack.c.b16 %v792, %v791
          %v796 = vpack.c.b16 %v794, %v793
          %vm799 = vcmask 261120
          %v801 = vsel %vm799, %v778, 0
          %803 = vmatpush.bf16.msra.mxu0 0
          %804 = vmatpush.bf16.msra.mxu0 0
          %805 = vmatpush.bf16.msra.mxu0 0
          %806 = vmatpush.bf16.msra.mxu0 0
          %807 = vmatpush.bf16.msra.mxu0 0
          %808 = vmatpush.bf16.msra.mxu0 0
          %809 = vmatpush.bf16.msra.mxu0 %v796
          %810 = vmatpush.bf16.msra.mxu0 %v795
          %811 = vmatmul.bf16.gmra.mxu0 %v801
          %v812 = vpop.f32.mrf.mxu0
          %v813 = vadd.f32 %v785, %v812
          %v814 = vpop.f32.mrf.mxu0
          %815 = vdwg.mxu0
          %v816 = vmul.f32 %v813, 0.35355338
          %v817 = vpack.c.bf16 %v816, %v816
          %v818 = vld [vmem:[%s3] sm:$0xf]
          %v819 = vld [vmem:[%s3 + $0x4] sm:$0xf]
          %v820 = vld [vmem:[%s3 + $0x8] sm:$0xf]
          %v821 = vld [vmem:[%s3 + $0xc] sm:$0xf]
          %v822 = vld [vmem:[#allocation5] sm:$0x1]
          %v824 = vperm.slane %v822, 0
          %v830 = vunpack.c.l.b16 %v818
          %v831 = vunpack.c.l.b16 %v819
          %v832 = vunpack.c.l.b16 %v820
          %v833 = vunpack.c.l.b16 %v821
          %v834 = vpack.c.b16 %v831, %v830
          %v835 = vpack.c.b16 %v833, %v832
          %838 = vmatpush.bf16.msra.mxu0 0
          %839 = vmatpush.bf16.msra.mxu0 0
          %840 = vmatpush.bf16.msra.mxu0 0
          %841 = vmatpush.bf16.msra.mxu0 0
          %842 = vmatpush.bf16.msra.mxu0 0
          %843 = vmatpush.bf16.msra.mxu0 0
          %844 = vmatpush.bf16.msra.mxu0 %v835
          %845 = vmatpush.bf16.msra.mxu0 %v834
          %846 = vmatmul.bf16.gmra.mxu0 %v801
          %v847 = vpop.f32.mrf.mxu0
          %v848 = vadd.f32 %v824, %v847
          %v849 = vpop.f32.mrf.mxu0
          %850 = vdwg.mxu0
          %v851 = vpack.c.bf16 %v848, %v848
          %v852 = vld [vmem:[#allocation7] sm:$0xf]
          %v853 = vld [vmem:[#allocation7 + $0x4] sm:$0xf]
          %v854 = vld [vmem:[#allocation7 + $0x8] sm:$0xf]
          %v855 = vld [vmem:[#allocation7 + $0xc] sm:$0xf]
          %v856 = vld [vmem:[#allocation9] sm:$0x1]
          %v858 = vperm.slane %v856, 0
          %v864 = vunpack.c.l.b16 %v852
          %v865 = vunpack.c.l.b16 %v853
          %v866 = vunpack.c.l.b16 %v854
          %v867 = vunpack.c.l.b16 %v855
          %v868 = vpack.c.b16 %v865, %v864
          %v869 = vpack.c.b16 %v867, %v866
          %872 = vmatpush.bf16.msra.mxu0 0
          %873 = vmatpush.bf16.msra.mxu0 0
          %874 = vmatpush.bf16.msra.mxu0 0
          %875 = vmatpush.bf16.msra.mxu0 0
          %876 = vmatpush.bf16.msra.mxu0 0
          %877 = vmatpush.bf16.msra.mxu0 0
          %878 = vmatpush.bf16.msra.mxu0 %v869
          %879 = vmatpush.bf16.msra.mxu0 %v868
          %880 = vmatmul.bf16.gmra.mxu0 %v801
          %v881 = vpop.f32.mrf.mxu0
          %v882 = vadd.f32 %v858, %v881
          %v883 = vpop.f32.mrf.mxu0
          %884 = vdwg.mxu0
          %v885 = vpack.c.bf16 %v882, %v882
          %vm886 = vcmask 64512
          %v888 = vsel %vm886, %v817, 0
          %v891 = vsel %vm886, %v851, 0
          %893 = vmatpush.bf16.xpose.msra.mxu0 0
          %894 = vmatpush.bf16.xpose.msra.mxu0 0
          %895 = vmatpush.bf16.xpose.msra.mxu0 0
          %896 = vmatpush.bf16.xpose.msra.mxu0 0
          %897 = vmatpush.bf16.xpose.msra.mxu0 0
          %898 = vmatpush.bf16.xpose.msra.mxu0 0
          %899 = vmatpush.bf16.xpose.msra.mxu0 0
          %900 = vmatpush.bf16.xpose.msra.mxu0 %v891
          %901 = vmatmul.bf16.gmra.mxu0 %v888
          %v902 = vpop.f32.mrf.mxu0
          %v903 = vadd.f32 0.0, %v902
          %v904 = vpop.f32.mrf.mxu0
          %905 = vdwg.mxu0
          %v906 = vsel %vm886, %v903, -inf
          %907 = vmax.xlane.f32.xlu0 %v906
          %v908 = vpop.xlane.xlu0 %907
          %v909 = vsub.f32 %v903, %v908
          %v910 = vmul.f32 %v909, 1.442695
          %v911 = vpow.pop %v910
          %v912 = vsel %vm886, %v911, 0.0
          %913 = vadd.xlane.f32.xlu0 %v912
          %v914 = vpop.xlane.xlu0 %913
          %v915 = vrcp.pop %v914
          %v916 = vmul.f32 %v911, %v915
          %v917 = vpack.c.bf16 %v916, %v916
          %v919 = vsel %vm886, %v917, 0
          %vm921 = vcmask 1043456
          %v923 = vsel %vm921, %v885, 0
          %925 = vmatpush.bf16.msra.mxu0 0
          %926 = vmatpush.bf16.msra.mxu0 0
          %927 = vmatpush.bf16.msra.mxu0 0
          %928 = vmatpush.bf16.msra.mxu0 0
          %929 = vmatpush.bf16.msra.mxu0 0
          %930 = vmatpush.bf16.msra.mxu0 0
          %931 = vmatpush.bf16.msra.mxu0 0
          %932 = vmatpush.bf16.msra.mxu0 %v923
          %933 = vmatmul.bf16.gmra.mxu0 %v919
          %v934 = vpop.f32.mrf.mxu0
          %v935 = vadd.f32 0.0, %v934
          %v936 = vpop.f32.mrf.mxu0
          %937 = vdwg.mxu0
          %938 = vst.msk [vmem:[#allocation3] sm:$0xff] %vm886, %v935
          %v940 = vunpack.c.l.b16 %v817
          %v941 = vpack.c.b16 %v940, %v940
          %942 = vrot.lane.b32.xlu0 %v941, 120
          %v943 = vpop.permute.xlu0 %942
          %v945 = vunpack.c.l.b16 %v851
          %v946 = vpack.c.b16 %v945, %v945
          %947 = vrot.lane.b32.xlu0 %v946, 120
          %v948 = vpop.permute.xlu0 %947
          %v950 = vsel %vm886, %v943, 0
          %v953 = vsel %vm886, %v948, 0
          %955 = vmatpush.bf16.xpose.msra.mxu0 0
          %956 = vmatpush.bf16.xpose.msra.mxu0 0
          %957 = vmatpush.bf16.xpose.msra.mxu0 0
          %958 = vmatpush.bf16.xpose.msra.mxu0 0
          %959 = vmatpush.bf16.xpose.msra.mxu0 0
          %960 = vmatpush.bf16.xpose.msra.mxu0 0
          %961 = vmatpush.bf16.xpose.msra.mxu0 0
          %962 = vmatpush.bf16.xpose.msra.mxu0 %v953
          %963 = vmatmul.bf16.gmra.mxu0 %v950
          %v964 = vpop.f32.mrf.mxu0
          %v965 = vadd.f32 0.0, %v964
          %v966 = vpop.f32.mrf.mxu0
          %967 = vdwg.mxu0
          %v968 = vsel %vm886, %v965, -inf
          %969 = vmax.xlane.f32.xlu0 %v968
          %v970 = vpop.xlane.xlu0 %969
          %v971 = vsub.f32 %v965, %v970
          %v972 = vmul.f32 %v971, 1.442695
          %v973 = vpow.pop %v972
          %v974 = vsel %vm886, %v973, 0.0
          %975 = vadd.xlane.f32.xlu0 %v974
          %v976 = vpop.xlane.xlu0 %975
          %v977 = vrcp.pop %v976
          %v978 = vmul.f32 %v973, %v977
          %v979 = vpack.c.bf16 %v978, %v978
          %v981 = vunpack.c.l.b16 %v885
          %v982 = vpack.c.b16 %v981, %v981
          %983 = vrot.lane.b32.xlu0 %v982, 120
          %v984 = vpop.permute.xlu0 %983
          %v986 = vsel %vm886, %v979, 0
          %v989 = vsel %vm921, %v984, 0
          %991 = vmatpush.bf16.msra.mxu0 0
          %992 = vmatpush.bf16.msra.mxu0 0
          %993 = vmatpush.bf16.msra.mxu0 0
          %994 = vmatpush.bf16.msra.mxu0 0
          %995 = vmatpush.bf16.msra.mxu0 0
          %996 = vmatpush.bf16.msra.mxu0 0
          %997 = vmatpush.bf16.msra.mxu0 0
          %998 = vmatpush.bf16.msra.mxu0 %v989
          %999 = vmatmul.bf16.gmra.mxu0 %v986
          %v1000 = vpop.f32.mrf.mxu0
          %v1001 = vadd.f32 0.0, %v1000
          %v1002 = vpop.f32.mrf.mxu0
          %1003 = vdwg.mxu0
          %1005 = vrot.lane.b32.xlu0 %v1001, 8
          %v1006 = vpop.permute.xlu0 %1005
          %vm1008 = vcmask 130112
          %1009 = vst.msk [vmem:[#allocation3] sm:$0xff] %vm1008, %v1006
          %1010 = vrot.lane.b32.xlu0 %v941, 112
          %v1011 = vpop.permute.xlu0 %1010
          %1012 = vrot.lane.b32.xlu0 %v946, 112
          %v1013 = vpop.permute.xlu0 %1012
          %v1015 = vsel %vm886, %v1011, 0
          %v1018 = vsel %vm886, %v1013, 0
          %1020 = vmatpush.bf16.xpose.msra.mxu0 0
          %1021 = vmatpush.bf16.xpose.msra.mxu0 0
          %1022 = vmatpush.bf16.xpose.msra.mxu0 0
          %1023 = vmatpush.bf16.xpose.msra.mxu0 0
          %1024 = vmatpush.bf16.xpose.msra.mxu0 0
          %1025 = vmatpush.bf16.xpose.msra.mxu0 0
          %1026 = vmatpush.bf16.xpose.msra.mxu0 0
          %1027 = vmatpush.bf16.xpose.msra.mxu0 %v1018
          %1028 = vmatmul.bf16.gmra.mxu0 %v1015
          %v1029 = vpop.f32.mrf.mxu0
          %v1030 = vadd.f32 0.0, %v1029
          %v1031 = vpop.f32.mrf.mxu0
          %1032 = vdwg.mxu0
          %v1033 = vsel %vm886, %v1030, -inf
          %1034 = vmax.xlane.f32.xlu0 %v1033
          %v1035 = vpop.xlane.xlu0 %1034
          %v1036 = vsub.f32 %v1030, %v1035
          %v1037 = vmul.f32 %v1036, 1.442695
          %v1038 = vpow.pop %v1037
          %v1039 = vsel %vm886, %v1038, 0.0
          %1040 = vadd.xlane.f32.xlu0 %v1039
          %v1041 = vpop.xlane.xlu0 %1040
          %v1042 = vrcp.pop %v1041
          %v1043 = vmul.f32 %v1038, %v1042
          %v1044 = vpack.c.bf16 %v1043, %v1043
          %1045 = vrot.lane.b32.xlu0 %v982, 112
          %v1046 = vpop.permute.xlu0 %1045
          %v1048 = vsel %vm886, %v1044, 0
          %v1051 = vsel %vm921, %v1046, 0
          %1053 = vmatpush.bf16.msra.mxu0 0
          %1054 = vmatpush.bf16.msra.mxu0 0
          %1055 = vmatpush.bf16.msra.mxu0 0
          %1056 = vmatpush.bf16.msra.mxu0 0
          %1057 = vmatpush.bf16.msra.mxu0 0
          %1058 = vmatpush.bf16.msra.mxu0 0
          %1059 = vmatpush.bf16.msra.mxu0 0
          %1060 = vmatpush.bf16.msra.mxu0 %v1051
          %1061 = vmatmul.bf16.gmra.mxu0 %v1048
          %v1062 = vpop.f32.mrf.mxu0
          %v1063 = vadd.f32 0.0, %v1062
          %v1064 = vpop.f32.mrf.mxu0
          %1065 = vdwg.mxu0
          %1067 = vrot.lane.b32.xlu0 %v1063, 16
          %v1068 = vpop.permute.xlu0 %1067
          %vm1070 = vcmask 195712
          %1071 = vst.msk [vmem:[#allocation3] sm:$0xff] %vm1070, %v1068
          %1072 = vrot.lane.b32.xlu0 %v941, 104
          %v1073 = vpop.permute.xlu0 %1072
          %1074 = vrot.lane.b32.xlu0 %v946, 104
          %v1075 = vpop.permute.xlu0 %1074
          %v1077 = vsel %vm886, %v1073, 0
          %v1080 = vsel %vm886, %v1075, 0
          %1082 = vmatpush.bf16.xpose.msra.mxu0 0
          %1083 = vmatpush.bf16.xpose.msra.mxu0 0
          %1084 = vmatpush.bf16.xpose.msra.mxu0 0
          %1085 = vmatpush.bf16.xpose.msra.mxu0 0
          %1086 = vmatpush.bf16.xpose.msra.mxu0 0
          %1087 = vmatpush.bf16.xpose.msra.mxu0 0
          %1088 = vmatpush.bf16.xpose.msra.mxu0 0
          %1089 = vmatpush.bf16.xpose.msra.mxu0 %v1080
          %1090 = vmatmul.bf16.gmra.mxu0 %v1077
          %v1091 = vpop.f32.mrf.mxu0
          %v1092 = vadd.f32 0.0, %v1091
          %v1093 = vpop.f32.mrf.mxu0
          %1094 = vdwg.mxu0
          %v1095 = vsel %vm886, %v1092, -inf
          %1096 = vmax.xlane.f32.xlu0 %v1095
          %v1097 = vpop.xlane.xlu0 %1096
          %v1098 = vsub.f32 %v1092, %v1097
          %v1099 = vmul.f32 %v1098, 1.442695
          %v1100 = vpow.pop %v1099
          %v1101 = vsel %vm886, %v1100, 0.0
          %1102 = vadd.xlane.f32.xlu0 %v1101
          %v1103 = vpop.xlane.xlu0 %1102
          %v1104 = vrcp.pop %v1103
          %v1105 = vmul.f32 %v1100, %v1104
          %v1106 = vpack.c.bf16 %v1105, %v1105
          %1107 = vrot.lane.b32.xlu0 %v982, 104
          %v1108 = vpop.permute.xlu0 %1107
          %v1110 = vsel %vm886, %v1106, 0
          %v1113 = vsel %vm921, %v1108, 0
          %1115 = vmatpush.bf16.msra.mxu0 0
          %1116 = vmatpush.bf16.msra.mxu0 0
          %1117 = vmatpush.bf16.msra.mxu0 0
          %1118 = vmatpush.bf16.msra.mxu0 0
          %1119 = vmatpush.bf16.msra.mxu0 0
          %1120 = vmatpush.bf16.msra.mxu0 0
          %1121 = vmatpush.bf16.msra.mxu0 0
          %1122 = vmatpush.bf16.msra.mxu0 %v1113
          %1123 = vmatmul.bf16.gmra.mxu0 %v1110
          %v1124 = vpop.f32.mrf.mxu0
          %v1125 = vadd.f32 0.0, %v1124
          %v1126 = vpop.f32.mrf.mxu0
          %1127 = vdwg.mxu0
          %1129 = vrot.lane.b32.xlu0 %v1125, 24
          %v1130 = vpop.permute.xlu0 %1129
          %vm1132 = vcmask 261312
          %1133 = vst.msk [vmem:[#allocation3] sm:$0xff] %vm1132, %v1130
          %v1134 = vld [vmem:[#allocation3] sm:$0xff]
          %v1135 = vpack.c.bf16 %v1134, %v1134
          %v1136 = vld [vmem:[#allocation10] sm:$0xf]
          %v1137 = vld [vmem:[#allocation10 + $0x4] sm:$0xf]
          %v1138 = vld [vmem:[#allocation10 + $0x8] sm:$0xf]
          %v1139 = vld [vmem:[#allocation10 + $0xc] sm:$0xf]
          %v1140 = vld [vmem:[#allocation12] sm:$0x1]
          %v1142 = vperm.slane %v1140, 0
          %v1148 = vunpack.c.l.b16 %v1136
          %v1149 = vunpack.c.l.b16 %v1137
          %v1150 = vunpack.c.l.b16 %v1138
          %v1151 = vunpack.c.l.b16 %v1139
          %v1152 = vpack.c.b16 %v1149, %v1148
          %v1153 = vpack.c.b16 %v1151, %v1150
          %v1157 = vsel %vm799, %v1135, 0
          %1159 = vmatpush.bf16.msra.mxu0 0
          %1160 = vmatpush.bf16.msra.mxu0 0
          %1161 = vmatpush.bf16.msra.mxu0 0
          %1162 = vmatpush.bf16.msra.mxu0 0
          %1163 = vmatpush.bf16.msra.mxu0 0
          %1164 = vmatpush.bf16.msra.mxu0 0
          %1165 = vmatpush.bf16.msra.mxu0 %v1153
          %1166 = vmatpush.bf16.msra.mxu0 %v1152
          %1167 = vmatmul.bf16.gmra.mxu0 %v1157
          %v1168 = vpop.f32.mrf.mxu0
          %v1169 = vadd.f32 %v1142, %v1168
          %v1170 = vpop.f32.mrf.mxu0
          %1171 = vdwg.mxu0
          %v1172 = vadd.f32 %v1169, %v777
          %v1173 = vld [vmem:[#allocation13] sm:$0x1]
          %v1174 = vld [vmem:[#allocation15] sm:$0x1]
          %v1175 = vsel %vm799, %v1172, 0.0
          %1176 = vadd.xlane.f32.xlu0 %v1175
          %v1177 = vpop.xlane.xlu0 %1176
          %v1178 = vrcp.pop 32.0
          %v1179 = vmul.f32 32.0, %v1178
          %v1180 = vsub.f32 1.0, %v1179
          %v1181 = vmul.f32 %v1178, %v1180
          %v1182 = vadd.f32 %v1178, %v1181
          %vm1183 = vweird.f32 %v1178
          %v1184 = vsel %vm1183, %v1178, %v1182
          %v1185 = vmul.f32 %v1177, %v1184
          %v1186 = vsub.f32 %v1172, %v1185
          %v1187 = vmul.f32 %v1186, %v1186
          %v1188 = vsel %vm799, %v1187, 0.0
          %1189 = vadd.xlane.f32.xlu0 %v1188
          %v1190 = vpop.xlane.xlu0 %1189
          %v1191 = vmul.f32 %v1190, %v1184
          %v1192 = vadd.f32 %v1191, 1e-05
          %v1193 = vrsqrt.pop %v1192
          %v1194 = vmul.f32 %v1193, %v1192
          %v1195 = vmul.f32 %v1194, %v1193
          %v1196 = vmul.f32 0.5, %v1195
          %v1197 = vsub.f32 1.5, %v1196
          %v1198 = vmul.f32 %v1193, %v1197
          %vm1199 = vweird.f32 %v1192
          %vm1200 = vweird.f32 %v1193
          %vm1201 = vmor %vm1199, %vm1200
          %v1202 = vsel %vm1201, %v1193, %v1198
          %v1203 = vmul.f32 %v1186, %v1202
          %v1205 = vperm.slane %v1173, 0
          %v1207 = vmul.f32 %v1203, %v1205
          %v1209 = vperm.slane %v1174, 0
          %v1211 = vadd.f32 %v1207, %v1209
          %1212 = vst.msk [vmem:[#allocation2] sm:$0xff] %vm799, %v1211
          %1213 = vst.msk [vmem:[#allocation4] sm:$0xff] %vm799, 0.0
        $region140: #{bert_encoder_forward.3} parent=87 // pred_fallthru
          _
        %v1214 = vld [vmem:[#allocation2] sm:$0xff]
        %v1215 = vpack.c.bf16 %v1214, %v1214
        %v1216 = vld [vmem:[#allocation16] sm:$0xf]
        %v1217 = vld [vmem:[#allocation16 + $0x4] sm:$0xf]
        %v1218 = vld [vmem:[#allocation16 + $0x8] sm:$0xf]
        %v1219 = vld [vmem:[#allocation16 + $0xc] sm:$0xf]
        %v1220 = vld [vmem:[#allocation18] sm:$0x1]
        %v1222 = vperm.slane %v1220, 0
        %v1228 = vunpack.c.l.b16 %v1216
        %v1229 = vunpack.c.l.b16 %v1217
        %v1230 = vunpack.c.l.b16 %v1218
        %v1231 = vunpack.c.l.b16 %v1219
        %v1232 = vpack.c.b16 %v1229, %v1228
        %v1233 = vpack.c.b16 %v1231, %v1230
        %vm1236 = vcmask 261120
        %v1238 = vsel %vm1236, %v1215, 0
        %1240 = vmatpush.bf16.msra.mxu0 0
        %1241 = vmatpush.bf16.msra.mxu0 0
        %1242 = vmatpush.bf16.msra.mxu0 0
        %1243 = vmatpush.bf16.msra.mxu0 0
        %1244 = vmatpush.bf16.msra.mxu0 0
        %1245 = vmatpush.bf16.msra.mxu0 0
        %1246 = vmatpush.bf16.msra.mxu0 %v1233
        %1247 = vmatpush.bf16.msra.mxu0 %v1232
        %1248 = vmatmul.bf16.gmra.mxu0 %v1238
        %v1249 = vpop.f32.mrf.mxu0
        %v1250 = vadd.f32 %v1222, %v1249
        %v1251 = vpop.f32.mrf.mxu0
        %1252 = vdwg.mxu0
        %v1253 = vmax.f32 %v1250, 0.0
        %v1254 = vpack.c.bf16 %v1253, %v1253
        %v1255 = vld [vmem:[#allocation4] sm:$0xff]
        %v1256 = vld [vmem:[%s766] sm:$0xf]
        %v1257 = vld [vmem:[%s766 + $0x4] sm:$0xf]
        %v1258 = vld [vmem:[%s766 + $0x8] sm:$0xf]
        %v1259 = vld [vmem:[%s766 + $0xc] sm:$0xf]
        %v1260 = vld [vmem:[%s766 + $0x10] sm:$0xf]
        %v1261 = vld [vmem:[%s766 + $0x14] sm:$0xf]
        %v1262 = vld [vmem:[%s766 + $0x18] sm:$0xf]
        %v1263 = vld [vmem:[%s766 + $0x1c] sm:$0xf]
        %v1272 = vunpack.c.l.b16 %v1256
        %v1273 = vunpack.c.l.b16 %v1257
        %v1274 = vunpack.c.l.b16 %v1258
        %v1275 = vunpack.c.l.b16 %v1259
        %v1276 = vunpack.c.l.b16 %v1260
        %v1277 = vunpack.c.l.b16 %v1261
        %v1278 = vunpack.c.l.b16 %v1262
        %v1279 = vunpack.c.l.b16 %v1263
        %v1280 = vpack.c.b16 %v1273, %v1272
        %v1281 = vpack.c.b16 %v1275, %v1274
        %v1282 = vpack.c.b16 %v1277, %v1276
        %v1283 = vpack.c.b16 %v1279, %v1278
        %vm1288 = vcmask 523264
        %v1290 = vsel %vm1288, %v1254, 0
        %1292 = vmatpush.bf16.msra.mxu0 0
        %1293 = vmatpush.bf16.msra.mxu0 0
        %1294 = vmatpush.bf16.msra.mxu0 0
        %1295 = vmatpush.bf16.msra.mxu0 0
        %1296 = vmatpush.bf16.msra.mxu0 %v1283
        %1297 = vmatpush.bf16.msra.mxu0 %v1282
        %1298 = vmatpush.bf16.msra.mxu0 %v1281
        %1299 = vmatpush.bf16.msra.mxu0 %v1280
        %1300 = vmatmul.bf16.gmra.mxu0 %v1290
        %v1301 = vpop.f32.mrf.mxu0
        %v1302 = vadd.f32 0.0, %v1301
        %v1303 = vpop.f32.mrf.mxu0
        %1304 = vdwg.mxu0
        %v1305 = vadd.f32 %v1255, %v1302
        %1306 = vst.msk [vmem:[#allocation4] sm:$0xff] %vm1236, %v1305
        // Predicated region
        $region141: #{bert_encoder_forward.3} parent=87 // pred_check
          %p1307 = pneg %p773
        $region142: #{bert_encoder_forward.3} parent=87 // pred_check_branch
          %1309 = sbr.rel (%p1307) target = $region144
        $region143: #{bert_encoder_forward.3} parent=87 // pred_region
          %v1310 = vld [vmem:[#allocation4] sm:$0xff]
          %v1311 = vld [vmem:[#allocation19] sm:$0x1]
          %v1313 = vperm.slane %v1311, 0
          %v1315 = vadd.f32 %v1310, %v1313
          %v1316 = vld [vmem:[#allocation2] sm:$0xff]
          %v1317 = vadd.f32 %v1315, %v1316
          %v1318 = vld [vmem:[#allocation21] sm:$0x1]
          %v1319 = vld [vmem:[#allocation22] sm:$0x1]
          %v1320 = vsel %vm1236, %v1317, 0.0
          %1321 = vadd.xlane.f32.xlu0 %v1320
          %v1322 = vpop.xlane.xlu0 %1321
          %v1323 = vrcp.pop 32.0
          %v1324 = vmul.f32 32.0, %v1323
          %v1325 = vsub.f32 1.0, %v1324
          %v1326 = vmul.f32 %v1323, %v1325
          %v1327 = vadd.f32 %v1323, %v1326
          %vm1328 = vweird.f32 %v1323
          %v1329 = vsel %vm1328, %v1323, %v1327
          %v1330 = vmul.f32 %v1322, %v1329
          %v1331 = vsub.f32 %v1317, %v1330
          %v1332 = vmul.f32 %v1331, %v1331
          %v1333 = vsel %vm1236, %v1332, 0.0
          %1334 = vadd.xlane.f32.xlu0 %v1333
          %v1335 = vpop.xlane.xlu0 %1334
          %v1336 = vmul.f32 %v1335, %v1329
          %v1337 = vadd.f32 %v1336, 1e-05
          %v1338 = vrsqrt.pop %v1337
          %v1339 = vmul.f32 %v1338, %v1337
          %v1340 = vmul.f32 %v1339, %v1338
          %v1341 = vmul.f32 0.5, %v1340
          %v1342 = vsub.f32 1.5, %v1341
          %v1343 = vmul.f32 %v1338, %v1342
          %vm1344 = vweird.f32 %v1337
          %vm1345 = vweird.f32 %v1338
          %vm1346 = vmor %vm1344, %vm1345
          %v1347 = vsel %vm1346, %v1338, %v1343
          %v1348 = vmul.f32 %v1331, %v1347
          %v1350 = vperm.slane %v1318, 0
          %v1352 = vmul.f32 %v1348, %v1350
          %v1354 = vperm.slane %v1319, 0
          %v1356 = vadd.f32 %v1352, %v1354
          %1357 = vst.msk [vmem:[%s771] sm:$0xff] %vm1236, %v1356
        $region144: #{bert_encoder_forward.3} parent=87 // pred_fallthru
          _
        %p1358 = scmp.lt.s32.totalorder %s39, 1
        %s1359 = scalar_select %p1358, %s39, 1
        %s1360 = smul.addr %s1359, 8
        %s1361 = scalar_lea.vmem %s17, %s1360
        // Predicated region
        $region145: #{bert_encoder_forward.3} parent=87 // pred_check
          %p1362 = pneg %p442
        $region146: #{bert_encoder_forward.3} parent=87 // pred_check_branch
          %1364 = sbr.rel (%p1362) target = $region148
        $region147: #{bert_encoder_forward.3} parent=87 // pred_region
          _
        $region148: #{bert_encoder_forward.3} parent=87 // pred_fallthru
          _
      $region88: #{bert_encoder_forward.3} parent=5 // pred_fallthru
        _
      %p1365 = scmp.le.s32.totalorder 2, %s30
      // Predicated region
      $region149: #{bert_encoder_forward.3} parent=5 // pred_check
        %p1366 = pneg %p1365
      $region150: #{bert_encoder_forward.3} parent=5 // pred_check_branch
        %1368 = sbr.rel (%p1366) target = $region152
      $region151: #{bert_encoder_forward.3} parent=5 // pred_region
        %s1369 = ssub.s32 %s30, 2
        // Predicated region
        $region153: #{bert_encoder_forward.3} parent=151 // pred_check
          %p1370 = pneg %p448
        $region154: #{bert_encoder_forward.3} parent=151 // pred_check_branch
          %1372 = sbr.rel (%p1370) target = $region156
        $region155: #{bert_encoder_forward.3} parent=151 // pred_region
          %p1373 = scmp.lt.s32.totalorder %s41, 1
          %s1374 = scalar_select %p1373, %s41, 1
          %s1375 = smul.addr %s1374, 8
          %s1376 = scalar_lea.vmem %s17, %s1375
        $region156: #{bert_encoder_forward.3} parent=151 // pred_fallthru
          _
      $region152: #{bert_encoder_forward.3} parent=5 // pred_fallthru
        _
    $region6: #{bert_encoder_forward.3} parent=1 // loop_footer
      %s34 = sadd.s32 1, %s30
    $region7: #{bert_encoder_forward.3} parent=1 // loop_footer_branch
      %29 = sbr.rel target = $region3
    $region8: #{bert_encoder_forward.3} parent=1 // loop_exit
      _
    %1377 = vsyncpa [#allocation6], 1
    %s1378 = scalar_lea.sflag [#allocation6], 1
    %1379 = vsyncpa %s1378, 1
    %1380 = vsyncpa [#allocation8], 1
    %1381 = vsyncpa [#allocation11], 1
    %1382 = vsyncpa [#allocation14], 1
    %1383 = vsyncpa [#allocation17], 1
    %1384 = vsyncpa [#allocation20], 1
    %1385 = vsyncpa [#allocation23], 1

</llo_original>
